<compile_context>
chip_gen: v6e
topology: v6e:2x2x1
jax: 0.10.0
libtpu: 0.0.40
codegen_flags: <defaults>
</compile_context>

<pallas_src>
import math
from functools import partial

import jax
import jax.numpy as jnp
from jax.experimental import pallas as pl
from jax.experimental.pallas import tpu as pltpu


def _rt_attention_kernel(rt_ref, mask_ref, wqkv_ref, bqkv_ref, wproj_ref,
                         bproj_ref, out_ref, *, num_heads: int, scale: float,
                         compute_dtype):
    # rt_ref:    (Bt*N, C)   flat slab of relay tokens for Bt batch items
    # mask_ref:  (Bt, N, N)  additive attention mask (broadcast over heads), f32
    # wqkv_ref:  (C, 3C)     qkv weight stored in->out so y = x @ W + b
    # bqkv_ref:  (1, 3C)     f32
    # wproj_ref: (C, C)
    # bproj_ref: (1, C)      f32
    # out_ref:   (Bt*N, C)
    rows, C = rt_ref.shape
    Bt, N, _ = mask_ref.shape
    hd = C // num_heads

    x = rt_ref[...].astype(compute_dtype)                            # (rows, C)

    # --- QKV projection on the whole (Bt*N, C) slab: one big MXU matmul ---
    qkv = jnp.dot(x, wqkv_ref[...], preferred_element_type=jnp.float32)
    qkv = qkv + bqkv_ref[0]                                          # (rows, 3C) f32

    # Cast to the matmul dtype once; fold the softmax scale into q (cheap VPU
    # multiply on (rows, C) instead of scaling every (N, N) score tile).
    q = (qkv[:, 0 * C:1 * C] * scale).astype(compute_dtype)
    k = qkv[:, 1 * C:2 * C].astype(compute_dtype)
    v = qkv[:, 2 * C:3 * C].astype(compute_dtype)

    mask = mask_ref[...]                                             # (Bt, N, N) f32
    wproj = wproj_ref[...]                                           # (C, C)

    out = jnp.zeros((rows, C), jnp.float32)
    for h in range(num_heads):
        sl = slice(h * hd, (h + 1) * hd)
        q_h = q[:, sl].reshape(Bt, N, hd)
        k_h = k[:, sl].reshape(Bt, N, hd)
        v_h = v[:, sl].reshape(Bt, N, hd)

        # Scores: contract head_dim directly (no explicit k.T / XLU transpose).
        s = jnp.einsum('bnd,bmd->bnm', q_h, k_h,
                       preferred_element_type=jnp.float32)            # (Bt, N, N)
        s = s + mask

        # Numerically stable softmax over keys, kept in f32 (VPU/EUP path).
        s = s - jnp.max(s, axis=-1, keepdims=True)
        p = jnp.exp(s)
        p = p * pl.reciprocal(jnp.sum(p, axis=-1, keepdims=True), approx=True)

        o_h = jnp.einsum('bnm,bmd->bnd', p.astype(compute_dtype), v_h,
                         preferred_element_type=jnp.float32)          # (Bt, N, hd)

        # Head-merge fused into the output projection: head h owns channels
        # [h*hd, (h+1)*hd), i.e. rows [h*hd, (h+1)*hd) of wproj, so
        # merged @ wproj == sum_h o_h @ wproj[h*hd:(h+1)*hd, :].  This avoids
        # a VMEM merge slab and per-head narrow (masked) stores entirely.
        out = out + jnp.dot(o_h.reshape(rows, hd).astype(compute_dtype),
                            wproj[sl, :], preferred_element_type=jnp.float32)

    # Single full-width store (lane-dense over C; C < 128 only at toy sizes).
    out_ref[...] = (out + bproj_ref[0]).astype(out_ref.dtype)


def _choose_batch_block(B: int, N: int, *, sublane: int = 8,
                        target_rows: int = 512) -> int:
    """Pick Bt (batch items per grid step).

    Preference order:
      1. Bt*N rows are sublane-aligned (or Bt == B: full-array exemption).
      2. Bt*N <= target_rows (VMEM / HBM-roofline friendly tile).
      3. grid = B // Bt >= 2 (both v7x TensorCores busy, DMA pipelining alive).
      4. Maximise Bt (amortise per-step overhead, taller MXU matmuls).
    """
    candidates = [d for d in range(1, B + 1)
                  if B % d == 0 and ((d * N) % sublane == 0 or d == B)]

    def goodness(d):
        rows = d * N
        fits = rows <= max(target_rows, N)
        multi_step = (B // d) >= 2
        return (fits, multi_step, d)

    return max(candidates, key=goodness)


def _vmem_limit_bytes() -> int:
    """Scoped-VMEM limit sized from the actual device generation."""
    cap = 0
    try:
        cap = int(getattr(pltpu.get_tpu_info(), "vmem_capacity_bytes", 0) or 0)
    except Exception:
        cap = 0
    if cap <= 0:
        cap = 64 * 1024 * 1024          # conservative: v7x physical size
    return (cap * 3) // 4               # leave headroom for the compiler


def rt_attention(relay_tokens, attn_mask, params, *, num_heads: int,
                 qk_scale=None, compute_dtype=jnp.float32, batch_block=None):
    """relay_tokens: (B, N, C), attn_mask: (B, N, N) additive mask."""
    B, N, C = relay_tokens.shape
    assert C % num_heads == 0, "dim must be divisible by num_heads"
    hd = C // num_heads
    scale = float(qk_scale) if qk_scale is not None else hd ** (-0.5)

    # bf16 path: cast tokens at the boundary (halves input HBM traffic and the
    # double-buffered VMEM for the token slab); bf16 tokens want 16-sublane
    # tiles so the block is aligned to the (16, 128) bf16 tiling.
    token_dtype = jnp.bfloat16 if compute_dtype == jnp.bfloat16 else relay_tokens.dtype
    sublane = 16 if token_dtype == jnp.bfloat16 else 8

    Bt = (_choose_batch_block(B, N, sublane=sublane)
          if batch_block is None else batch_block)
    assert B % Bt == 0
    rows = Bt * N

    # Weights in the matmul compute dtype; biases stay f32 (added to f32 acc).
    wqkv = params["wqkv"].astype(compute_dtype)
    wproj = params["wproj"].astype(compute_dtype)
    bqkv = params["bqkv"].astype(jnp.float32)
    bproj = params["bproj"].astype(jnp.float32)

    x2d = relay_tokens.reshape(B * N, C).astype(token_dtype)
    mask = attn_mask.astype(jnp.float32)

    kernel = partial(_rt_attention_kernel, num_heads=num_heads, scale=scale,
                     compute_dtype=compute_dtype)

    def build(single_buffer_weights: bool):
        # Loop-invariant weight/bias blocks: single-buffered (constant
        # index_map -> no re-DMA; no point spending 2x their VMEM footprint).
        wk = ({"pipeline_mode": pl.Buffered(1)}
              if single_buffer_weights else {})
        return pl.pallas_call(
            kernel,
            out_shape=jax.ShapeDtypeStruct((B * N, C), relay_tokens.dtype),
            grid_spec=pltpu.PrefetchScalarGridSpec(
                num_scalar_prefetch=0,
                grid=(B // Bt,),
                in_specs=[
                    pl.BlockSpec((rows, C), lambda i: (i, 0)),       # tokens
                    pl.BlockSpec((Bt, N, N), lambda i: (i, 0, 0)),   # mask
                    pl.BlockSpec((C, 3 * C), lambda i: (0, 0), **wk),  # wqkv
                    pl.BlockSpec((1, 3 * C), lambda i: (0, 0), **wk),  # bqkv
                    pl.BlockSpec((C, C), lambda i: (0, 0), **wk),      # wproj
                    pl.BlockSpec((1, C), lambda i: (0, 0), **wk),      # bproj
                ],
                out_specs=pl.BlockSpec((rows, C), lambda i: (i, 0)),
            ),
            compiler_params=pltpu.CompilerParams(
                dimension_semantics=("parallel",),
                vmem_limit_bytes=_vmem_limit_bytes()),
        )

    try:
        out2d = build(True)(x2d, mask, wqkv, bqkv, wproj, bproj)
    except Exception:
        # Older Pallas builds may reject pipeline_mode on BlockSpec; fall back
        # to default (double-buffered) weight pipelining.
        out2d = build(False)(x2d, mask, wqkv, bqkv, wproj, bproj)

    return out2d.reshape(B, N, C)


def rt_attention_reference(relay_tokens, attn_mask, params, *, num_heads: int,
                           qk_scale=None):
    """Pure-JAX reference reproducing the PyTorch forward pass."""
    B, N, C = relay_tokens.shape
    hd = C // num_heads
    scale = qk_scale if qk_scale is not None else hd ** (-0.5)

    qkv = relay_tokens @ params["wqkv"] + params["bqkv"][0]           # (B, N, 3C)
    qkv = qkv.reshape(B, N, 3, num_heads, hd).transpose(2, 0, 3, 1, 4)
    q, k, v = qkv[0], qkv[1], qkv[2]                                  # (B, H, N, hd)

    attn = (q * scale) @ jnp.swapaxes(k, -2, -1)                      # (B, H, N, N)
    attn = attn + attn_mask[:, None, :, :]
    attn = jax.nn.softmax(attn, axis=-1)
    out = attn @ v                                                    # (B, H, N, hd)
    out = out.transpose(0, 2, 1, 3).reshape(B, N, C)
    return out @ params["wproj"] + params["bproj"][0]


def init_params(key, dim):
    k1, k2, k3, k4 = jax.random.split(key, 4)
    std = 1.0 / math.sqrt(dim)
    return {
        # weights stored (in, out) so the kernel does y = x @ W + b
        "wqkv": jax.random.normal(k1, (dim, 3 * dim), jnp.float32) * std,
        "bqkv": jax.random.normal(k2, (1, 3 * dim), jnp.float32) * 0.02,
        "wproj": jax.random.normal(k3, (dim, dim), jnp.float32) * std,
        "bproj": jax.random.normal(k4, (1, dim), jnp.float32) * 0.02,
    }


if __name__ == "__main__":
    B, N, C, H = 2, 8, 32, 4          # batch, relay tokens, dim, heads

    key = jax.random.PRNGKey(0)
    k_x, k_p = jax.random.split(key)

    relay_tokens = jax.random.normal(k_x, (B, N, C), jnp.float32)

    # Additive padding mask: last 2 relay tokens of batch 1 are padded out.
    neg = jnp.float32(-1e9)
    mask = jnp.zeros((B, N, N), jnp.float32)
    mask = mask.at[1, :, N - 2:].set(neg)

    params = init_params(k_p, C)
    ref = rt_attention_reference(relay_tokens, mask, params, num_heads=H)

    # f32 matmul-operand path (matches the PyTorch reference up to the EUP
    # approx reciprocal in the softmax denominator).
    out_f32 = jax.block_until_ready(
        rt_attention(relay_tokens, mask, params, num_heads=H,
                     compute_dtype=jnp.float32))
    assert out_f32.shape == (B, N, C)
    assert jnp.allclose(out_f32, ref, atol=1e-2, rtol=1e-2), (
        float(jnp.max(jnp.abs(out_f32 - ref))))

    # bf16 matmul-operand path (MXU-native on v6e/v7x); softmax & accum in f32.
    out_bf16 = jax.block_until_ready(
        rt_attention(relay_tokens, mask, params, num_heads=H,
                     compute_dtype=jnp.bfloat16))
    assert jnp.allclose(out_bf16, ref, atol=0.15, rtol=0.15), (
        float(jnp.max(jnp.abs(out_bf16 - ref))))

    print("KERNEL_OK")
</pallas_src>

<mosaic_0001>
module attributes {stable_mosaic.version = 11 : i64} {
  func.func @_rt_attention_kernel(%arg0: i32, %arg1: memref<8x32xf32, #tpu.memory_space<vmem>>, %arg2: memref<1x8x8xf32, #tpu.memory_space<vmem>>, %arg3: memref<32x96xf32, #tpu.memory_space<vmem>>, %arg4: memref<1x96xf32, #tpu.memory_space<vmem>>, %arg5: memref<32x32xf32, #tpu.memory_space<vmem>>, %arg6: memref<1x32xf32, #tpu.memory_space<vmem>>, %arg7: memref<8x32xf32, #tpu.memory_space<vmem>>) attributes {dimension_semantics = [#tpu.dimension_semantics<parallel>], iteration_bounds = array<i64: 2>, scalar_prefetch = 0 : i64, scratch_operands = 0 : i64, tpu.core_type = #tpu.core_type<tc>, window_params = [{transform_indices = @transform_0, window_bounds = array<i64: 8, 32>}, {transform_indices = @transform_1, window_bounds = array<i64: 1, 8, 8>}, {pipeline_mode = #tpu.pipeline_mode<synchronous>, transform_indices = @transform_2, window_bounds = array<i64: 32, 96>}, {pipeline_mode = #tpu.pipeline_mode<synchronous>, transform_indices = @transform_3, window_bounds = array<i64: 1, 96>}, {pipeline_mode = #tpu.pipeline_mode<synchronous>, transform_indices = @transform_4, window_bounds = array<i64: 32, 32>}, {pipeline_mode = #tpu.pipeline_mode<synchronous>, transform_indices = @transform_5, window_bounds = array<i64: 1, 32>}, {transform_indices = @transform_6, window_bounds = array<i64: 8, 32>}]} {
    %c0 = arith.constant 0 : index
    %c0_0 = arith.constant 0 : index
    %0 = vector.load %arg1[%c0, %c0_0] : memref<8x32xf32, #tpu.memory_space<vmem>>, vector<8x32xf32>
    %c0_1 = arith.constant 0 : index
    %c0_2 = arith.constant 0 : index
    %1 = vector.load %arg3[%c0_1, %c0_2] : memref<32x96xf32, #tpu.memory_space<vmem>>, vector<32x96xf32>
    %cst = arith.constant dense<0.000000e+00> : vector<8x96xf32>
    %2 = tpu.matmul %0, %1, %cst {dimension_numbers = #tpu.dot_dimension_numbers<[1], [0], [0], [1], [0, 0, 1, 1], [], []>} : vector<8x32xf32>, vector<32x96xf32>, vector<8x96xf32> -> vector<8x96xf32>
    %c0_3 = arith.constant 0 : index
    %c0_4 = arith.constant 0 : index
    %3 = vector.load %arg4[%c0_3, %c0_4] : memref<1x96xf32, #tpu.memory_space<vmem>>, vector<1x96xf32>
    %4 = vector.shape_cast %3 : vector<1x96xf32> to vector<96xf32>
    %5 = vector.shape_cast %4 : vector<96xf32> to vector<1x96xf32>
    %6 = vector.broadcast %5 : vector<1x96xf32> to vector<8x96xf32>
    %7 = arith.addf %2, %6 : vector<8x96xf32>
    %8 = vector.extract_strided_slice %7 {offsets = [0, 0], sizes = [8, 32], strides = [1, 1]} : vector<8x96xf32> to vector<8x32xf32>
    %cst_5 = arith.constant 0.353553385 : f32
    %9 = vector.broadcast %cst_5 : f32 to vector<8x32xf32>
    %10 = arith.mulf %8, %9 : vector<8x32xf32>
    %11 = vector.extract_strided_slice %7 {offsets = [0, 32], sizes = [8, 32], strides = [1, 1]} : vector<8x96xf32> to vector<8x32xf32>
    %12 = vector.extract_strided_slice %7 {offsets = [0, 64], sizes = [8, 32], strides = [1, 1]} : vector<8x96xf32> to vector<8x32xf32>
    %c0_6 = arith.constant 0 : index
    %c0_7 = arith.constant 0 : index
    %c0_8 = arith.constant 0 : index
    %13 = vector.load %arg2[%c0_6, %c0_7, %c0_8] : memref<1x8x8xf32, #tpu.memory_space<vmem>>, vector<1x8x8xf32>
    %c0_9 = arith.constant 0 : index
    %c0_10 = arith.constant 0 : index
    %14 = vector.load %arg5[%c0_9, %c0_10] : memref<32x32xf32, #tpu.memory_space<vmem>>, vector<32x32xf32>
    %cst_11 = arith.constant 0.000000e+00 : f32
    %15 = vector.broadcast %cst_11 : f32 to vector<8x32xf32>
    %16 = vector.extract_strided_slice %10 {offsets = [0, 0], sizes = [8, 8], strides = [1, 1]} : vector<8x32xf32> to vector<8x8xf32>
    %17 = vector.shape_cast %16 : vector<8x8xf32> to vector<1x8x8xf32>
    %18 = vector.extract_strided_slice %11 {offsets = [0, 0], sizes = [8, 8], strides = [1, 1]} : vector<8x32xf32> to vector<8x8xf32>
    %19 = vector.shape_cast %18 : vector<8x8xf32> to vector<1x8x8xf32>
    %20 = vector.extract_strided_slice %12 {offsets = [0, 0], sizes = [8, 8], strides = [1, 1]} : vector<8x32xf32> to vector<8x8xf32>
    %21 = vector.shape_cast %20 : vector<8x8xf32> to vector<1x8x8xf32>
    "tpu.trace_start"() <{level = 10 : i32, message = "bnd,bmd->bnm"}> : () -> ()
    %cst_12 = arith.constant dense<0.000000e+00> : vector<1x8x8xf32>
    %22 = tpu.matmul %17, %19, %cst_12 {dimension_numbers = #tpu.dot_dimension_numbers<[2], [2], [1], [1], [0, 0, 0, 1, 1, 1], [0], [0]>} : vector<1x8x8xf32>, vector<1x8x8xf32>, vector<1x8x8xf32> -> vector<1x8x8xf32>
    "tpu.trace_stop"() : () -> ()
    %23 = arith.addf %22, %13 : vector<1x8x8xf32>
    %cst_13 = arith.constant dense<0xFF800000> : vector<1x8xf32>
    %24 = vector.multi_reduction <maximumf>, %23, %cst_13 [2] : vector<1x8x8xf32> to vector<1x8xf32>
    %25 = vector.shape_cast %24 : vector<1x8xf32> to vector<1x8x1xf32>
    %26 = vector.broadcast %25 : vector<1x8x1xf32> to vector<1x8x8xf32>
    %27 = arith.subf %23, %26 : vector<1x8x8xf32>
    %28 = math.exp %27 : vector<1x8x8xf32>
    %cst_14 = arith.constant dense<0.000000e+00> : vector<1x8xf32>
    %29 = vector.multi_reduction <add>, %28, %cst_14 [2] : vector<1x8x8xf32> to vector<1x8xf32>
    %30 = vector.shape_cast %29 : vector<1x8xf32> to vector<1x8x1xf32>
    %31 = tpu.reciprocal %30 {approx = true} : vector<1x8x1xf32> -> vector<1x8x1xf32>
    %32 = vector.broadcast %31 : vector<1x8x1xf32> to vector<1x8x8xf32>
    %33 = arith.mulf %28, %32 : vector<1x8x8xf32>
    "tpu.trace_start"() <{level = 10 : i32, message = "bnm,bmd->bnd"}> : () -> ()
    %cst_15 = arith.constant dense<0.000000e+00> : vector<1x8x8xf32>
    %34 = tpu.matmul %33, %21, %cst_15 {dimension_numbers = #tpu.dot_dimension_numbers<[2], [1], [1], [2], [0, 0, 0, 1, 1, 2], [0], [0]>} : vector<1x8x8xf32>, vector<1x8x8xf32>, vector<1x8x8xf32> -> vector<1x8x8xf32>
    "tpu.trace_stop"() : () -> ()
    %35 = vector.shape_cast %34 : vector<1x8x8xf32> to vector<8x8xf32>
    %36 = vector.extract_strided_slice %14 {offsets = [0, 0], sizes = [8, 32], strides = [1, 1]} : vector<32x32xf32> to vector<8x32xf32>
    %cst_16 = arith.constant dense<0.000000e+00> : vector<8x32xf32>
    %37 = tpu.matmul %35, %36, %cst_16 {dimension_numbers = #tpu.dot_dimension_numbers<[1], [0], [0], [1], [0, 0, 1, 1], [], []>} : vector<8x8xf32>, vector<8x32xf32>, vector<8x32xf32> -> vector<8x32xf32>
    %38 = arith.addf %15, %37 : vector<8x32xf32>
    %39 = vector.extract_strided_slice %10 {offsets = [0, 8], sizes = [8, 8], strides = [1, 1]} : vector<8x32xf32> to vector<8x8xf32>
    %40 = vector.shape_cast %39 : vector<8x8xf32> to vector<1x8x8xf32>
    %41 = vector.extract_strided_slice %11 {offsets = [0, 8], sizes = [8, 8], strides = [1, 1]} : vector<8x32xf32> to vector<8x8xf32>
    %42 = vector.shape_cast %41 : vector<8x8xf32> to vector<1x8x8xf32>
    %43 = vector.extract_strided_slice %12 {offsets = [0, 8], sizes = [8, 8], strides = [1, 1]} : vector<8x32xf32> to vector<8x8xf32>
    %44 = vector.shape_cast %43 : vector<8x8xf32> to vector<1x8x8xf32>
    "tpu.trace_start"() <{level = 10 : i32, message = "bnd,bmd->bnm"}> : () -> ()
    %cst_17 = arith.constant dense<0.000000e+00> : vector<1x8x8xf32>
    %45 = tpu.matmul %40, %42, %cst_17 {dimension_numbers = #tpu.dot_dimension_numbers<[2], [2], [1], [1], [0, 0, 0, 1, 1, 1], [0], [0]>} : vector<1x8x8xf32>, vector<1x8x8xf32>, vector<1x8x8xf32> -> vector<1x8x8xf32>
    "tpu.trace_stop"() : () -> ()
    %46 = arith.addf %45, %13 : vector<1x8x8xf32>
    %cst_18 = arith.constant dense<0xFF800000> : vector<1x8xf32>
    %47 = vector.multi_reduction <maximumf>, %46, %cst_18 [2] : vector<1x8x8xf32> to vector<1x8xf32>
    %48 = vector.shape_cast %47 : vector<1x8xf32> to vector<1x8x1xf32>
    %49 = vector.broadcast %48 : vector<1x8x1xf32> to vector<1x8x8xf32>
    %50 = arith.subf %46, %49 : vector<1x8x8xf32>
    %51 = math.exp %50 : vector<1x8x8xf32>
    %cst_19 = arith.constant dense<0.000000e+00> : vector<1x8xf32>
    %52 = vector.multi_reduction <add>, %51, %cst_19 [2] : vector<1x8x8xf32> to vector<1x8xf32>
    %53 = vector.shape_cast %52 : vector<1x8xf32> to vector<1x8x1xf32>
    %54 = tpu.reciprocal %53 {approx = true} : vector<1x8x1xf32> -> vector<1x8x1xf32>
    %55 = vector.broadcast %54 : vector<1x8x1xf32> to vector<1x8x8xf32>
    %56 = arith.mulf %51, %55 : vector<1x8x8xf32>
    "tpu.trace_start"() <{level = 10 : i32, message = "bnm,bmd->bnd"}> : () -> ()
    %cst_20 = arith.constant dense<0.000000e+00> : vector<1x8x8xf32>
    %57 = tpu.matmul %56, %44, %cst_20 {dimension_numbers = #tpu.dot_dimension_numbers<[2], [1], [1], [2], [0, 0, 0, 1, 1, 2], [0], [0]>} : vector<1x8x8xf32>, vector<1x8x8xf32>, vector<1x8x8xf32> -> vector<1x8x8xf32>
    "tpu.trace_stop"() : () -> ()
    %58 = vector.shape_cast %57 : vector<1x8x8xf32> to vector<8x8xf32>
    %59 = vector.extract_strided_slice %14 {offsets = [8, 0], sizes = [8, 32], strides = [1, 1]} : vector<32x32xf32> to vector<8x32xf32>
    %cst_21 = arith.constant dense<0.000000e+00> : vector<8x32xf32>
    %60 = tpu.matmul %58, %59, %cst_21 {dimension_numbers = #tpu.dot_dimension_numbers<[1], [0], [0], [1], [0, 0, 1, 1], [], []>} : vector<8x8xf32>, vector<8x32xf32>, vector<8x32xf32> -> vector<8x32xf32>
    %61 = arith.addf %38, %60 : vector<8x32xf32>
    %62 = vector.extract_strided_slice %10 {offsets = [0, 16], sizes = [8, 8], strides = [1, 1]} : vector<8x32xf32> to vector<8x8xf32>
    %63 = vector.shape_cast %62 : vector<8x8xf32> to vector<1x8x8xf32>
    %64 = vector.extract_strided_slice %11 {offsets = [0, 16], sizes = [8, 8], strides = [1, 1]} : vector<8x32xf32> to vector<8x8xf32>
    %65 = vector.shape_cast %64 : vector<8x8xf32> to vector<1x8x8xf32>
    %66 = vector.extract_strided_slice %12 {offsets = [0, 16], sizes = [8, 8], strides = [1, 1]} : vector<8x32xf32> to vector<8x8xf32>
    %67 = vector.shape_cast %66 : vector<8x8xf32> to vector<1x8x8xf32>
    "tpu.trace_start"() <{level = 10 : i32, message = "bnd,bmd->bnm"}> : () -> ()
    %cst_22 = arith.constant dense<0.000000e+00> : vector<1x8x8xf32>
    %68 = tpu.matmul %63, %65, %cst_22 {dimension_numbers = #tpu.dot_dimension_numbers<[2], [2], [1], [1], [0, 0, 0, 1, 1, 1], [0], [0]>} : vector<1x8x8xf32>, vector<1x8x8xf32>, vector<1x8x8xf32> -> vector<1x8x8xf32>
    "tpu.trace_stop"() : () -> ()
    %69 = arith.addf %68, %13 : vector<1x8x8xf32>
    %cst_23 = arith.constant dense<0xFF800000> : vector<1x8xf32>
    %70 = vector.multi_reduction <maximumf>, %69, %cst_23 [2] : vector<1x8x8xf32> to vector<1x8xf32>
    %71 = vector.shape_cast %70 : vector<1x8xf32> to vector<1x8x1xf32>
    %72 = vector.broadcast %71 : vector<1x8x1xf32> to vector<1x8x8xf32>
    %73 = arith.subf %69, %72 : vector<1x8x8xf32>
    %74 = math.exp %73 : vector<1x8x8xf32>
    %cst_24 = arith.constant dense<0.000000e+00> : vector<1x8xf32>
    %75 = vector.multi_reduction <add>, %74, %cst_24 [2] : vector<1x8x8xf32> to vector<1x8xf32>
    %76 = vector.shape_cast %75 : vector<1x8xf32> to vector<1x8x1xf32>
    %77 = tpu.reciprocal %76 {approx = true} : vector<1x8x1xf32> -> vector<1x8x1xf32>
    %78 = vector.broadcast %77 : vector<1x8x1xf32> to vector<1x8x8xf32>
    %79 = arith.mulf %74, %78 : vector<1x8x8xf32>
    "tpu.trace_start"() <{level = 10 : i32, message = "bnm,bmd->bnd"}> : () -> ()
    %cst_25 = arith.constant dense<0.000000e+00> : vector<1x8x8xf32>
    %80 = tpu.matmul %79, %67, %cst_25 {dimension_numbers = #tpu.dot_dimension_numbers<[2], [1], [1], [2], [0, 0, 0, 1, 1, 2], [0], [0]>} : vector<1x8x8xf32>, vector<1x8x8xf32>, vector<1x8x8xf32> -> vector<1x8x8xf32>
    "tpu.trace_stop"() : () -> ()
    %81 = vector.shape_cast %80 : vector<1x8x8xf32> to vector<8x8xf32>
    %82 = vector.extract_strided_slice %14 {offsets = [16, 0], sizes = [8, 32], strides = [1, 1]} : vector<32x32xf32> to vector<8x32xf32>
    %cst_26 = arith.constant dense<0.000000e+00> : vector<8x32xf32>
    %83 = tpu.matmul %81, %82, %cst_26 {dimension_numbers = #tpu.dot_dimension_numbers<[1], [0], [0], [1], [0, 0, 1, 1], [], []>} : vector<8x8xf32>, vector<8x32xf32>, vector<8x32xf32> -> vector<8x32xf32>
    %84 = arith.addf %61, %83 : vector<8x32xf32>
    %85 = vector.extract_strided_slice %10 {offsets = [0, 24], sizes = [8, 8], strides = [1, 1]} : vector<8x32xf32> to vector<8x8xf32>
    %86 = vector.shape_cast %85 : vector<8x8xf32> to vector<1x8x8xf32>
    %87 = vector.extract_strided_slice %11 {offsets = [0, 24], sizes = [8, 8], strides = [1, 1]} : vector<8x32xf32> to vector<8x8xf32>
    %88 = vector.shape_cast %87 : vector<8x8xf32> to vector<1x8x8xf32>
    %89 = vector.extract_strided_slice %12 {offsets = [0, 24], sizes = [8, 8], strides = [1, 1]} : vector<8x32xf32> to vector<8x8xf32>
    %90 = vector.shape_cast %89 : vector<8x8xf32> to vector<1x8x8xf32>
    "tpu.trace_start"() <{level = 10 : i32, message = "bnd,bmd->bnm"}> : () -> ()
    %cst_27 = arith.constant dense<0.000000e+00> : vector<1x8x8xf32>
    %91 = tpu.matmul %86, %88, %cst_27 {dimension_numbers = #tpu.dot_dimension_numbers<[2], [2], [1], [1], [0, 0, 0, 1, 1, 1], [0], [0]>} : vector<1x8x8xf32>, vector<1x8x8xf32>, vector<1x8x8xf32> -> vector<1x8x8xf32>
    "tpu.trace_stop"() : () -> ()
    %92 = arith.addf %91, %13 : vector<1x8x8xf32>
    %cst_28 = arith.constant dense<0xFF800000> : vector<1x8xf32>
    %93 = vector.multi_reduction <maximumf>, %92, %cst_28 [2] : vector<1x8x8xf32> to vector<1x8xf32>
    %94 = vector.shape_cast %93 : vector<1x8xf32> to vector<1x8x1xf32>
    %95 = vector.broadcast %94 : vector<1x8x1xf32> to vector<1x8x8xf32>
    %96 = arith.subf %92, %95 : vector<1x8x8xf32>
    %97 = math.exp %96 : vector<1x8x8xf32>
    %cst_29 = arith.constant dense<0.000000e+00> : vector<1x8xf32>
    %98 = vector.multi_reduction <add>, %97, %cst_29 [2] : vector<1x8x8xf32> to vector<1x8xf32>
    %99 = vector.shape_cast %98 : vector<1x8xf32> to vector<1x8x1xf32>
    %100 = tpu.reciprocal %99 {approx = true} : vector<1x8x1xf32> -> vector<1x8x1xf32>
    %101 = vector.broadcast %100 : vector<1x8x1xf32> to vector<1x8x8xf32>
    %102 = arith.mulf %97, %101 : vector<1x8x8xf32>
    "tpu.trace_start"() <{level = 10 : i32, message = "bnm,bmd->bnd"}> : () -> ()
    %cst_30 = arith.constant dense<0.000000e+00> : vector<1x8x8xf32>
    %103 = tpu.matmul %102, %90, %cst_30 {dimension_numbers = #tpu.dot_dimension_numbers<[2], [1], [1], [2], [0, 0, 0, 1, 1, 2], [0], [0]>} : vector<1x8x8xf32>, vector<1x8x8xf32>, vector<1x8x8xf32> -> vector<1x8x8xf32>
    "tpu.trace_stop"() : () -> ()
    %104 = vector.shape_cast %103 : vector<1x8x8xf32> to vector<8x8xf32>
    %105 = vector.extract_strided_slice %14 {offsets = [24, 0], sizes = [8, 32], strides = [1, 1]} : vector<32x32xf32> to vector<8x32xf32>
    %cst_31 = arith.constant dense<0.000000e+00> : vector<8x32xf32>
    %106 = tpu.matmul %104, %105, %cst_31 {dimension_numbers = #tpu.dot_dimension_numbers<[1], [0], [0], [1], [0, 0, 1, 1], [], []>} : vector<8x8xf32>, vector<8x32xf32>, vector<8x32xf32> -> vector<8x32xf32>
    %107 = arith.addf %84, %106 : vector<8x32xf32>
    %c0_32 = arith.constant 0 : index
    %c0_33 = arith.constant 0 : index
    %108 = vector.load %arg6[%c0_32, %c0_33] : memref<1x32xf32, #tpu.memory_space<vmem>>, vector<1x32xf32>
    %109 = vector.shape_cast %108 : vector<1x32xf32> to vector<32xf32>
    %110 = vector.shape_cast %109 : vector<32xf32> to vector<1x32xf32>
    %111 = vector.broadcast %110 : vector<1x32xf32> to vector<8x32xf32>
    %112 = arith.addf %107, %111 : vector<8x32xf32>
    %c0_34 = arith.constant 0 : index
    %c0_35 = arith.constant 0 : index
    %113 = vector.load %arg7[%c0_34, %c0_35] : memref<8x32xf32, #tpu.memory_space<vmem>>, vector<8x32xf32>
    tpu.vector_store %arg7[%c0_34, %c0_35], %112 {strides = array<i32>} : memref<8x32xf32, #tpu.memory_space<vmem>>, vector<8x32xf32>,
    return
  }
  func.func @transform_0(%arg0: i32) -> (i32, i32) {
    %c0_i32 = arith.constant 0 : i32
    %c0_i32_0 = arith.constant 0 : i32
    return %arg0, %c0_i32 : i32, i32
  }
  func.func @transform_1(%arg0: i32) -> (i32, i32, i32) {
    %c0_i32 = arith.constant 0 : i32
    %c0_i32_0 = arith.constant 0 : i32
    %c0_i32_1 = arith.constant 0 : i32
    return %arg0, %c0_i32, %c0_i32_0 : i32, i32, i32
  }
  func.func @transform_2(%arg0: i32) -> (i32, i32) {
    %c0_i32 = arith.constant 0 : i32
    %c0_i32_0 = arith.constant 0 : i32
    %c0_i32_1 = arith.constant 0 : i32
    return %c0_i32, %c0_i32_0 : i32, i32
  }
  func.func @transform_3(%arg0: i32) -> (i32, i32) {
    %c0_i32 = arith.constant 0 : i32
    %c0_i32_0 = arith.constant 0 : i32
    %c0_i32_1 = arith.constant 0 : i32
    return %c0_i32, %c0_i32_0 : i32, i32
  }
  func.func @transform_4(%arg0: i32) -> (i32, i32) {
    %c0_i32 = arith.constant 0 : i32
    %c0_i32_0 = arith.constant 0 : i32
    %c0_i32_1 = arith.constant 0 : i32
    return %c0_i32, %c0_i32_0 : i32, i32
  }
  func.func @transform_5(%arg0: i32) -> (i32, i32) {
    %c0_i32 = arith.constant 0 : i32
    %c0_i32_0 = arith.constant 0 : i32
    %c0_i32_1 = arith.constant 0 : i32
    return %c0_i32, %c0_i32_0 : i32, i32
  }
  func.func @transform_6(%arg0: i32) -> (i32, i32) {
    %c0_i32 = arith.constant 0 : i32
    %c0_i32_0 = arith.constant 0 : i32
    return %arg0, %c0_i32 : i32, i32
  }
}

module attributes {stable_mosaic.version = 11 : i64} {
  func.func @_rt_attention_kernel(%arg0: i32, %arg1: memref<8x32xf32, #tpu.memory_space<vmem>>, %arg2: memref<1x8x8xf32, #tpu.memory_space<vmem>>, %arg3: memref<32x96xf32, #tpu.memory_space<vmem>>, %arg4: memref<1x96xf32, #tpu.memory_space<vmem>>, %arg5: memref<32x32xf32, #tpu.memory_space<vmem>>, %arg6: memref<1x32xf32, #tpu.memory_space<vmem>>, %arg7: memref<8x32xf32, #tpu.memory_space<vmem>>) attributes {dimension_semantics = [#tpu.dimension_semantics<parallel>], iteration_bounds = array<i64: 2>, scalar_prefetch = 0 : i64, scratch_operands = 0 : i64, tpu.core_type = #tpu.core_type<tc>, window_params = [{transform_indices = @transform_0, window_bounds = array<i64: 8, 32>}, {transform_indices = @transform_1, window_bounds = array<i64: 1, 8, 8>}, {pipeline_mode = #tpu.pipeline_mode<synchronous>, transform_indices = @transform_2, window_bounds = array<i64: 32, 96>}, {pipeline_mode = #tpu.pipeline_mode<synchronous>, transform_indices = @transform_3, window_bounds = array<i64: 1, 96>}, {pipeline_mode = #tpu.pipeline_mode<synchronous>, transform_indices = @transform_4, window_bounds = array<i64: 32, 32>}, {pipeline_mode = #tpu.pipeline_mode<synchronous>, transform_indices = @transform_5, window_bounds = array<i64: 1, 32>}, {transform_indices = @transform_6, window_bounds = array<i64: 8, 32>}]} {
    %c0 = arith.constant 0 : index
    %c0_0 = arith.constant 0 : index
    %0 = vector.load %arg1[%c0, %c0_0] : memref<8x32xf32, #tpu.memory_space<vmem>>, vector<8x32xf32>
    %c0_1 = arith.constant 0 : index
    %c0_2 = arith.constant 0 : index
    %1 = vector.load %arg3[%c0_1, %c0_2] : memref<32x96xf32, #tpu.memory_space<vmem>>, vector<32x96xf32>
    %cst = arith.constant dense<0.000000e+00> : vector<8x96xf32>
    %2 = tpu.matmul %0, %1, %cst {dimension_numbers = #tpu.dot_dimension_numbers<[1], [0], [0], [1], [0, 0, 1, 1], [], []>} : vector<8x32xf32>, vector<32x96xf32>, vector<8x96xf32> -> vector<8x96xf32>
    %c0_3 = arith.constant 0 : index
    %c0_4 = arith.constant 0 : index
    %3 = vector.load %arg4[%c0_3, %c0_4] : memref<1x96xf32, #tpu.memory_space<vmem>>, vector<1x96xf32>
    %4 = vector.shape_cast %3 : vector<1x96xf32> to vector<96xf32>
    %5 = vector.shape_cast %4 : vector<96xf32> to vector<1x96xf32>
    %6 = vector.broadcast %5 : vector<1x96xf32> to vector<8x96xf32>
    %7 = arith.addf %2, %6 : vector<8x96xf32>
    %8 = vector.extract_strided_slice %7 {offsets = [0, 0], sizes = [8, 32], strides = [1, 1]} : vector<8x96xf32> to vector<8x32xf32>
    %cst_5 = arith.constant 0.353553385 : f32
    %9 = vector.broadcast %cst_5 : f32 to vector<8x32xf32>
    %10 = arith.mulf %8, %9 : vector<8x32xf32>
    %11 = vector.extract_strided_slice %7 {offsets = [0, 32], sizes = [8, 32], strides = [1, 1]} : vector<8x96xf32> to vector<8x32xf32>
    %12 = vector.extract_strided_slice %7 {offsets = [0, 64], sizes = [8, 32], strides = [1, 1]} : vector<8x96xf32> to vector<8x32xf32>
    %c0_6 = arith.constant 0 : index
    %c0_7 = arith.constant 0 : index
    %c0_8 = arith.constant 0 : index
    %13 = vector.load %arg2[%c0_6, %c0_7, %c0_8] : memref<1x8x8xf32, #tpu.memory_space<vmem>>, vector<1x8x8xf32>
    %c0_9 = arith.constant 0 : index
    %c0_10 = arith.constant 0 : index
    %14 = vector.load %arg5[%c0_9, %c0_10] : memref<32x32xf32, #tpu.memory_space<vmem>>, vector<32x32xf32>
    %cst_11 = arith.constant 0.000000e+00 : f32
    %15 = vector.broadcast %cst_11 : f32 to vector<8x32xf32>
    %16 = vector.extract_strided_slice %10 {offsets = [0, 0], sizes = [8, 8], strides = [1, 1]} : vector<8x32xf32> to vector<8x8xf32>
    %17 = vector.shape_cast %16 : vector<8x8xf32> to vector<1x8x8xf32>
    %18 = vector.extract_strided_slice %11 {offsets = [0, 0], sizes = [8, 8], strides = [1, 1]} : vector<8x32xf32> to vector<8x8xf32>
    %19 = vector.shape_cast %18 : vector<8x8xf32> to vector<1x8x8xf32>
    %20 = vector.extract_strided_slice %12 {offsets = [0, 0], sizes = [8, 8], strides = [1, 1]} : vector<8x32xf32> to vector<8x8xf32>
    %21 = vector.shape_cast %20 : vector<8x8xf32> to vector<1x8x8xf32>
    "tpu.trace_start"() <{level = 10 : i32, message = "bnd,bmd->bnm"}> : () -> ()
    %cst_12 = arith.constant dense<0.000000e+00> : vector<1x8x8xf32>
    %22 = tpu.matmul %17, %19, %cst_12 {dimension_numbers = #tpu.dot_dimension_numbers<[2], [2], [1], [1], [0, 0, 0, 1, 1, 1], [0], [0]>} : vector<1x8x8xf32>, vector<1x8x8xf32>, vector<1x8x8xf32> -> vector<1x8x8xf32>
    "tpu.trace_stop"() : () -> ()
    %23 = arith.addf %22, %13 : vector<1x8x8xf32>
    %cst_13 = arith.constant dense<0xFF800000> : vector<1x8xf32>
    %24 = vector.multi_reduction <maximumf>, %23, %cst_13 [2] : vector<1x8x8xf32> to vector<1x8xf32>
    %25 = vector.shape_cast %24 : vector<1x8xf32> to vector<1x8x1xf32>
    %26 = vector.broadcast %25 : vector<1x8x1xf32> to vector<1x8x8xf32>
    %27 = arith.subf %23, %26 : vector<1x8x8xf32>
    %28 = math.exp %27 : vector<1x8x8xf32>
    %cst_14 = arith.constant dense<0.000000e+00> : vector<1x8xf32>
    %29 = vector.multi_reduction <add>, %28, %cst_14 [2] : vector<1x8x8xf32> to vector<1x8xf32>
    %30 = vector.shape_cast %29 : vector<1x8xf32> to vector<1x8x1xf32>
    %31 = tpu.reciprocal %30 {approx = true} : vector<1x8x1xf32> -> vector<1x8x1xf32>
    %32 = vector.broadcast %31 : vector<1x8x1xf32> to vector<1x8x8xf32>
    %33 = arith.mulf %28, %32 : vector<1x8x8xf32>
    "tpu.trace_start"() <{level = 10 : i32, message = "bnm,bmd->bnd"}> : () -> ()
    %cst_15 = arith.constant dense<0.000000e+00> : vector<1x8x8xf32>
    %34 = tpu.matmul %33, %21, %cst_15 {dimension_numbers = #tpu.dot_dimension_numbers<[2], [1], [1], [2], [0, 0, 0, 1, 1, 2], [0], [0]>} : vector<1x8x8xf32>, vector<1x8x8xf32>, vector<1x8x8xf32> -> vector<1x8x8xf32>
    "tpu.trace_stop"() : () -> ()
    %35 = vector.shape_cast %34 : vector<1x8x8xf32> to vector<8x8xf32>
    %36 = vector.extract_strided_slice %14 {offsets = [0, 0], sizes = [8, 32], strides = [1, 1]} : vector<32x32xf32> to vector<8x32xf32>
    %cst_16 = arith.constant dense<0.000000e+00> : vector<8x32xf32>
    %37 = tpu.matmul %35, %36, %cst_16 {dimension_numbers = #tpu.dot_dimension_numbers<[1], [0], [0], [1], [0, 0, 1, 1], [], []>} : vector<8x8xf32>, vector<8x32xf32>, vector<8x32xf32> -> vector<8x32xf32>
    %38 = arith.addf %15, %37 : vector<8x32xf32>
    %39 = vector.extract_strided_slice %10 {offsets = [0, 8], sizes = [8, 8], strides = [1, 1]} : vector<8x32xf32> to vector<8x8xf32>
    %40 = vector.shape_cast %39 : vector<8x8xf32> to vector<1x8x8xf32>
    %41 = vector.extract_strided_slice %11 {offsets = [0, 8], sizes = [8, 8], strides = [1, 1]} : vector<8x32xf32> to vector<8x8xf32>
    %42 = vector.shape_cast %41 : vector<8x8xf32> to vector<1x8x8xf32>
    %43 = vector.extract_strided_slice %12 {offsets = [0, 8], sizes = [8, 8], strides = [1, 1]} : vector<8x32xf32> to vector<8x8xf32>
    %44 = vector.shape_cast %43 : vector<8x8xf32> to vector<1x8x8xf32>
    "tpu.trace_start"() <{level = 10 : i32, message = "bnd,bmd->bnm"}> : () -> ()
    %cst_17 = arith.constant dense<0.000000e+00> : vector<1x8x8xf32>
    %45 = tpu.matmul %40, %42, %cst_17 {dimension_numbers = #tpu.dot_dimension_numbers<[2], [2], [1], [1], [0, 0, 0, 1, 1, 1], [0], [0]>} : vector<1x8x8xf32>, vector<1x8x8xf32>, vector<1x8x8xf32> -> vector<1x8x8xf32>
    "tpu.trace_stop"() : () -> ()
    %46 = arith.addf %45, %13 : vector<1x8x8xf32>
    %cst_18 = arith.constant dense<0xFF800000> : vector<1x8xf32>
    %47 = vector.multi_reduction <maximumf>, %46, %cst_18 [2] : vector<1x8x8xf32> to vector<1x8xf32>
    %48 = vector.shape_cast %47 : vector<1x8xf32> to vector<1x8x1xf32>
    %49 = vector.broadcast %48 : vector<1x8x1xf32> to vector<1x8x8xf32>
    %50 = arith.subf %46, %49 : vector<1x8x8xf32>
    %51 = math.exp %50 : vector<1x8x8xf32>
    %cst_19 = arith.constant dense<0.000000e+00> : vector<1x8xf32>
    %52 = vector.multi_reduction <add>, %51, %cst_19 [2] : vector<1x8x8xf32> to vector<1x8xf32>
    %53 = vector.shape_cast %52 : vector<1x8xf32> to vector<1x8x1xf32>
    %54 = tpu.reciprocal %53 {approx = true} : vector<1x8x1xf32> -> vector<1x8x1xf32>
    %55 = vector.broadcast %54 : vector<1x8x1xf32> to vector<1x8x8xf32>
    %56 = arith.mulf %51, %55 : vector<1x8x8xf32>
    "tpu.trace_start"() <{level = 10 : i32, message = "bnm,bmd->bnd"}> : () -> ()
    %cst_20 = arith.constant dense<0.000000e+00> : vector<1x8x8xf32>
    %57 = tpu.matmul %56, %44, %cst_20 {dimension_numbers = #tpu.dot_dimension_numbers<[2], [1], [1], [2], [0, 0, 0, 1, 1, 2], [0], [0]>} : vector<1x8x8xf32>, vector<1x8x8xf32>, vector<1x8x8xf32> -> vector<1x8x8xf32>
    "tpu.trace_stop"() : () -> ()
    %58 = vector.shape_cast %57 : vector<1x8x8xf32> to vector<8x8xf32>
    %59 = vector.extract_strided_slice %14 {offsets = [8, 0], sizes = [8, 32], strides = [1, 1]} : vector<32x32xf32> to vector<8x32xf32>
    %cst_21 = arith.constant dense<0.000000e+00> : vector<8x32xf32>
    %60 = tpu.matmul %58, %59, %cst_21 {dimension_numbers = #tpu.dot_dimension_numbers<[1], [0], [0], [1], [0, 0, 1, 1], [], []>} : vector<8x8xf32>, vector<8x32xf32>, vector<8x32xf32> -> vector<8x32xf32>
    %61 = arith.addf %38, %60 : vector<8x32xf32>
    %62 = vector.extract_strided_slice %10 {offsets = [0, 16], sizes = [8, 8], strides = [1, 1]} : vector<8x32xf32> to vector<8x8xf32>
    %63 = vector.shape_cast %62 : vector<8x8xf32> to vector<1x8x8xf32>
    %64 = vector.extract_strided_slice %11 {offsets = [0, 16], sizes = [8, 8], strides = [1, 1]} : vector<8x32xf32> to vector<8x8xf32>
    %65 = vector.shape_cast %64 : vector<8x8xf32> to vector<1x8x8xf32>
    %66 = vector.extract_strided_slice %12 {offsets = [0, 16], sizes = [8, 8], strides = [1, 1]} : vector<8x32xf32> to vector<8x8xf32>
    %67 = vector.shape_cast %66 : vector<8x8xf32> to vector<1x8x8xf32>
    "tpu.trace_start"() <{level = 10 : i32, message = "bnd,bmd->bnm"}> : () -> ()
    %cst_22 = arith.constant dense<0.000000e+00> : vector<1x8x8xf32>
    %68 = tpu.matmul %63, %65, %cst_22 {dimension_numbers = #tpu.dot_dimension_numbers<[2], [2], [1], [1], [0, 0, 0, 1, 1, 1], [0], [0]>} : vector<1x8x8xf32>, vector<1x8x8xf32>, vector<1x8x8xf32> -> vector<1x8x8xf32>
    "tpu.trace_stop"() : () -> ()
    %69 = arith.addf %68, %13 : vector<1x8x8xf32>
    %cst_23 = arith.constant dense<0xFF800000> : vector<1x8xf32>
    %70 = vector.multi_reduction <maximumf>, %69, %cst_23 [2] : vector<1x8x8xf32> to vector<1x8xf32>
    %71 = vector.shape_cast %70 : vector<1x8xf32> to vector<1x8x1xf32>
    %72 = vector.broadcast %71 : vector<1x8x1xf32> to vector<1x8x8xf32>
    %73 = arith.subf %69, %72 : vector<1x8x8xf32>
    %74 = math.exp %73 : vector<1x8x8xf32>
    %cst_24 = arith.constant dense<0.000000e+00> : vector<1x8xf32>
    %75 = vector.multi_reduction <add>, %74, %cst_24 [2] : vector<1x8x8xf32> to vector<1x8xf32>
    %76 = vector.shape_cast %75 : vector<1x8xf32> to vector<1x8x1xf32>
    %77 = tpu.reciprocal %76 {approx = true} : vector<1x8x1xf32> -> vector<1x8x1xf32>
    %78 = vector.broadcast %77 : vector<1x8x1xf32> to vector<1x8x8xf32>
    %79 = arith.mulf %74, %78 : vector<1x8x8xf32>
    "tpu.trace_start"() <{level = 10 : i32, message = "bnm,bmd->bnd"}> : () -> ()
    %cst_25 = arith.constant dense<0.000000e+00> : vector<1x8x8xf32>
    %80 = tpu.matmul %79, %67, %cst_25 {dimension_numbers = #tpu.dot_dimension_numbers<[2], [1], [1], [2], [0, 0, 0, 1, 1, 2], [0], [0]>} : vector<1x8x8xf32>, vector<1x8x8xf32>, vector<1x8x8xf32> -> vector<1x8x8xf32>
    "tpu.trace_stop"() : () -> ()
    %81 = vector.shape_cast %80 : vector<1x8x8xf32> to vector<8x8xf32>
    %82 = vector.extract_strided_slice %14 {offsets = [16, 0], sizes = [8, 32], strides = [1, 1]} : vector<32x32xf32> to vector<8x32xf32>
    %cst_26 = arith.constant dense<0.000000e+00> : vector<8x32xf32>
    %83 = tpu.matmul %81, %82, %cst_26 {dimension_numbers = #tpu.dot_dimension_numbers<[1], [0], [0], [1], [0, 0, 1, 1], [], []>} : vector<8x8xf32>, vector<8x32xf32>, vector<8x32xf32> -> vector<8x32xf32>
    %84 = arith.addf %61, %83 : vector<8x32xf32>
    %85 = vector.extract_strided_slice %10 {offsets = [0, 24], sizes = [8, 8], strides = [1, 1]} : vector<8x32xf32> to vector<8x8xf32>
    %86 = vector.shape_cast %85 : vector<8x8xf32> to vector<1x8x8xf32>
    %87 = vector.extract_strided_slice %11 {offsets = [0, 24], sizes = [8, 8], strides = [1, 1]} : vector<8x32xf32> to vector<8x8xf32>
    %88 = vector.shape_cast %87 : vector<8x8xf32> to vector<1x8x8xf32>
    %89 = vector.extract_strided_slice %12 {offsets = [0, 24], sizes = [8, 8], strides = [1, 1]} : vector<8x32xf32> to vector<8x8xf32>
    %90 = vector.shape_cast %89 : vector<8x8xf32> to vector<1x8x8xf32>
    "tpu.trace_start"() <{level = 10 : i32, message = "bnd,bmd->bnm"}> : () -> ()
    %cst_27 = arith.constant dense<0.000000e+00> : vector<1x8x8xf32>
    %91 = tpu.matmul %86, %88, %cst_27 {dimension_numbers = #tpu.dot_dimension_numbers<[2], [2], [1], [1], [0, 0, 0, 1, 1, 1], [0], [0]>} : vector<1x8x8xf32>, vector<1x8x8xf32>, vector<1x8x8xf32> -> vector<1x8x8xf32>
    "tpu.trace_stop"() : () -> ()
    %92 = arith.addf %91, %13 : vector<1x8x8xf32>
    %cst_28 = arith.constant dense<0xFF800000> : vector<1x8xf32>
    %93 = vector.multi_reduction <maximumf>, %92, %cst_28 [2] : vector<1x8x8xf32> to vector<1x8xf32>
    %94 = vector.shape_cast %93 : vector<1x8xf32> to vector<1x8x1xf32>
    %95 = vector.broadcast %94 : vector<1x8x1xf32> to vector<1x8x8xf32>
    %96 = arith.subf %92, %95 : vector<1x8x8xf32>
    %97 = math.exp %96 : vector<1x8x8xf32>
    %cst_29 = arith.constant dense<0.000000e+00> : vector<1x8xf32>
    %98 = vector.multi_reduction <add>, %97, %cst_29 [2] : vector<1x8x8xf32> to vector<1x8xf32>
    %99 = vector.shape_cast %98 : vector<1x8xf32> to vector<1x8x1xf32>
    %100 = tpu.reciprocal %99 {approx = true} : vector<1x8x1xf32> -> vector<1x8x1xf32>
    %101 = vector.broadcast %100 : vector<1x8x1xf32> to vector<1x8x8xf32>
    %102 = arith.mulf %97, %101 : vector<1x8x8xf32>
    "tpu.trace_start"() <{level = 10 : i32, message = "bnm,bmd->bnd"}> : () -> ()
    %cst_30 = arith.constant dense<0.000000e+00> : vector<1x8x8xf32>
    %103 = tpu.matmul %102, %90, %cst_30 {dimension_numbers = #tpu.dot_dimension_numbers<[2], [1], [1], [2], [0, 0, 0, 1, 1, 2], [0], [0]>} : vector<1x8x8xf32>, vector<1x8x8xf32>, vector<1x8x8xf32> -> vector<1x8x8xf32>
    "tpu.trace_stop"() : () -> ()
    %104 = vector.shape_cast %103 : vector<1x8x8xf32> to vector<8x8xf32>
    %105 = vector.extract_strided_slice %14 {offsets = [24, 0], sizes = [8, 32], strides = [1, 1]} : vector<32x32xf32> to vector<8x32xf32>
    %cst_31 = arith.constant dense<0.000000e+00> : vector<8x32xf32>
    %106 = tpu.matmul %104, %105, %cst_31 {dimension_numbers = #tpu.dot_dimension_numbers<[1], [0], [0], [1], [0, 0, 1, 1], [], []>} : vector<8x8xf32>, vector<8x32xf32>, vector<8x32xf32> -> vector<8x32xf32>
    %107 = arith.addf %84, %106 : vector<8x32xf32>
    %c0_32 = arith.constant 0 : index
    %c0_33 = arith.constant 0 : index
    %108 = vector.load %arg6[%c0_32, %c0_33] : memref<1x32xf32, #tpu.memory_space<vmem>>, vector<1x32xf32>
    %109 = vector.shape_cast %108 : vector<1x32xf32> to vector<32xf32>
    %110 = vector.shape_cast %109 : vector<32xf32> to vector<1x32xf32>
    %111 = vector.broadcast %110 : vector<1x32xf32> to vector<8x32xf32>
    %112 = arith.addf %107, %111 : vector<8x32xf32>
    %c0_34 = arith.constant 0 : index
    %c0_35 = arith.constant 0 : index
    %113 = vector.load %arg7[%c0_34, %c0_35] : memref<8x32xf32, #tpu.memory_space<vmem>>, vector<8x32xf32>
    tpu.vector_store %arg7[%c0_34, %c0_35], %112 {strides = array<i32>} : memref<8x32xf32, #tpu.memory_space<vmem>>, vector<8x32xf32>,
    return
  }
  func.func @transform_0(%arg0: i32) -> (i32, i32) {
    %c0_i32 = arith.constant 0 : i32
    %c0_i32_0 = arith.constant 0 : i32
    return %arg0, %c0_i32 : i32, i32
  }
  func.func @transform_1(%arg0: i32) -> (i32, i32, i32) {
    %c0_i32 = arith.constant 0 : i32
    %c0_i32_0 = arith.constant 0 : i32
    %c0_i32_1 = arith.constant 0 : i32
    return %arg0, %c0_i32, %c0_i32_0 : i32, i32, i32
  }
  func.func @transform_2(%arg0: i32) -> (i32, i32) {
    %c0_i32 = arith.constant 0 : i32
    %c0_i32_0 = arith.constant 0 : i32
    %c0_i32_1 = arith.constant 0 : i32
    return %c0_i32, %c0_i32_0 : i32, i32
  }
  func.func @transform_3(%arg0: i32) -> (i32, i32) {
    %c0_i32 = arith.constant 0 : i32
    %c0_i32_0 = arith.constant 0 : i32
    %c0_i32_1 = arith.constant 0 : i32
    return %c0_i32, %c0_i32_0 : i32, i32
  }
  func.func @transform_4(%arg0: i32) -> (i32, i32) {
    %c0_i32 = arith.constant 0 : i32
    %c0_i32_0 = arith.constant 0 : i32
    %c0_i32_1 = arith.constant 0 : i32
    return %c0_i32, %c0_i32_0 : i32, i32
  }
  func.func @transform_5(%arg0: i32) -> (i32, i32) {
    %c0_i32 = arith.constant 0 : i32
    %c0_i32_0 = arith.constant 0 : i32
    %c0_i32_1 = arith.constant 0 : i32
    return %c0_i32, %c0_i32_0 : i32, i32
  }
  func.func @transform_6(%arg0: i32) -> (i32, i32) {
    %c0_i32 = arith.constant 0 : i32
    %c0_i32_0 = arith.constant 0 : i32
    return %arg0, %c0_i32 : i32, i32
  }
}

</mosaic_0001>

<llo_original>
// kernel: tpu_custom_call.1
$region0: #{tpu_custom_call.1}
  #allocation0 [shape = 'u32[]', space=smem, size = 0x4, offset = 0x4, fixed_abs, tag = 'smem constant byte address 0x4 - core index']
  #allocation1 [shape = 'u32[144,128]{1,0:T(1,128)}', space=vmem, size = 0x12000, scoped, tag = 'internal scratch']
  %s0 = inlined_call_operand.hbm [shape: f32[16,32], index: 0, kind: input, shape index: {}]
  %s1 = inlined_call_operand.hbm [shape: f32[2,8,8], index: 1, kind: input, shape index: {}]
  %s2 = inlined_call_operand.hbm [shape: f32[32,96], index: 2, kind: input, shape index: {}]
  %s3 = inlined_call_operand.vmem [shape: f32[1,96], index: 3, kind: input, shape index: {}]
  %s4 = inlined_call_operand.hbm [shape: f32[32,32], index: 4, kind: input, shape index: {}]
  %s5 = inlined_call_operand.vmem [shape: f32[1,32], index: 5, kind: input, shape index: {}]
  %s6 = inlined_call_operand.hbm [shape: f32[16,32], index: 6, kind: output, shape index: {}]
  %s7 = sld [smem:[#allocation0]]
  $region73: #{tpu_custom_call.1} parent=0
    _
  %s9 = ssub.s32 1, %s7
  %s10 = scalar_select 0, %s9, %s7
  $region1: #{tpu_custom_call.1} parent=0
    #allocation2 [shape = 'u8[8192]{0}', space=vmem, size = 0x2000, scoped, tag = 'input window, operand 0']
    #allocation3 [shape = 's32[2]{0}', space=sflag, size = 0x8, scoped, tag = 'scoped memory for tpu_custom_call.1']
    #allocation4 [shape = 's32[2]{0}', space=sflag, size = 0x8, scoped, tag = 'scoped memory for tpu_custom_call.1']
    #allocation5 [shape = 'u8[8192]{0}', space=vmem, size = 0x2000, scoped, tag = 'input window, operand 1']
    #allocation6 [shape = 's32[2]{0}', space=sflag, size = 0x8, scoped, tag = 'scoped memory for tpu_custom_call.1']
    #allocation7 [shape = 'u8[16384]{0}', space=vmem, size = 0x4000, scoped, tag = 'input window, operand 2, single buffered']
    #allocation8 [shape = 'u8[16384]{0}', space=vmem, size = 0x4000, scoped, tag = 'input window, operand 4, single buffered']
    #allocation9 [shape = 's32[1]{0}', space=sflag, size = 0x4, scoped, tag = 'scoped memory for tpu_custom_call.1']
    #allocation10 [shape = 'u8[8192]{0}', space=vmem, size = 0x2000, scoped, tag = 'output window, operand 0']
    %11 = vsyncpa [#allocation3], 0
    %s12 = scalar_lea.sflag [#allocation3], 1
    %13 = vsyncpa %s12, 0
    %14 = vsyncpa [#allocation6], 0
    %s15 = scalar_lea.sflag [#allocation6], 1
    %16 = vsyncpa %s15, 0
    %17 = vsyncpa [#allocation9], 0
    %18 = vsyncpa [#allocation4], 0
    %s19 = scalar_lea.sflag [#allocation4], 1
    %20 = vsyncpa %s19, 0
    loop: start=0, step=1, limit=4
    $region2: #{tpu_custom_call.1} parent=1 // loop_pre_header
      _
    $region3: #{tpu_custom_call.1} parent=1 // loop_header
      %s22 = sphi 0, %s26
      %p23 = scmp.ge.s32.totalorder %s22, 4
      %s32 = sphi 0, %s34
      %s35 = sphi 0, %s32
      %s36 = sphi 0, %s35
      %s52 = sphi 0, %s36
      %s58 = sphi 0, %s60
      %s61 = sphi 0, %s58
      %s62 = sphi 0, %s61
      %s78 = sphi 0, %s62
      %s82 = sphi 0, %s82
      %s84 = sphi 0, %s82
      %s85 = sphi 0, %s84
      %s99 = sphi 0, %s85
      %s103 = sphi 0, %s103
      %s105 = sphi 0, %s103
      %s106 = sphi 0, %s105
      %s120 = sphi 0, %s106
      %s124 = sphi 0, %s124
      %s126 = sphi 0, %s124
      %s127 = sphi 0, %s126
      %s141 = sphi 0, %s127
      %s145 = sphi 0, %s145
      %s147 = sphi 0, %s145
      %s148 = sphi 0, %s147
      %s162 = sphi 0, %s148
      %s168 = sphi 0, %s170
      %s171 = sphi 0, %s168
      %s172 = sphi 0, %s171
      %s188 = sphi 0, %s172
    $region4: #{tpu_custom_call.1} parent=1 // loop_header_branch
      %25 = sbr.rel (%p23) target = $region8
    $region5: #{tpu_custom_call.1} parent=1 // loop_body
      %s27 = ssub.s32 %s22, 1
      %s28 = ssub.s32 %s22, 2
      %s29 = sadd.s32 %s22, 1
      %s30 = ssub.s32 %s22, %s29
      %p31 = scmp.eq.s32.totalorder %s30, 0
      %s33 = sadd.s32 %s32, 1
      %s34 = scalar_select %p31, %s32, %s33
      %p37 = pneg %p31
      %p38 = scmp.eq.s32.totalorder %s22, 1
      %p39 = por %p37, %p38
      %p40 = scmp.ne.s32.totalorder %s32, %s35
      %p41 = scmp.eq.s32.totalorder %s22, 0
      %p42 = por %p40, %p41
      %p43 = scmp.ne.s32.totalorder %s32, %s35
      %p44 = scmp.eq.s32.totalorder %s27, 1
      %p45 = por %p43, %p44
      %p46 = scmp.ne.s32.totalorder %s35, %s36
      %p47 = scmp.eq.s32.totalorder %s27, 0
      %p48 = por %p46, %p47
      %p49 = scmp.ne.s32.totalorder %s35, %s36
      %p50 = scmp.eq.s32.totalorder %s28, 1
      %p51 = por %p49, %p50
      %p53 = scmp.ne.s32.totalorder %s36, %s52
      %p54 = scmp.eq.s32.totalorder %s28, 0
      %p55 = por %p53, %p54
      %s56 = ssub.s32 %s22, %s29
      %p57 = scmp.eq.s32.totalorder %s56, 0
      %s59 = sadd.s32 %s58, 1
      %s60 = scalar_select %p57, %s58, %s59
      %p63 = pneg %p57
      %p64 = scmp.eq.s32.totalorder %s22, 1
      %p65 = por %p63, %p64
      %p66 = scmp.ne.s32.totalorder %s58, %s61
      %p67 = scmp.eq.s32.totalorder %s22, 0
      %p68 = por %p66, %p67
      %p69 = scmp.ne.s32.totalorder %s58, %s61
      %p70 = scmp.eq.s32.totalorder %s27, 1
      %p71 = por %p69, %p70
      %p72 = scmp.ne.s32.totalorder %s61, %s62
      %p73 = scmp.eq.s32.totalorder %s27, 0
      %p74 = por %p72, %p73
      %p75 = scmp.ne.s32.totalorder %s61, %s62
      %p76 = scmp.eq.s32.totalorder %s28, 1
      %p77 = por %p75, %p76
      %p79 = scmp.ne.s32.totalorder %s62, %s78
      %p80 = scmp.eq.s32.totalorder %s28, 0
      %p81 = por %p79, %p80
      %s83 = sadd.s32 %s82, 1
      %p86 = scmp.eq.s32.totalorder %s22, 1
      %p87 = scmp.ne.s32.totalorder %s82, %s84
      %p88 = scmp.eq.s32.totalorder %s22, 0
      %p89 = por %p87, %p88
      %p90 = scmp.ne.s32.totalorder %s82, %s84
      %p91 = scmp.eq.s32.totalorder %s27, 1
      %p92 = por %p90, %p91
      %p93 = scmp.ne.s32.totalorder %s84, %s85
      %p94 = scmp.eq.s32.totalorder %s27, 0
      %p95 = por %p93, %p94
      %p96 = scmp.ne.s32.totalorder %s84, %s85
      %p97 = scmp.eq.s32.totalorder %s28, 1
      %p98 = por %p96, %p97
      %p100 = scmp.ne.s32.totalorder %s85, %s99
      %p101 = scmp.eq.s32.totalorder %s28, 0
      %p102 = por %p100, %p101
      %s104 = sadd.s32 %s103, 1
      %p107 = scmp.eq.s32.totalorder %s22, 1
      %p108 = scmp.ne.s32.totalorder %s103, %s105
      %p109 = scmp.eq.s32.totalorder %s22, 0
      %p110 = por %p108, %p109
      %p111 = scmp.ne.s32.totalorder %s103, %s105
      %p112 = scmp.eq.s32.totalorder %s27, 1
      %p113 = por %p111, %p112
      %p114 = scmp.ne.s32.totalorder %s105, %s106
      %p115 = scmp.eq.s32.totalorder %s27, 0
      %p116 = por %p114, %p115
      %p117 = scmp.ne.s32.totalorder %s105, %s106
      %p118 = scmp.eq.s32.totalorder %s28, 1
      %p119 = por %p117, %p118
      %p121 = scmp.ne.s32.totalorder %s106, %s120
      %p122 = scmp.eq.s32.totalorder %s28, 0
      %p123 = por %p121, %p122
      %s125 = sadd.s32 %s124, 1
      %p128 = scmp.eq.s32.totalorder %s22, 1
      %p129 = scmp.ne.s32.totalorder %s124, %s126
      %p130 = scmp.eq.s32.totalorder %s22, 0
      %p131 = por %p129, %p130
      %p132 = scmp.ne.s32.totalorder %s124, %s126
      %p133 = scmp.eq.s32.totalorder %s27, 1
      %p134 = por %p132, %p133
      %p135 = scmp.ne.s32.totalorder %s126, %s127
      %p136 = scmp.eq.s32.totalorder %s27, 0
      %p137 = por %p135, %p136
      %p138 = scmp.ne.s32.totalorder %s126, %s127
      %p139 = scmp.eq.s32.totalorder %s28, 1
      %p140 = por %p138, %p139
      %p142 = scmp.ne.s32.totalorder %s127, %s141
      %p143 = scmp.eq.s32.totalorder %s28, 0
      %p144 = por %p142, %p143
      %s146 = sadd.s32 %s145, 1
      %p149 = scmp.eq.s32.totalorder %s22, 1
      %p150 = scmp.ne.s32.totalorder %s145, %s147
      %p151 = scmp.eq.s32.totalorder %s22, 0
      %p152 = por %p150, %p151
      %p153 = scmp.ne.s32.totalorder %s145, %s147
      %p154 = scmp.eq.s32.totalorder %s27, 1
      %p155 = por %p153, %p154
      %p156 = scmp.ne.s32.totalorder %s147, %s148
      %p157 = scmp.eq.s32.totalorder %s27, 0
      %p158 = por %p156, %p157
      %p159 = scmp.ne.s32.totalorder %s147, %s148
      %p160 = scmp.eq.s32.totalorder %s28, 1
      %p161 = por %p159, %p160
      %p163 = scmp.ne.s32.totalorder %s148, %s162
      %p164 = scmp.eq.s32.totalorder %s28, 0
      %p165 = por %p163, %p164
      %s166 = ssub.s32 %s22, %s29
      %p167 = scmp.eq.s32.totalorder %s166, 0
      %s169 = sadd.s32 %s168, 1
      %s170 = scalar_select %p167, %s168, %s169
      %p173 = pneg %p167
      %p174 = scmp.eq.s32.totalorder %s22, 1
      %p175 = por %p173, %p174
      %p176 = scmp.ne.s32.totalorder %s168, %s171
      %p177 = scmp.eq.s32.totalorder %s22, 0
      %p178 = por %p176, %p177
      %p179 = scmp.ne.s32.totalorder %s168, %s171
      %p180 = scmp.eq.s32.totalorder %s27, 1
      %p181 = por %p179, %p180
      %p182 = scmp.ne.s32.totalorder %s171, %s172
      %p183 = scmp.eq.s32.totalorder %s27, 0
      %p184 = por %p182, %p183
      %p185 = scmp.ne.s32.totalorder %s171, %s172
      %p186 = scmp.eq.s32.totalorder %s28, 1
      %p187 = por %p185, %p186
      %p189 = scmp.ne.s32.totalorder %s172, %s188
      %p190 = scmp.eq.s32.totalorder %s28, 0
      %p191 = por %p189, %p190
      %p192 = scmp.le.s32.totalorder 1, %s22
      %p193 = scmp.lt.s32.totalorder %s22, 3
      %p194 = pnand %p192, %p193
      %p195 = pneg %p194
      // Predicated region
      $region9: #{tpu_custom_call.1} parent=5 // pred_check
        _
      $region10: #{tpu_custom_call.1} parent=5 // pred_check_branch
        %197 = sbr.rel (%p194) target = $region12
      $region11: #{tpu_custom_call.1} parent=5 // pred_region
        %s198 = ssub.s32 %s22, 1
        // Predicated region
        $region13: #{tpu_custom_call.1} parent=11 // pred_check
          %p199 = pneg %p95
        $region14: #{tpu_custom_call.1} parent=11 // pred_check_branch
          %201 = sbr.rel (%p199) target = $region16
        $region15: #{tpu_custom_call.1} parent=11 // pred_region
          %s203 = ssub.s32 512, 512
          %204 = vsyncadd [#allocation6], %s203
          %s205 = sshll.u32 [#allocation7], 4
          %s206 = int_to_ptr.vmem [resolvable:$true] %s205
          %211 = dma.hbm_to_vmem [thread:$0]  %s2, 512, %s206, [#allocation6], 128, 128, 8
        $region16: #{tpu_custom_call.1} parent=11 // pred_fallthru
          _
        // Predicated region
        $region17: #{tpu_custom_call.1} parent=11 // pred_check
          %p212 = pneg %p116
        $region18: #{tpu_custom_call.1} parent=11 // pred_check_branch
          %214 = sbr.rel (%p212) target = $region20
        $region19: #{tpu_custom_call.1} parent=11 // pred_region
          _
        $region20: #{tpu_custom_call.1} parent=11 // pred_fallthru
          _
        // Predicated region
        $region21: #{tpu_custom_call.1} parent=11 // pred_check
          %p215 = pneg %p137
        $region22: #{tpu_custom_call.1} parent=11 // pred_check_branch
          %217 = sbr.rel (%p215) target = $region24
        $region23: #{tpu_custom_call.1} parent=11 // pred_region
          %s219 = ssub.s32 512, 512
          %220 = vsyncadd [#allocation9], %s219
          %s221 = sshll.u32 [#allocation8], 4
          %s222 = int_to_ptr.vmem [resolvable:$true] %s221
          %227 = dma.hbm_to_vmem [thread:$0]  %s4, 512, %s222, [#allocation9], 128, 128, 8
        $region24: #{tpu_custom_call.1} parent=11 // pred_fallthru
          _
        // Predicated region
        $region25: #{tpu_custom_call.1} parent=11 // pred_check
          %p228 = pneg %p158
        $region26: #{tpu_custom_call.1} parent=11 // pred_check_branch
          %230 = sbr.rel (%p228) target = $region28
        $region27: #{tpu_custom_call.1} parent=11 // pred_region
          _
        $region28: #{tpu_custom_call.1} parent=11 // pred_fallthru
          _
      $region12: #{tpu_custom_call.1} parent=5 // pred_fallthru
        _
      %p231 = scmp.lt.s32.totalorder %s22, 2
      // Predicated region
      $region29: #{tpu_custom_call.1} parent=5 // pred_check
        %p232 = pneg %p231
      $region30: #{tpu_custom_call.1} parent=5 // pred_check_branch
        %234 = sbr.rel (%p232) target = $region32
      $region31: #{tpu_custom_call.1} parent=5 // pred_region
        // Predicated region
        $region33: #{tpu_custom_call.1} parent=31 // pred_check
          %p235 = pneg %p42
        $region34: #{tpu_custom_call.1} parent=31 // pred_check_branch
          %237 = sbr.rel (%p235) target = $region36
        $region35: #{tpu_custom_call.1} parent=31 // pred_region
          %s238 = sand.u32 %s32, 1
          %s239 = scalar_lea.sflag [#allocation3], %s238
          %s240 = sand.u32 %s32, 1
          %s241 = smul.addr %s240, 8
          %s242 = scalar_lea.vmem [#allocation2], %s241
          %s244 = ssub.s32 128, 128
          %245 = vsyncadd %s239, %s244
          %s246 = smul.addr %s22, 128
          %s247 = scalar_lea.hbm %s0, %s246
          %s249 = sshll.u32 %s242, 4
          %s250 = int_to_ptr.vmem [resolvable:$true] %s249
          %252 = dma.hbm_to_vmem [thread:$0]  %s247, 128, %s250, %s239
        $region36: #{tpu_custom_call.1} parent=31 // pred_fallthru
          _
        // Predicated region
        $region37: #{tpu_custom_call.1} parent=31 // pred_check
          %p253 = pneg %p68
        $region38: #{tpu_custom_call.1} parent=31 // pred_check_branch
          %255 = sbr.rel (%p253) target = $region40
        $region39: #{tpu_custom_call.1} parent=31 // pred_region
          %s256 = sand.u32 %s22, 1
          %s257 = scalar_lea.sflag [#allocation6], %s256
          %s258 = sand.u32 %s58, 1
          %s259 = smul.addr %s258, 8
          %s260 = scalar_lea.vmem [#allocation5], %s259
          %s262 = ssub.s32 128, 128
          %263 = vsyncadd %s257, %s262
          %s264 = smul.addr %s22, 128
          %s265 = scalar_lea.hbm %s1, %s264
          %s267 = sshll.u32 %s260, 4
          %s268 = int_to_ptr.vmem [resolvable:$true] %s267
          %270 = dma.hbm_to_vmem [thread:$0]  %s265, 128, %s268, %s257
        $region40: #{tpu_custom_call.1} parent=31 // pred_fallthru
          _
      $region32: #{tpu_custom_call.1} parent=5 // pred_fallthru
        _
      %p271 = scmp.le.s32.totalorder 1, %s22
      %p272 = scmp.lt.s32.totalorder %s22, 3
      %p273 = pnand %p271, %p272
      %p274 = pneg %p273
      // Predicated region
      $region41: #{tpu_custom_call.1} parent=5 // pred_check
        _
      $region42: #{tpu_custom_call.1} parent=5 // pred_check_branch
        %276 = sbr.rel (%p273) target = $region44
      $region43: #{tpu_custom_call.1} parent=5 // pred_region
        %s277 = ssub.s32 %s22, 1
        %s278 = sand.u32 %s35, 1
        %s279 = scalar_lea.sflag [#allocation3], %s278
        %s280 = sand.u32 %s35, 1
        %s281 = smul.addr %s280, 8
        %s282 = scalar_lea.vmem [#allocation2], %s281
        // Predicated region
        $region45: #{tpu_custom_call.1} parent=43 // pred_check
          %p283 = pneg %p48
        $region46: #{tpu_custom_call.1} parent=43 // pred_check_branch
          %285 = sbr.rel (%p283) target = $region48
        $region47: #{tpu_custom_call.1} parent=43 // pred_region
          %286 = dma.done %s279, 128
        $region48: #{tpu_custom_call.1} parent=43 // pred_fallthru
          _
        %s287 = sand.u32 %s27, 1
        %s288 = scalar_lea.sflag [#allocation6], %s287
        %s289 = sand.u32 %s61, 1
        %s290 = smul.addr %s289, 8
        %s291 = scalar_lea.vmem [#allocation5], %s290
        // Predicated region
        $region49: #{tpu_custom_call.1} parent=43 // pred_check
          %p292 = pneg %p74
        $region50: #{tpu_custom_call.1} parent=43 // pred_check_branch
          %294 = sbr.rel (%p292) target = $region52
        $region51: #{tpu_custom_call.1} parent=43 // pred_region
          %295 = dma.done %s288, 128
        $region52: #{tpu_custom_call.1} parent=43 // pred_fallthru
          _
        // Predicated region
        $region53: #{tpu_custom_call.1} parent=43 // pred_check
          %p296 = pneg %p95
        $region54: #{tpu_custom_call.1} parent=43 // pred_check_branch
          %298 = sbr.rel (%p296) target = $region56
        $region55: #{tpu_custom_call.1} parent=43 // pred_region
          %299 = dma.done [#allocation6], 512
        $region56: #{tpu_custom_call.1} parent=43 // pred_fallthru
          _
        // Predicated region
        $region57: #{tpu_custom_call.1} parent=43 // pred_check
          %p300 = pneg %p137
        $region58: #{tpu_custom_call.1} parent=43 // pred_check_branch
          %302 = sbr.rel (%p300) target = $region60
        $region59: #{tpu_custom_call.1} parent=43 // pred_region
          %303 = dma.done [#allocation9], 512
        $region60: #{tpu_custom_call.1} parent=43 // pred_fallthru
          _
        %s304 = sand.u32 %s35, 1
        %s305 = scalar_lea.sflag [#allocation3], %s304
        %s306 = sand.u32 %s35, 1
        %s307 = smul.addr %s306, 8
        %s308 = scalar_lea.vmem [#allocation2], %s307
        %p309 = pneg %p48
        %p310 = pneg %p45
        %s311 = sand.u32 %s27, 1
        %s312 = scalar_lea.sflag [#allocation6], %s311
        %s313 = sand.u32 %s61, 1
        %s314 = smul.addr %s313, 8
        %s315 = scalar_lea.vmem [#allocation5], %s314
        %p316 = pneg %p74
        %p317 = pneg %p71
        %p318 = pneg %p95
        %p319 = pneg %p92
        %p320 = pneg %p116
        %p321 = pneg %p113
        %p322 = pneg %p137
        %p323 = pneg %p134
        %p324 = pneg %p158
        %p325 = pneg %p155
        %p326 = pneg %p184
        %p327 = pneg %p181
        %s328 = sand.u32 %s171, 1
        %s329 = scalar_lea.sflag [#allocation4], %s328
        %s330 = sand.u32 %s171, 1
        %s331 = smul.addr %s330, 8
        %s332 = scalar_lea.vmem [#allocation10], %s331
        %v333 = vld [vmem:[%s282] sm:$0xff]
        %v334 = vld [vmem:[#allocation7] sm:$0xff]
        %v335 = vld [vmem:[#allocation7 + $0x8] sm:$0xff]
        %v336 = vld [vmem:[#allocation7 + $0x10] sm:$0xff]
        %v337 = vld [vmem:[#allocation7 + $0x18] sm:$0xff]
        %v338 = vld [vmem:[%s3] sm:$0x1]
        %v340 = vlaneseq
        %v341 = vshrl.u32 %v340, 7
        %v342 = vsub.s32 0, %v341
        %v343 = vrot.slane %v338, %v342
        %vm345 = vcmask 261120
        %v347 = vsel %vm345, %v333, 0
        %349 = vmatprep.subr.mxu0 0.0
        %350 = vmatpush1.msra.mxu0 0.0
        %351 = vmatprep.subr.mxu0 0.0
        %352 = vmatpush1.msra.mxu0 0.0
        %353 = vmatprep.subr.mxu0 0.0
        %354 = vmatpush1.msra.mxu0 0.0
        %355 = vmatprep.subr.mxu0 0.0
        %356 = vmatpush1.msra.mxu0 0.0
        %357 = vmatprep.subr.mxu0 0.0
        %358 = vmatpush1.msra.mxu0 0.0
        %359 = vmatprep.subr.mxu0 0.0
        %360 = vmatpush1.msra.mxu0 0.0
        %361 = vmatprep.subr.mxu0 0.0
        %362 = vmatpush1.msra.mxu0 0.0
        %363 = vmatprep.subr.mxu0 0.0
        %364 = vmatpush1.msra.mxu0 0.0
        %365 = vmatprep.subr.mxu0 0.0
        %366 = vmatpush1.msra.mxu0 0.0
        %367 = vmatprep.subr.mxu0 0.0
        %368 = vmatpush1.msra.mxu0 0.0
        %369 = vmatprep.subr.mxu0 0.0
        %370 = vmatpush1.msra.mxu0 0.0
        %371 = vmatprep.subr.mxu0 0.0
        %372 = vmatpush1.msra.mxu0 0.0
        %373 = vmatprep.subr.mxu0 0.0
        %374 = vmatpush1.msra.mxu0 %v337
        %375 = vmatprep.subr.mxu0 0.0
        %376 = vmatpush1.msra.mxu0 %v336
        %377 = vmatprep.subr.mxu0 0.0
        %378 = vmatpush1.msra.mxu0 %v335
        %379 = vmatprep.subr.mxu0 0.0
        %380 = vmatpush1.msra.mxu0 %v334
        %381 = vmatprep.subr.mxu0 0.0
        %382 = vmatpush2.msra.mxu0 0.0
        %383 = vmatprep.subr.mxu0 0.0
        %384 = vmatpush2.msra.mxu0 0.0
        %385 = vmatprep.subr.mxu0 0.0
        %386 = vmatpush2.msra.mxu0 0.0
        %387 = vmatprep.subr.mxu0 0.0
        %388 = vmatpush2.msra.mxu0 0.0
        %389 = vmatprep.subr.mxu0 0.0
        %390 = vmatpush2.msra.mxu0 0.0
        %391 = vmatprep.subr.mxu0 0.0
        %392 = vmatpush2.msra.mxu0 0.0
        %393 = vmatprep.subr.mxu0 0.0
        %394 = vmatpush2.msra.mxu0 0.0
        %395 = vmatprep.subr.mxu0 0.0
        %396 = vmatpush2.msra.mxu0 0.0
        %397 = vmatprep.subr.mxu0 0.0
        %398 = vmatpush2.msra.mxu0 0.0
        %399 = vmatprep.subr.mxu0 0.0
        %400 = vmatpush2.msra.mxu0 0.0
        %401 = vmatprep.subr.mxu0 0.0
        %402 = vmatpush2.msra.mxu0 0.0
        %403 = vmatprep.subr.mxu0 0.0
        %404 = vmatpush2.msra.mxu0 0.0
        %405 = vmatprep.subr.mxu0 0.0
        %406 = vmatpush2.msra.mxu0 0.0
        %407 = vmatprep.subr.mxu0 0.0
        %408 = vmatpush2.msra.mxu0 0.0
        %409 = vmatprep.subr.mxu0 0.0
        %410 = vmatpush2.msra.mxu0 0.0
        %411 = vmatprep.subr.mxu0 0.0
        %412 = vmatpush2.msra.mxu0 0.0
        %413 = vmatprep.mubr.f32.mxu0 0.0
        %414 = vmatmul.mubr.f32.gmra.mxu0 %v347
        %v415 = vpop.f32.mrf.mxu0
        %v416 = vadd.f32 %v343, %v415
        %v417 = vpop.f32.mrf.mxu0
        %418 = vdwg.mxu0
        %v419 = vmul.f32 %v416, 0.35355338
        %v420 = vld [vmem:[%s291] sm:$0xff]
        %v421 = vld [vmem:[#allocation8] sm:$0xff]
        %v422 = vld [vmem:[#allocation8 + $0x8] sm:$0xff]
        %v423 = vld [vmem:[#allocation8 + $0x10] sm:$0xff]
        %v424 = vld [vmem:[#allocation8 + $0x18] sm:$0xff]
        %426 = vrot.lane.b32.xlu0 %v416, 96
        %v427 = vpop.permute.xlu0 %426
        %vm428 = vcmask 64512
        %v430 = vsel %vm428, %v419, 0
        %v432 = vsel %vm428, %v427, 0
        %434 = vmatprep.subr.mxu0 0.0
        %435 = vmatpush1.xpose.msra.mxu0 0.0
        %436 = vmatprep.subr.mxu0 0.0
        %437 = vmatpush1.xpose.msra.mxu0 0.0
        %438 = vmatprep.subr.mxu0 0.0
        %439 = vmatpush1.xpose.msra.mxu0 0.0
        %440 = vmatprep.subr.mxu0 0.0
        %441 = vmatpush1.xpose.msra.mxu0 0.0
        %442 = vmatprep.subr.mxu0 0.0
        %443 = vmatpush1.xpose.msra.mxu0 0.0
        %444 = vmatprep.subr.mxu0 0.0
        %445 = vmatpush1.xpose.msra.mxu0 0.0
        %446 = vmatprep.subr.mxu0 0.0
        %447 = vmatpush1.xpose.msra.mxu0 0.0
        %448 = vmatprep.subr.mxu0 0.0
        %449 = vmatpush1.xpose.msra.mxu0 0.0
        %450 = vmatprep.subr.mxu0 0.0
        %451 = vmatpush1.xpose.msra.mxu0 0.0
        %452 = vmatprep.subr.mxu0 0.0
        %453 = vmatpush1.xpose.msra.mxu0 0.0
        %454 = vmatprep.subr.mxu0 0.0
        %455 = vmatpush1.xpose.msra.mxu0 0.0
        %456 = vmatprep.subr.mxu0 0.0
        %457 = vmatpush1.xpose.msra.mxu0 0.0
        %458 = vmatprep.subr.mxu0 0.0
        %459 = vmatpush1.xpose.msra.mxu0 0.0
        %460 = vmatprep.subr.mxu0 0.0
        %461 = vmatpush1.xpose.msra.mxu0 0.0
        %462 = vmatprep.subr.mxu0 0.0
        %463 = vmatpush1.xpose.msra.mxu0 0.0
        %464 = vmatprep.subr.mxu0 0.0
        %465 = vmatpush1.xpose.msra.mxu0 %v432
        %466 = vmatprep.subr.mxu0 0.0
        %467 = vmatpush2.xpose.msra.mxu0 0.0
        %468 = vmatprep.subr.mxu0 0.0
        %469 = vmatpush2.xpose.msra.mxu0 0.0
        %470 = vmatprep.subr.mxu0 0.0
        %471 = vmatpush2.xpose.msra.mxu0 0.0
        %472 = vmatprep.subr.mxu0 0.0
        %473 = vmatpush2.xpose.msra.mxu0 0.0
        %474 = vmatprep.subr.mxu0 0.0
        %475 = vmatpush2.xpose.msra.mxu0 0.0
        %476 = vmatprep.subr.mxu0 0.0
        %477 = vmatpush2.xpose.msra.mxu0 0.0
        %478 = vmatprep.subr.mxu0 0.0
        %479 = vmatpush2.xpose.msra.mxu0 0.0
        %480 = vmatprep.subr.mxu0 0.0
        %481 = vmatpush2.xpose.msra.mxu0 0.0
        %482 = vmatprep.subr.mxu0 0.0
        %483 = vmatpush2.xpose.msra.mxu0 0.0
        %484 = vmatprep.subr.mxu0 0.0
        %485 = vmatpush2.xpose.msra.mxu0 0.0
        %486 = vmatprep.subr.mxu0 0.0
        %487 = vmatpush2.xpose.msra.mxu0 0.0
        %488 = vmatprep.subr.mxu0 0.0
        %489 = vmatpush2.xpose.msra.mxu0 0.0
        %490 = vmatprep.subr.mxu0 0.0
        %491 = vmatpush2.xpose.msra.mxu0 0.0
        %492 = vmatprep.subr.mxu0 0.0
        %493 = vmatpush2.xpose.msra.mxu0 0.0
        %494 = vmatprep.subr.mxu0 0.0
        %495 = vmatpush2.xpose.msra.mxu0 0.0
        %496 = vmatprep.subr.mxu0 0.0
        %497 = vmatpush2.xpose.msra.mxu0 0.0
        %498 = vmatprep.mubr.f32.mxu0 0.0
        %499 = vmatmul.mubr.f32.gmra.mxu0 %v430
        %v500 = vpop.f32.mrf.mxu0
        %v501 = vadd.f32 %v420, %v500
        %v502 = vpop.f32.mrf.mxu0
        %503 = vdwg.mxu0
        %v504 = vsel %vm428, %v501, -inf
        %505 = vmax.xlane.f32.xlu0 %v504
        %v506 = vpop.xlane.xlu0 %505
        %v507 = vsub.f32 %v501, %v506
        %v508 = vmul.f32 %v507, 1.442695
        %v509 = vpow.pop %v508
        %v510 = vsel %vm428, %v509, 0.0
        %511 = vadd.xlane.f32.xlu0 %v510
        %v512 = vpop.xlane.xlu0 %511
        %v513 = vrcp.pop %v512
        %v514 = vmul.f32 %v509, %v513
        %515 = vrot.lane.b32.xlu0 %v416, 64
        %v516 = vpop.permute.xlu0 %515
        %v519 = vsel %vm428, %v514, 0
        %521 = vmatprep.subr.mxu0 0.0
        %522 = vmatpush1.msra.mxu0 0.0
        %523 = vmatprep.subr.mxu0 0.0
        %524 = vmatpush1.msra.mxu0 0.0
        %525 = vmatprep.subr.mxu0 0.0
        %526 = vmatpush1.msra.mxu0 0.0
        %527 = vmatprep.subr.mxu0 0.0
        %528 = vmatpush1.msra.mxu0 0.0
        %529 = vmatprep.subr.mxu0 0.0
        %530 = vmatpush1.msra.mxu0 0.0
        %531 = vmatprep.subr.mxu0 0.0
        %532 = vmatpush1.msra.mxu0 0.0
        %533 = vmatprep.subr.mxu0 0.0
        %534 = vmatpush1.msra.mxu0 0.0
        %535 = vmatprep.subr.mxu0 0.0
        %536 = vmatpush1.msra.mxu0 0.0
        %537 = vmatprep.subr.mxu0 0.0
        %538 = vmatpush1.msra.mxu0 0.0
        %539 = vmatprep.subr.mxu0 0.0
        %540 = vmatpush1.msra.mxu0 0.0
        %541 = vmatprep.subr.mxu0 0.0
        %542 = vmatpush1.msra.mxu0 0.0
        %543 = vmatprep.subr.mxu0 0.0
        %544 = vmatpush1.msra.mxu0 0.0
        %545 = vmatprep.subr.mxu0 0.0
        %546 = vmatpush1.msra.mxu0 0.0
        %547 = vmatprep.subr.mxu0 0.0
        %548 = vmatpush1.msra.mxu0 0.0
        %549 = vmatprep.subr.mxu0 0.0
        %550 = vmatpush1.msra.mxu0 0.0
        %551 = vmatprep.subr.mxu0 0.0
        %552 = vmatpush1.msra.mxu0 %v516
        %553 = vmatprep.subr.mxu0 0.0
        %554 = vmatpush2.msra.mxu0 0.0
        %555 = vmatprep.subr.mxu0 0.0
        %556 = vmatpush2.msra.mxu0 0.0
        %557 = vmatprep.subr.mxu0 0.0
        %558 = vmatpush2.msra.mxu0 0.0
        %559 = vmatprep.subr.mxu0 0.0
        %560 = vmatpush2.msra.mxu0 0.0
        %561 = vmatprep.subr.mxu0 0.0
        %562 = vmatpush2.msra.mxu0 0.0
        %563 = vmatprep.subr.mxu0 0.0
        %564 = vmatpush2.msra.mxu0 0.0
        %565 = vmatprep.subr.mxu0 0.0
        %566 = vmatpush2.msra.mxu0 0.0
        %567 = vmatprep.subr.mxu0 0.0
        %568 = vmatpush2.msra.mxu0 0.0
        %569 = vmatprep.subr.mxu0 0.0
        %570 = vmatpush2.msra.mxu0 0.0
        %571 = vmatprep.subr.mxu0 0.0
        %572 = vmatpush2.msra.mxu0 0.0
        %573 = vmatprep.subr.mxu0 0.0
        %574 = vmatpush2.msra.mxu0 0.0
        %575 = vmatprep.subr.mxu0 0.0
        %576 = vmatpush2.msra.mxu0 0.0
        %577 = vmatprep.subr.mxu0 0.0
        %578 = vmatpush2.msra.mxu0 0.0
        %579 = vmatprep.subr.mxu0 0.0
        %580 = vmatpush2.msra.mxu0 0.0
        %581 = vmatprep.subr.mxu0 0.0
        %582 = vmatpush2.msra.mxu0 0.0
        %583 = vmatprep.subr.mxu0 0.0
        %584 = vmatpush2.msra.mxu0 0.0
        %585 = vmatprep.mubr.f32.mxu0 0.0
        %586 = vmatmul.mubr.f32.gmra.mxu0 %v519
        %v587 = vpop.f32.mrf.mxu0
        %v588 = vadd.f32 0.0, %v587
        %v589 = vpop.f32.mrf.mxu0
        %590 = vdwg.mxu0
        %591 = vrot.lane.b32.xlu0 %v419, 120
        %v592 = vpop.permute.xlu0 %591
        %593 = vrot.lane.b32.xlu0 %v416, 88
        %v594 = vpop.permute.xlu0 %593
        %v595 = vsel %vm428, %v592, 0
        %v597 = vsel %vm428, %v594, 0
        %599 = vmatprep.subr.mxu0 0.0
        %600 = vmatpush1.xpose.msra.mxu0 0.0
        %601 = vmatprep.subr.mxu0 0.0
        %602 = vmatpush1.xpose.msra.mxu0 0.0
        %603 = vmatprep.subr.mxu0 0.0
        %604 = vmatpush1.xpose.msra.mxu0 0.0
        %605 = vmatprep.subr.mxu0 0.0
        %606 = vmatpush1.xpose.msra.mxu0 0.0
        %607 = vmatprep.subr.mxu0 0.0
        %608 = vmatpush1.xpose.msra.mxu0 0.0
        %609 = vmatprep.subr.mxu0 0.0
        %610 = vmatpush1.xpose.msra.mxu0 0.0
        %611 = vmatprep.subr.mxu0 0.0
        %612 = vmatpush1.xpose.msra.mxu0 0.0
        %613 = vmatprep.subr.mxu0 0.0
        %614 = vmatpush1.xpose.msra.mxu0 0.0
        %615 = vmatprep.subr.mxu0 0.0
        %616 = vmatpush1.xpose.msra.mxu0 0.0
        %617 = vmatprep.subr.mxu0 0.0
        %618 = vmatpush1.xpose.msra.mxu0 0.0
        %619 = vmatprep.subr.mxu0 0.0
        %620 = vmatpush1.xpose.msra.mxu0 0.0
        %621 = vmatprep.subr.mxu0 0.0
        %622 = vmatpush1.xpose.msra.mxu0 0.0
        %623 = vmatprep.subr.mxu0 0.0
        %624 = vmatpush1.xpose.msra.mxu0 0.0
        %625 = vmatprep.subr.mxu0 0.0
        %626 = vmatpush1.xpose.msra.mxu0 0.0
        %627 = vmatprep.subr.mxu0 0.0
        %628 = vmatpush1.xpose.msra.mxu0 0.0
        %629 = vmatprep.subr.mxu0 0.0
        %630 = vmatpush1.xpose.msra.mxu0 %v597
        %631 = vmatprep.subr.mxu0 0.0
        %632 = vmatpush2.xpose.msra.mxu0 0.0
        %633 = vmatprep.subr.mxu0 0.0
        %634 = vmatpush2.xpose.msra.mxu0 0.0
        %635 = vmatprep.subr.mxu0 0.0
        %636 = vmatpush2.xpose.msra.mxu0 0.0
        %637 = vmatprep.subr.mxu0 0.0
        %638 = vmatpush2.xpose.msra.mxu0 0.0
        %639 = vmatprep.subr.mxu0 0.0
        %640 = vmatpush2.xpose.msra.mxu0 0.0
        %641 = vmatprep.subr.mxu0 0.0
        %642 = vmatpush2.xpose.msra.mxu0 0.0
        %643 = vmatprep.subr.mxu0 0.0
        %644 = vmatpush2.xpose.msra.mxu0 0.0
        %645 = vmatprep.subr.mxu0 0.0
        %646 = vmatpush2.xpose.msra.mxu0 0.0
        %647 = vmatprep.subr.mxu0 0.0
        %648 = vmatpush2.xpose.msra.mxu0 0.0
        %649 = vmatprep.subr.mxu0 0.0
        %650 = vmatpush2.xpose.msra.mxu0 0.0
        %651 = vmatprep.subr.mxu0 0.0
        %652 = vmatpush2.xpose.msra.mxu0 0.0
        %653 = vmatprep.subr.mxu0 0.0
        %654 = vmatpush2.xpose.msra.mxu0 0.0
        %655 = vmatprep.subr.mxu0 0.0
        %656 = vmatpush2.xpose.msra.mxu0 0.0
        %657 = vmatprep.subr.mxu0 0.0
        %658 = vmatpush2.xpose.msra.mxu0 0.0
        %659 = vmatprep.subr.mxu0 0.0
        %660 = vmatpush2.xpose.msra.mxu0 0.0
        %661 = vmatprep.subr.mxu0 0.0
        %662 = vmatpush2.xpose.msra.mxu0 0.0
        %663 = vmatprep.mubr.f32.mxu0 0.0
        %664 = vmatmul.mubr.f32.gmra.mxu0 %v595
        %v665 = vpop.f32.mrf.mxu0
        %v666 = vadd.f32 %v420, %v665
        %v667 = vpop.f32.mrf.mxu0
        %668 = vdwg.mxu0
        %v669 = vsel %vm428, %v666, -inf
        %670 = vmax.xlane.f32.xlu0 %v669
        %v671 = vpop.xlane.xlu0 %670
        %v672 = vsub.f32 %v666, %v671
        %v673 = vmul.f32 %v672, 1.442695
        %v674 = vpow.pop %v673
        %v675 = vsel %vm428, %v674, 0.0
        %676 = vadd.xlane.f32.xlu0 %v675
        %v677 = vpop.xlane.xlu0 %676
        %v678 = vrcp.pop %v677
        %v679 = vmul.f32 %v674, %v678
        %680 = vrot.lane.b32.xlu0 %v416, 56
        %v681 = vpop.permute.xlu0 %680
        %v684 = vsel %vm428, %v679, 0
        %686 = vmatprep.subr.mxu0 0.0
        %687 = vmatpush1.msra.mxu0 0.0
        %688 = vmatprep.subr.mxu0 0.0
        %689 = vmatpush1.msra.mxu0 0.0
        %690 = vmatprep.subr.mxu0 0.0
        %691 = vmatpush1.msra.mxu0 0.0
        %692 = vmatprep.subr.mxu0 0.0
        %693 = vmatpush1.msra.mxu0 0.0
        %694 = vmatprep.subr.mxu0 0.0
        %695 = vmatpush1.msra.mxu0 0.0
        %696 = vmatprep.subr.mxu0 0.0
        %697 = vmatpush1.msra.mxu0 0.0
        %698 = vmatprep.subr.mxu0 0.0
        %699 = vmatpush1.msra.mxu0 0.0
        %700 = vmatprep.subr.mxu0 0.0
        %701 = vmatpush1.msra.mxu0 0.0
        %702 = vmatprep.subr.mxu0 0.0
        %703 = vmatpush1.msra.mxu0 0.0
        %704 = vmatprep.subr.mxu0 0.0
        %705 = vmatpush1.msra.mxu0 0.0
        %706 = vmatprep.subr.mxu0 0.0
        %707 = vmatpush1.msra.mxu0 0.0
        %708 = vmatprep.subr.mxu0 0.0
        %709 = vmatpush1.msra.mxu0 0.0
        %710 = vmatprep.subr.mxu0 0.0
        %711 = vmatpush1.msra.mxu0 0.0
        %712 = vmatprep.subr.mxu0 0.0
        %713 = vmatpush1.msra.mxu0 0.0
        %714 = vmatprep.subr.mxu0 0.0
        %715 = vmatpush1.msra.mxu0 0.0
        %716 = vmatprep.subr.mxu0 0.0
        %717 = vmatpush1.msra.mxu0 %v681
        %718 = vmatprep.subr.mxu0 0.0
        %719 = vmatpush2.msra.mxu0 0.0
        %720 = vmatprep.subr.mxu0 0.0
        %721 = vmatpush2.msra.mxu0 0.0
        %722 = vmatprep.subr.mxu0 0.0
        %723 = vmatpush2.msra.mxu0 0.0
        %724 = vmatprep.subr.mxu0 0.0
        %725 = vmatpush2.msra.mxu0 0.0
        %726 = vmatprep.subr.mxu0 0.0
        %727 = vmatpush2.msra.mxu0 0.0
        %728 = vmatprep.subr.mxu0 0.0
        %729 = vmatpush2.msra.mxu0 0.0
        %730 = vmatprep.subr.mxu0 0.0
        %731 = vmatpush2.msra.mxu0 0.0
        %732 = vmatprep.subr.mxu0 0.0
        %733 = vmatpush2.msra.mxu0 0.0
        %734 = vmatprep.subr.mxu0 0.0
        %735 = vmatpush2.msra.mxu0 0.0
        %736 = vmatprep.subr.mxu0 0.0
        %737 = vmatpush2.msra.mxu0 0.0
        %738 = vmatprep.subr.mxu0 0.0
        %739 = vmatpush2.msra.mxu0 0.0
        %740 = vmatprep.subr.mxu0 0.0
        %741 = vmatpush2.msra.mxu0 0.0
        %742 = vmatprep.subr.mxu0 0.0
        %743 = vmatpush2.msra.mxu0 0.0
        %744 = vmatprep.subr.mxu0 0.0
        %745 = vmatpush2.msra.mxu0 0.0
        %746 = vmatprep.subr.mxu0 0.0
        %747 = vmatpush2.msra.mxu0 0.0
        %748 = vmatprep.subr.mxu0 0.0
        %749 = vmatpush2.msra.mxu0 0.0
        %750 = vmatprep.mubr.f32.mxu0 0.0
        %751 = vmatmul.mubr.f32.gmra.mxu0 %v684
        %v752 = vpop.f32.mrf.mxu0
        %v753 = vadd.f32 0.0, %v752
        %v754 = vpop.f32.mrf.mxu0
        %755 = vdwg.mxu0
        %v757 = vsel %vm428, %v753, 0
        %759 = vmatprep.subr.mxu0 0.0
        %760 = vmatpush1.msra.mxu0 0.0
        %761 = vmatprep.subr.mxu0 0.0
        %762 = vmatpush1.msra.mxu0 0.0
        %763 = vmatprep.subr.mxu0 0.0
        %764 = vmatpush1.msra.mxu0 0.0
        %765 = vmatprep.subr.mxu0 0.0
        %766 = vmatpush1.msra.mxu0 0.0
        %767 = vmatprep.subr.mxu0 0.0
        %768 = vmatpush1.msra.mxu0 0.0
        %769 = vmatprep.subr.mxu0 0.0
        %770 = vmatpush1.msra.mxu0 0.0
        %771 = vmatprep.subr.mxu0 0.0
        %772 = vmatpush1.msra.mxu0 0.0
        %773 = vmatprep.subr.mxu0 0.0
        %774 = vmatpush1.msra.mxu0 0.0
        %775 = vmatprep.subr.mxu0 0.0
        %776 = vmatpush1.msra.mxu0 0.0
        %777 = vmatprep.subr.mxu0 0.0
        %778 = vmatpush1.msra.mxu0 0.0
        %779 = vmatprep.subr.mxu0 0.0
        %780 = vmatpush1.msra.mxu0 0.0
        %781 = vmatprep.subr.mxu0 0.0
        %782 = vmatpush1.msra.mxu0 0.0
        %783 = vmatprep.subr.mxu0 0.0
        %784 = vmatpush1.msra.mxu0 0.0
        %785 = vmatprep.subr.mxu0 0.0
        %786 = vmatpush1.msra.mxu0 0.0
        %787 = vmatprep.subr.mxu0 0.0
        %788 = vmatpush1.msra.mxu0 0.0
        %789 = vmatprep.subr.mxu0 0.0
        %790 = vmatpush1.msra.mxu0 %v422
        %791 = vmatprep.subr.mxu0 0.0
        %792 = vmatpush2.msra.mxu0 0.0
        %793 = vmatprep.subr.mxu0 0.0
        %794 = vmatpush2.msra.mxu0 0.0
        %795 = vmatprep.subr.mxu0 0.0
        %796 = vmatpush2.msra.mxu0 0.0
        %797 = vmatprep.subr.mxu0 0.0
        %798 = vmatpush2.msra.mxu0 0.0
        %799 = vmatprep.subr.mxu0 0.0
        %800 = vmatpush2.msra.mxu0 0.0
        %801 = vmatprep.subr.mxu0 0.0
        %802 = vmatpush2.msra.mxu0 0.0
        %803 = vmatprep.subr.mxu0 0.0
        %804 = vmatpush2.msra.mxu0 0.0
        %805 = vmatprep.subr.mxu0 0.0
        %806 = vmatpush2.msra.mxu0 0.0
        %807 = vmatprep.subr.mxu0 0.0
        %808 = vmatpush2.msra.mxu0 0.0
        %809 = vmatprep.subr.mxu0 0.0
        %810 = vmatpush2.msra.mxu0 0.0
        %811 = vmatprep.subr.mxu0 0.0
        %812 = vmatpush2.msra.mxu0 0.0
        %813 = vmatprep.subr.mxu0 0.0
        %814 = vmatpush2.msra.mxu0 0.0
        %815 = vmatprep.subr.mxu0 0.0
        %816 = vmatpush2.msra.mxu0 0.0
        %817 = vmatprep.subr.mxu0 0.0
        %818 = vmatpush2.msra.mxu0 0.0
        %819 = vmatprep.subr.mxu0 0.0
        %820 = vmatpush2.msra.mxu0 0.0
        %821 = vmatprep.subr.mxu0 0.0
        %822 = vmatpush2.msra.mxu0 0.0
        %823 = vmatprep.mubr.f32.mxu0 0.0
        %824 = vmatmul.mubr.f32.gmra.mxu0 %v757
        %v825 = vpop.f32.mrf.mxu0
        %v826 = vadd.f32 0.0, %v825
        %v827 = vpop.f32.mrf.mxu0
        %828 = vdwg.mxu0
        %v830 = vsel %vm428, %v588, 0
        %832 = vmatprep.subr.mxu0 0.0
        %833 = vmatpush1.msra.mxu0 0.0
        %834 = vmatprep.subr.mxu0 0.0
        %835 = vmatpush1.msra.mxu0 0.0
        %836 = vmatprep.subr.mxu0 0.0
        %837 = vmatpush1.msra.mxu0 0.0
        %838 = vmatprep.subr.mxu0 0.0
        %839 = vmatpush1.msra.mxu0 0.0
        %840 = vmatprep.subr.mxu0 0.0
        %841 = vmatpush1.msra.mxu0 0.0
        %842 = vmatprep.subr.mxu0 0.0
        %843 = vmatpush1.msra.mxu0 0.0
        %844 = vmatprep.subr.mxu0 0.0
        %845 = vmatpush1.msra.mxu0 0.0
        %846 = vmatprep.subr.mxu0 0.0
        %847 = vmatpush1.msra.mxu0 0.0
        %848 = vmatprep.subr.mxu0 0.0
        %849 = vmatpush1.msra.mxu0 0.0
        %850 = vmatprep.subr.mxu0 0.0
        %851 = vmatpush1.msra.mxu0 0.0
        %852 = vmatprep.subr.mxu0 0.0
        %853 = vmatpush1.msra.mxu0 0.0
        %854 = vmatprep.subr.mxu0 0.0
        %855 = vmatpush1.msra.mxu0 0.0
        %856 = vmatprep.subr.mxu0 0.0
        %857 = vmatpush1.msra.mxu0 0.0
        %858 = vmatprep.subr.mxu0 0.0
        %859 = vmatpush1.msra.mxu0 0.0
        %860 = vmatprep.subr.mxu0 0.0
        %861 = vmatpush1.msra.mxu0 0.0
        %862 = vmatprep.subr.mxu0 0.0
        %863 = vmatpush1.msra.mxu0 %v421
        %864 = vmatprep.subr.mxu0 0.0
        %865 = vmatpush2.msra.mxu0 0.0
        %866 = vmatprep.subr.mxu0 0.0
        %867 = vmatpush2.msra.mxu0 0.0
        %868 = vmatprep.subr.mxu0 0.0
        %869 = vmatpush2.msra.mxu0 0.0
        %870 = vmatprep.subr.mxu0 0.0
        %871 = vmatpush2.msra.mxu0 0.0
        %872 = vmatprep.subr.mxu0 0.0
        %873 = vmatpush2.msra.mxu0 0.0
        %874 = vmatprep.subr.mxu0 0.0
        %875 = vmatpush2.msra.mxu0 0.0
        %876 = vmatprep.subr.mxu0 0.0
        %877 = vmatpush2.msra.mxu0 0.0
        %878 = vmatprep.subr.mxu0 0.0
        %879 = vmatpush2.msra.mxu0 0.0
        %880 = vmatprep.subr.mxu0 0.0
        %881 = vmatpush2.msra.mxu0 0.0
        %882 = vmatprep.subr.mxu0 0.0
        %883 = vmatpush2.msra.mxu0 0.0
        %884 = vmatprep.subr.mxu0 0.0
        %885 = vmatpush2.msra.mxu0 0.0
        %886 = vmatprep.subr.mxu0 0.0
        %887 = vmatpush2.msra.mxu0 0.0
        %888 = vmatprep.subr.mxu0 0.0
        %889 = vmatpush2.msra.mxu0 0.0
        %890 = vmatprep.subr.mxu0 0.0
        %891 = vmatpush2.msra.mxu0 0.0
        %892 = vmatprep.subr.mxu0 0.0
        %893 = vmatpush2.msra.mxu0 0.0
        %894 = vmatprep.subr.mxu0 0.0
        %895 = vmatpush2.msra.mxu0 0.0
        %896 = vmatprep.mubr.f32.mxu0 0.0
        %897 = vmatmul.mubr.f32.gmra.mxu0 %v830
        %v898 = vpop.f32.mrf.mxu0
        %v899 = vadd.f32 %v826, %v898
        %v900 = vpop.f32.mrf.mxu0
        %901 = vdwg.mxu0
        %902 = vrot.lane.b32.xlu0 %v419, 112
        %v903 = vpop.permute.xlu0 %902
        %904 = vrot.lane.b32.xlu0 %v416, 80
        %v905 = vpop.permute.xlu0 %904
        %v906 = vsel %vm428, %v903, 0
        %v908 = vsel %vm428, %v905, 0
        %910 = vmatprep.subr.mxu0 0.0
        %911 = vmatpush1.xpose.msra.mxu0 0.0
        %912 = vmatprep.subr.mxu0 0.0
        %913 = vmatpush1.xpose.msra.mxu0 0.0
        %914 = vmatprep.subr.mxu0 0.0
        %915 = vmatpush1.xpose.msra.mxu0 0.0
        %916 = vmatprep.subr.mxu0 0.0
        %917 = vmatpush1.xpose.msra.mxu0 0.0
        %918 = vmatprep.subr.mxu0 0.0
        %919 = vmatpush1.xpose.msra.mxu0 0.0
        %920 = vmatprep.subr.mxu0 0.0
        %921 = vmatpush1.xpose.msra.mxu0 0.0
        %922 = vmatprep.subr.mxu0 0.0
        %923 = vmatpush1.xpose.msra.mxu0 0.0
        %924 = vmatprep.subr.mxu0 0.0
        %925 = vmatpush1.xpose.msra.mxu0 0.0
        %926 = vmatprep.subr.mxu0 0.0
        %927 = vmatpush1.xpose.msra.mxu0 0.0
        %928 = vmatprep.subr.mxu0 0.0
        %929 = vmatpush1.xpose.msra.mxu0 0.0
        %930 = vmatprep.subr.mxu0 0.0
        %931 = vmatpush1.xpose.msra.mxu0 0.0
        %932 = vmatprep.subr.mxu0 0.0
        %933 = vmatpush1.xpose.msra.mxu0 0.0
        %934 = vmatprep.subr.mxu0 0.0
        %935 = vmatpush1.xpose.msra.mxu0 0.0
        %936 = vmatprep.subr.mxu0 0.0
        %937 = vmatpush1.xpose.msra.mxu0 0.0
        %938 = vmatprep.subr.mxu0 0.0
        %939 = vmatpush1.xpose.msra.mxu0 0.0
        %940 = vmatprep.subr.mxu0 0.0
        %941 = vmatpush1.xpose.msra.mxu0 %v908
        %942 = vmatprep.subr.mxu0 0.0
        %943 = vmatpush2.xpose.msra.mxu0 0.0
        %944 = vmatprep.subr.mxu0 0.0
        %945 = vmatpush2.xpose.msra.mxu0 0.0
        %946 = vmatprep.subr.mxu0 0.0
        %947 = vmatpush2.xpose.msra.mxu0 0.0
        %948 = vmatprep.subr.mxu0 0.0
        %949 = vmatpush2.xpose.msra.mxu0 0.0
        %950 = vmatprep.subr.mxu0 0.0
        %951 = vmatpush2.xpose.msra.mxu0 0.0
        %952 = vmatprep.subr.mxu0 0.0
        %953 = vmatpush2.xpose.msra.mxu0 0.0
        %954 = vmatprep.subr.mxu0 0.0
        %955 = vmatpush2.xpose.msra.mxu0 0.0
        %956 = vmatprep.subr.mxu0 0.0
        %957 = vmatpush2.xpose.msra.mxu0 0.0
        %958 = vmatprep.subr.mxu0 0.0
        %959 = vmatpush2.xpose.msra.mxu0 0.0
        %960 = vmatprep.subr.mxu0 0.0
        %961 = vmatpush2.xpose.msra.mxu0 0.0
        %962 = vmatprep.subr.mxu0 0.0
        %963 = vmatpush2.xpose.msra.mxu0 0.0
        %964 = vmatprep.subr.mxu0 0.0
        %965 = vmatpush2.xpose.msra.mxu0 0.0
        %966 = vmatprep.subr.mxu0 0.0
        %967 = vmatpush2.xpose.msra.mxu0 0.0
        %968 = vmatprep.subr.mxu0 0.0
        %969 = vmatpush2.xpose.msra.mxu0 0.0
        %970 = vmatprep.subr.mxu0 0.0
        %971 = vmatpush2.xpose.msra.mxu0 0.0
        %972 = vmatprep.subr.mxu0 0.0
        %973 = vmatpush2.xpose.msra.mxu0 0.0
        %974 = vmatprep.mubr.f32.mxu0 0.0
        %975 = vmatmul.mubr.f32.gmra.mxu0 %v906
        %v976 = vpop.f32.mrf.mxu0
        %v977 = vadd.f32 %v420, %v976
        %v978 = vpop.f32.mrf.mxu0
        %979 = vdwg.mxu0
        %v980 = vsel %vm428, %v977, -inf
        %981 = vmax.xlane.f32.xlu0 %v980
        %v982 = vpop.xlane.xlu0 %981
        %v983 = vsub.f32 %v977, %v982
        %v984 = vmul.f32 %v983, 1.442695
        %v985 = vpow.pop %v984
        %v986 = vsel %vm428, %v985, 0.0
        %987 = vadd.xlane.f32.xlu0 %v986
        %v988 = vpop.xlane.xlu0 %987
        %v989 = vrcp.pop %v988
        %v990 = vmul.f32 %v985, %v989
        %991 = vrot.lane.b32.xlu0 %v416, 48
        %v992 = vpop.permute.xlu0 %991
        %v995 = vsel %vm428, %v990, 0
        %997 = vmatprep.subr.mxu0 0.0
        %998 = vmatpush1.msra.mxu0 0.0
        %999 = vmatprep.subr.mxu0 0.0
        %1000 = vmatpush1.msra.mxu0 0.0
        %1001 = vmatprep.subr.mxu0 0.0
        %1002 = vmatpush1.msra.mxu0 0.0
        %1003 = vmatprep.subr.mxu0 0.0
        %1004 = vmatpush1.msra.mxu0 0.0
        %1005 = vmatprep.subr.mxu0 0.0
        %1006 = vmatpush1.msra.mxu0 0.0
        %1007 = vmatprep.subr.mxu0 0.0
        %1008 = vmatpush1.msra.mxu0 0.0
        %1009 = vmatprep.subr.mxu0 0.0
        %1010 = vmatpush1.msra.mxu0 0.0
        %1011 = vmatprep.subr.mxu0 0.0
        %1012 = vmatpush1.msra.mxu0 0.0
        %1013 = vmatprep.subr.mxu0 0.0
        %1014 = vmatpush1.msra.mxu0 0.0
        %1015 = vmatprep.subr.mxu0 0.0
        %1016 = vmatpush1.msra.mxu0 0.0
        %1017 = vmatprep.subr.mxu0 0.0
        %1018 = vmatpush1.msra.mxu0 0.0
        %1019 = vmatprep.subr.mxu0 0.0
        %1020 = vmatpush1.msra.mxu0 0.0
        %1021 = vmatprep.subr.mxu0 0.0
        %1022 = vmatpush1.msra.mxu0 0.0
        %1023 = vmatprep.subr.mxu0 0.0
        %1024 = vmatpush1.msra.mxu0 0.0
        %1025 = vmatprep.subr.mxu0 0.0
        %1026 = vmatpush1.msra.mxu0 0.0
        %1027 = vmatprep.subr.mxu0 0.0
        %1028 = vmatpush1.msra.mxu0 %v992
        %1029 = vmatprep.subr.mxu0 0.0
        %1030 = vmatpush2.msra.mxu0 0.0
        %1031 = vmatprep.subr.mxu0 0.0
        %1032 = vmatpush2.msra.mxu0 0.0
        %1033 = vmatprep.subr.mxu0 0.0
        %1034 = vmatpush2.msra.mxu0 0.0
        %1035 = vmatprep.subr.mxu0 0.0
        %1036 = vmatpush2.msra.mxu0 0.0
        %1037 = vmatprep.subr.mxu0 0.0
        %1038 = vmatpush2.msra.mxu0 0.0
        %1039 = vmatprep.subr.mxu0 0.0
        %1040 = vmatpush2.msra.mxu0 0.0
        %1041 = vmatprep.subr.mxu0 0.0
        %1042 = vmatpush2.msra.mxu0 0.0
        %1043 = vmatprep.subr.mxu0 0.0
        %1044 = vmatpush2.msra.mxu0 0.0
        %1045 = vmatprep.subr.mxu0 0.0
        %1046 = vmatpush2.msra.mxu0 0.0
        %1047 = vmatprep.subr.mxu0 0.0
        %1048 = vmatpush2.msra.mxu0 0.0
        %1049 = vmatprep.subr.mxu0 0.0
        %1050 = vmatpush2.msra.mxu0 0.0
        %1051 = vmatprep.subr.mxu0 0.0
        %1052 = vmatpush2.msra.mxu0 0.0
        %1053 = vmatprep.subr.mxu0 0.0
        %1054 = vmatpush2.msra.mxu0 0.0
        %1055 = vmatprep.subr.mxu0 0.0
        %1056 = vmatpush2.msra.mxu0 0.0
        %1057 = vmatprep.subr.mxu0 0.0
        %1058 = vmatpush2.msra.mxu0 0.0
        %1059 = vmatprep.subr.mxu0 0.0
        %1060 = vmatpush2.msra.mxu0 0.0
        %1061 = vmatprep.mubr.f32.mxu0 0.0
        %1062 = vmatmul.mubr.f32.gmra.mxu0 %v995
        %v1063 = vpop.f32.mrf.mxu0
        %v1064 = vadd.f32 0.0, %v1063
        %v1065 = vpop.f32.mrf.mxu0
        %1066 = vdwg.mxu0
        %v1068 = vsel %vm428, %v1064, 0
        %1070 = vmatprep.subr.mxu0 0.0
        %1071 = vmatpush1.msra.mxu0 0.0
        %1072 = vmatprep.subr.mxu0 0.0
        %1073 = vmatpush1.msra.mxu0 0.0
        %1074 = vmatprep.subr.mxu0 0.0
        %1075 = vmatpush1.msra.mxu0 0.0
        %1076 = vmatprep.subr.mxu0 0.0
        %1077 = vmatpush1.msra.mxu0 0.0
        %1078 = vmatprep.subr.mxu0 0.0
        %1079 = vmatpush1.msra.mxu0 0.0
        %1080 = vmatprep.subr.mxu0 0.0
        %1081 = vmatpush1.msra.mxu0 0.0
        %1082 = vmatprep.subr.mxu0 0.0
        %1083 = vmatpush1.msra.mxu0 0.0
        %1084 = vmatprep.subr.mxu0 0.0
        %1085 = vmatpush1.msra.mxu0 0.0
        %1086 = vmatprep.subr.mxu0 0.0
        %1087 = vmatpush1.msra.mxu0 0.0
        %1088 = vmatprep.subr.mxu0 0.0
        %1089 = vmatpush1.msra.mxu0 0.0
        %1090 = vmatprep.subr.mxu0 0.0
        %1091 = vmatpush1.msra.mxu0 0.0
        %1092 = vmatprep.subr.mxu0 0.0
        %1093 = vmatpush1.msra.mxu0 0.0
        %1094 = vmatprep.subr.mxu0 0.0
        %1095 = vmatpush1.msra.mxu0 0.0
        %1096 = vmatprep.subr.mxu0 0.0
        %1097 = vmatpush1.msra.mxu0 0.0
        %1098 = vmatprep.subr.mxu0 0.0
        %1099 = vmatpush1.msra.mxu0 0.0
        %1100 = vmatprep.subr.mxu0 0.0
        %1101 = vmatpush1.msra.mxu0 %v423
        %1102 = vmatprep.subr.mxu0 0.0
        %1103 = vmatpush2.msra.mxu0 0.0
        %1104 = vmatprep.subr.mxu0 0.0
        %1105 = vmatpush2.msra.mxu0 0.0
        %1106 = vmatprep.subr.mxu0 0.0
        %1107 = vmatpush2.msra.mxu0 0.0
        %1108 = vmatprep.subr.mxu0 0.0
        %1109 = vmatpush2.msra.mxu0 0.0
        %1110 = vmatprep.subr.mxu0 0.0
        %1111 = vmatpush2.msra.mxu0 0.0
        %1112 = vmatprep.subr.mxu0 0.0
        %1113 = vmatpush2.msra.mxu0 0.0
        %1114 = vmatprep.subr.mxu0 0.0
        %1115 = vmatpush2.msra.mxu0 0.0
        %1116 = vmatprep.subr.mxu0 0.0
        %1117 = vmatpush2.msra.mxu0 0.0
        %1118 = vmatprep.subr.mxu0 0.0
        %1119 = vmatpush2.msra.mxu0 0.0
        %1120 = vmatprep.subr.mxu0 0.0
        %1121 = vmatpush2.msra.mxu0 0.0
        %1122 = vmatprep.subr.mxu0 0.0
        %1123 = vmatpush2.msra.mxu0 0.0
        %1124 = vmatprep.subr.mxu0 0.0
        %1125 = vmatpush2.msra.mxu0 0.0
        %1126 = vmatprep.subr.mxu0 0.0
        %1127 = vmatpush2.msra.mxu0 0.0
        %1128 = vmatprep.subr.mxu0 0.0
        %1129 = vmatpush2.msra.mxu0 0.0
        %1130 = vmatprep.subr.mxu0 0.0
        %1131 = vmatpush2.msra.mxu0 0.0
        %1132 = vmatprep.subr.mxu0 0.0
        %1133 = vmatpush2.msra.mxu0 0.0
        %1134 = vmatprep.mubr.f32.mxu0 0.0
        %1135 = vmatmul.mubr.f32.gmra.mxu0 %v1068
        %v1136 = vpop.f32.mrf.mxu0
        %v1137 = vadd.f32 0.0, %v1136
        %v1138 = vpop.f32.mrf.mxu0
        %1139 = vdwg.mxu0
        %v1140 = vadd.f32 %v899, %v1137
        %1141 = vrot.lane.b32.xlu0 %v419, 104
        %v1142 = vpop.permute.xlu0 %1141
        %1143 = vrot.lane.b32.xlu0 %v416, 72
        %v1144 = vpop.permute.xlu0 %1143
        %v1145 = vsel %vm428, %v1142, 0
        %v1147 = vsel %vm428, %v1144, 0
        %1149 = vmatprep.subr.mxu0 0.0
        %1150 = vmatpush1.xpose.msra.mxu0 0.0
        %1151 = vmatprep.subr.mxu0 0.0
        %1152 = vmatpush1.xpose.msra.mxu0 0.0
        %1153 = vmatprep.subr.mxu0 0.0
        %1154 = vmatpush1.xpose.msra.mxu0 0.0
        %1155 = vmatprep.subr.mxu0 0.0
        %1156 = vmatpush1.xpose.msra.mxu0 0.0
        %1157 = vmatprep.subr.mxu0 0.0
        %1158 = vmatpush1.xpose.msra.mxu0 0.0
        %1159 = vmatprep.subr.mxu0 0.0
        %1160 = vmatpush1.xpose.msra.mxu0 0.0
        %1161 = vmatprep.subr.mxu0 0.0
        %1162 = vmatpush1.xpose.msra.mxu0 0.0
        %1163 = vmatprep.subr.mxu0 0.0
        %1164 = vmatpush1.xpose.msra.mxu0 0.0
        %1165 = vmatprep.subr.mxu0 0.0
        %1166 = vmatpush1.xpose.msra.mxu0 0.0
        %1167 = vmatprep.subr.mxu0 0.0
        %1168 = vmatpush1.xpose.msra.mxu0 0.0
        %1169 = vmatprep.subr.mxu0 0.0
        %1170 = vmatpush1.xpose.msra.mxu0 0.0
        %1171 = vmatprep.subr.mxu0 0.0
        %1172 = vmatpush1.xpose.msra.mxu0 0.0
        %1173 = vmatprep.subr.mxu0 0.0
        %1174 = vmatpush1.xpose.msra.mxu0 0.0
        %1175 = vmatprep.subr.mxu0 0.0
        %1176 = vmatpush1.xpose.msra.mxu0 0.0
        %1177 = vmatprep.subr.mxu0 0.0
        %1178 = vmatpush1.xpose.msra.mxu0 0.0
        %1179 = vmatprep.subr.mxu0 0.0
        %1180 = vmatpush1.xpose.msra.mxu0 %v1147
        %1181 = vmatprep.subr.mxu0 0.0
        %1182 = vmatpush2.xpose.msra.mxu0 0.0
        %1183 = vmatprep.subr.mxu0 0.0
        %1184 = vmatpush2.xpose.msra.mxu0 0.0
        %1185 = vmatprep.subr.mxu0 0.0
        %1186 = vmatpush2.xpose.msra.mxu0 0.0
        %1187 = vmatprep.subr.mxu0 0.0
        %1188 = vmatpush2.xpose.msra.mxu0 0.0
        %1189 = vmatprep.subr.mxu0 0.0
        %1190 = vmatpush2.xpose.msra.mxu0 0.0
        %1191 = vmatprep.subr.mxu0 0.0
        %1192 = vmatpush2.xpose.msra.mxu0 0.0
        %1193 = vmatprep.subr.mxu0 0.0
        %1194 = vmatpush2.xpose.msra.mxu0 0.0
        %1195 = vmatprep.subr.mxu0 0.0
        %1196 = vmatpush2.xpose.msra.mxu0 0.0
        %1197 = vmatprep.subr.mxu0 0.0
        %1198 = vmatpush2.xpose.msra.mxu0 0.0
        %1199 = vmatprep.subr.mxu0 0.0
        %1200 = vmatpush2.xpose.msra.mxu0 0.0
        %1201 = vmatprep.subr.mxu0 0.0
        %1202 = vmatpush2.xpose.msra.mxu0 0.0
        %1203 = vmatprep.subr.mxu0 0.0
        %1204 = vmatpush2.xpose.msra.mxu0 0.0
        %1205 = vmatprep.subr.mxu0 0.0
        %1206 = vmatpush2.xpose.msra.mxu0 0.0
        %1207 = vmatprep.subr.mxu0 0.0
        %1208 = vmatpush2.xpose.msra.mxu0 0.0
        %1209 = vmatprep.subr.mxu0 0.0
        %1210 = vmatpush2.xpose.msra.mxu0 0.0
        %1211 = vmatprep.subr.mxu0 0.0
        %1212 = vmatpush2.xpose.msra.mxu0 0.0
        %1213 = vmatprep.mubr.f32.mxu0 0.0
        %1214 = vmatmul.mubr.f32.gmra.mxu0 %v1145
        %v1215 = vpop.f32.mrf.mxu0
        %v1216 = vadd.f32 %v420, %v1215
        %v1217 = vpop.f32.mrf.mxu0
        %1218 = vdwg.mxu0
        %v1219 = vsel %vm428, %v1216, -inf
        %1220 = vmax.xlane.f32.xlu0 %v1219
        %v1221 = vpop.xlane.xlu0 %1220
        %v1222 = vsub.f32 %v1216, %v1221
        %v1223 = vmul.f32 %v1222, 1.442695
        %v1224 = vpow.pop %v1223
        %v1225 = vsel %vm428, %v1224, 0.0
        %1226 = vadd.xlane.f32.xlu0 %v1225
        %v1227 = vpop.xlane.xlu0 %1226
        %v1228 = vrcp.pop %v1227
        %v1229 = vmul.f32 %v1224, %v1228
        %1230 = vrot.lane.b32.xlu0 %v416, 40
        %v1231 = vpop.permute.xlu0 %1230
        %v1234 = vsel %vm428, %v1229, 0
        %1236 = vmatprep.subr.mxu0 0.0
        %1237 = vmatpush1.msra.mxu0 0.0
        %1238 = vmatprep.subr.mxu0 0.0
        %1239 = vmatpush1.msra.mxu0 0.0
        %1240 = vmatprep.subr.mxu0 0.0
        %1241 = vmatpush1.msra.mxu0 0.0
        %1242 = vmatprep.subr.mxu0 0.0
        %1243 = vmatpush1.msra.mxu0 0.0
        %1244 = vmatprep.subr.mxu0 0.0
        %1245 = vmatpush1.msra.mxu0 0.0
        %1246 = vmatprep.subr.mxu0 0.0
        %1247 = vmatpush1.msra.mxu0 0.0
        %1248 = vmatprep.subr.mxu0 0.0
        %1249 = vmatpush1.msra.mxu0 0.0
        %1250 = vmatprep.subr.mxu0 0.0
        %1251 = vmatpush1.msra.mxu0 0.0
        %1252 = vmatprep.subr.mxu0 0.0
        %1253 = vmatpush1.msra.mxu0 0.0
        %1254 = vmatprep.subr.mxu0 0.0
        %1255 = vmatpush1.msra.mxu0 0.0
        %1256 = vmatprep.subr.mxu0 0.0
        %1257 = vmatpush1.msra.mxu0 0.0
        %1258 = vmatprep.subr.mxu0 0.0
        %1259 = vmatpush1.msra.mxu0 0.0
        %1260 = vmatprep.subr.mxu0 0.0
        %1261 = vmatpush1.msra.mxu0 0.0
        %1262 = vmatprep.subr.mxu0 0.0
        %1263 = vmatpush1.msra.mxu0 0.0
        %1264 = vmatprep.subr.mxu0 0.0
        %1265 = vmatpush1.msra.mxu0 0.0
        %1266 = vmatprep.subr.mxu0 0.0
        %1267 = vmatpush1.msra.mxu0 %v1231
        %1268 = vmatprep.subr.mxu0 0.0
        %1269 = vmatpush2.msra.mxu0 0.0
        %1270 = vmatprep.subr.mxu0 0.0
        %1271 = vmatpush2.msra.mxu0 0.0
        %1272 = vmatprep.subr.mxu0 0.0
        %1273 = vmatpush2.msra.mxu0 0.0
        %1274 = vmatprep.subr.mxu0 0.0
        %1275 = vmatpush2.msra.mxu0 0.0
        %1276 = vmatprep.subr.mxu0 0.0
        %1277 = vmatpush2.msra.mxu0 0.0
        %1278 = vmatprep.subr.mxu0 0.0
        %1279 = vmatpush2.msra.mxu0 0.0
        %1280 = vmatprep.subr.mxu0 0.0
        %1281 = vmatpush2.msra.mxu0 0.0
        %1282 = vmatprep.subr.mxu0 0.0
        %1283 = vmatpush2.msra.mxu0 0.0
        %1284 = vmatprep.subr.mxu0 0.0
        %1285 = vmatpush2.msra.mxu0 0.0
        %1286 = vmatprep.subr.mxu0 0.0
        %1287 = vmatpush2.msra.mxu0 0.0
        %1288 = vmatprep.subr.mxu0 0.0
        %1289 = vmatpush2.msra.mxu0 0.0
        %1290 = vmatprep.subr.mxu0 0.0
        %1291 = vmatpush2.msra.mxu0 0.0
        %1292 = vmatprep.subr.mxu0 0.0
        %1293 = vmatpush2.msra.mxu0 0.0
        %1294 = vmatprep.subr.mxu0 0.0
        %1295 = vmatpush2.msra.mxu0 0.0
        %1296 = vmatprep.subr.mxu0 0.0
        %1297 = vmatpush2.msra.mxu0 0.0
        %1298 = vmatprep.subr.mxu0 0.0
        %1299 = vmatpush2.msra.mxu0 0.0
        %1300 = vmatprep.mubr.f32.mxu0 0.0
        %1301 = vmatmul.mubr.f32.gmra.mxu0 %v1234
        %v1302 = vpop.f32.mrf.mxu0
        %v1303 = vadd.f32 0.0, %v1302
        %v1304 = vpop.f32.mrf.mxu0
        %1305 = vdwg.mxu0
        %v1307 = vsel %vm428, %v1303, 0
        %1309 = vmatprep.subr.mxu0 0.0
        %1310 = vmatpush1.msra.mxu0 0.0
        %1311 = vmatprep.subr.mxu0 0.0
        %1312 = vmatpush1.msra.mxu0 0.0
        %1313 = vmatprep.subr.mxu0 0.0
        %1314 = vmatpush1.msra.mxu0 0.0
        %1315 = vmatprep.subr.mxu0 0.0
        %1316 = vmatpush1.msra.mxu0 0.0
        %1317 = vmatprep.subr.mxu0 0.0
        %1318 = vmatpush1.msra.mxu0 0.0
        %1319 = vmatprep.subr.mxu0 0.0
        %1320 = vmatpush1.msra.mxu0 0.0
        %1321 = vmatprep.subr.mxu0 0.0
        %1322 = vmatpush1.msra.mxu0 0.0
        %1323 = vmatprep.subr.mxu0 0.0
        %1324 = vmatpush1.msra.mxu0 0.0
        %1325 = vmatprep.subr.mxu0 0.0
        %1326 = vmatpush1.msra.mxu0 0.0
        %1327 = vmatprep.subr.mxu0 0.0
        %1328 = vmatpush1.msra.mxu0 0.0
        %1329 = vmatprep.subr.mxu0 0.0
        %1330 = vmatpush1.msra.mxu0 0.0
        %1331 = vmatprep.subr.mxu0 0.0
        %1332 = vmatpush1.msra.mxu0 0.0
        %1333 = vmatprep.subr.mxu0 0.0
        %1334 = vmatpush1.msra.mxu0 0.0
        %1335 = vmatprep.subr.mxu0 0.0
        %1336 = vmatpush1.msra.mxu0 0.0
        %1337 = vmatprep.subr.mxu0 0.0
        %1338 = vmatpush1.msra.mxu0 0.0
        %1339 = vmatprep.subr.mxu0 0.0
        %1340 = vmatpush1.msra.mxu0 %v424
        %1341 = vmatprep.subr.mxu0 0.0
        %1342 = vmatpush2.msra.mxu0 0.0
        %1343 = vmatprep.subr.mxu0 0.0
        %1344 = vmatpush2.msra.mxu0 0.0
        %1345 = vmatprep.subr.mxu0 0.0
        %1346 = vmatpush2.msra.mxu0 0.0
        %1347 = vmatprep.subr.mxu0 0.0
        %1348 = vmatpush2.msra.mxu0 0.0
        %1349 = vmatprep.subr.mxu0 0.0
        %1350 = vmatpush2.msra.mxu0 0.0
        %1351 = vmatprep.subr.mxu0 0.0
        %1352 = vmatpush2.msra.mxu0 0.0
        %1353 = vmatprep.subr.mxu0 0.0
        %1354 = vmatpush2.msra.mxu0 0.0
        %1355 = vmatprep.subr.mxu0 0.0
        %1356 = vmatpush2.msra.mxu0 0.0
        %1357 = vmatprep.subr.mxu0 0.0
        %1358 = vmatpush2.msra.mxu0 0.0
        %1359 = vmatprep.subr.mxu0 0.0
        %1360 = vmatpush2.msra.mxu0 0.0
        %1361 = vmatprep.subr.mxu0 0.0
        %1362 = vmatpush2.msra.mxu0 0.0
        %1363 = vmatprep.subr.mxu0 0.0
        %1364 = vmatpush2.msra.mxu0 0.0
        %1365 = vmatprep.subr.mxu0 0.0
        %1366 = vmatpush2.msra.mxu0 0.0
        %1367 = vmatprep.subr.mxu0 0.0
        %1368 = vmatpush2.msra.mxu0 0.0
        %1369 = vmatprep.subr.mxu0 0.0
        %1370 = vmatpush2.msra.mxu0 0.0
        %1371 = vmatprep.subr.mxu0 0.0
        %1372 = vmatpush2.msra.mxu0 0.0
        %1373 = vmatprep.mubr.f32.mxu0 0.0
        %1374 = vmatmul.mubr.f32.gmra.mxu0 %v1307
        %v1375 = vpop.f32.mrf.mxu0
        %v1376 = vadd.f32 0.0, %v1375
        %v1377 = vpop.f32.mrf.mxu0
        %1378 = vdwg.mxu0
        %v1379 = vadd.f32 %v1140, %v1376
        %v1380 = vld [vmem:[%s5] sm:$0x1]
        %v1382 = vlaneseq
        %v1383 = vshrl.u32 %v1382, 7
        %v1384 = vsub.s32 0, %v1383
        %v1385 = vrot.slane %v1380, %v1384
        %v1387 = vadd.f32 %v1379, %v1385
        %1388 = vst.msk [vmem:[%s332] sm:$0xff] %vm345, %v1387
        %s1389 = sand.u32 %s171, 1
        %s1390 = scalar_lea.sflag [#allocation4], %s1389
        %s1391 = sand.u32 %s171, 1
        %s1392 = smul.addr %s1391, 8
        %s1393 = scalar_lea.vmem [#allocation10], %s1392
        // Predicated region
        $region61: #{tpu_custom_call.1} parent=43 // pred_check
          %p1394 = pneg %p181
        $region62: #{tpu_custom_call.1} parent=43 // pred_check_branch
          %1396 = sbr.rel (%p1394) target = $region64
        $region63: #{tpu_custom_call.1} parent=43 // pred_region
          %s1398 = ssub.s32 128, 128
          %1399 = vsyncadd %s1390, %s1398
          %s1400 = smul.addr %s27, 128
          %s1401 = scalar_lea.hbm %s6, %s1400
          %s1403 = sshll.u32 %s1393, 4
          %s1404 = int_to_ptr.vmem [resolvable:$true] %s1403
          %1406 = dma.vmem_to_hbm [thread:$0]  %s1404, 128, %s1401, %s1390
        $region64: #{tpu_custom_call.1} parent=43 // pred_fallthru
          _
      $region44: #{tpu_custom_call.1} parent=5 // pred_fallthru
        _
      %p1407 = scmp.le.s32.totalorder 2, %s22
      // Predicated region
      $region65: #{tpu_custom_call.1} parent=5 // pred_check
        %p1408 = pneg %p1407
      $region66: #{tpu_custom_call.1} parent=5 // pred_check_branch
        %1410 = sbr.rel (%p1408) target = $region68
      $region67: #{tpu_custom_call.1} parent=5 // pred_region
        %s1411 = ssub.s32 %s22, 2
        // Predicated region
        $region69: #{tpu_custom_call.1} parent=67 // pred_check
          %p1412 = pneg %p187
        $region70: #{tpu_custom_call.1} parent=67 // pred_check_branch
          %1414 = sbr.rel (%p1412) target = $region72
        $region71: #{tpu_custom_call.1} parent=67 // pred_region
          %s1415 = sand.u32 %s172, 1
          %s1416 = scalar_lea.sflag [#allocation4], %s1415
          %s1417 = sand.u32 %s172, 1
          %s1418 = smul.addr %s1417, 8
          %s1419 = scalar_lea.vmem [#allocation10], %s1418
          %1420 = dma.done %s1416, 128
        $region72: #{tpu_custom_call.1} parent=67 // pred_fallthru
          _
      $region68: #{tpu_custom_call.1} parent=5 // pred_fallthru
        _
    $region6: #{tpu_custom_call.1} parent=1 // loop_footer
      %s26 = sadd.s32 1, %s22
    $region7: #{tpu_custom_call.1} parent=1 // loop_footer_branch
      %21 = sbr.rel target = $region3
    $region8: #{tpu_custom_call.1} parent=1 // loop_exit
      _
    %1421 = vsyncpa [#allocation3], 1
    %s1422 = scalar_lea.sflag [#allocation3], 1
    %1423 = vsyncpa %s1422, 1
    %1424 = vsyncpa [#allocation6], 1
    %s1425 = scalar_lea.sflag [#allocation6], 1
    %1426 = vsyncpa %s1425, 1
    %1427 = vsyncpa [#allocation9], 1
    %1428 = vsyncpa [#allocation4], 1
    %s1429 = scalar_lea.sflag [#allocation4], 1
    %1430 = vsyncpa %s1429, 1

// kernel: tpu_custom_call.1
$region0: #{tpu_custom_call.1}
  #allocation0 [shape = 'u32[]', space=smem, size = 0x4, offset = 0x4, fixed_abs, tag = 'smem constant byte address 0x4 - core index']
  #allocation1 [shape = 'u32[144,128]{1,0:T(1,128)}', space=vmem, size = 0x12000, scoped, tag = 'internal scratch']
  %s0 = inlined_call_operand.hbm [shape: f32[16,32], index: 0, kind: input, shape index: {}]
  %s1 = inlined_call_operand.hbm [shape: f32[2,8,8], index: 1, kind: input, shape index: {}]
  %s2 = inlined_call_operand.hbm [shape: f32[32,96], index: 2, kind: input, shape index: {}]
  %s3 = inlined_call_operand.vmem [shape: f32[1,96], index: 3, kind: input, shape index: {}]
  %s4 = inlined_call_operand.hbm [shape: f32[32,32], index: 4, kind: input, shape index: {}]
  %s5 = inlined_call_operand.vmem [shape: f32[1,32], index: 5, kind: input, shape index: {}]
  %s6 = inlined_call_operand.hbm [shape: f32[16,32], index: 6, kind: output, shape index: {}]
  %s7 = sld [smem:[#allocation0]]
  $region73: #{tpu_custom_call.1} parent=0
    _
  %s9 = ssub.s32 1, %s7
  %s10 = scalar_select 0, %s9, %s7
  $region1: #{tpu_custom_call.1} parent=0
    #allocation2 [shape = 'u8[8192]{0}', space=vmem, size = 0x2000, scoped, tag = 'input window, operand 0']
    #allocation3 [shape = 's32[2]{0}', space=sflag, size = 0x8, scoped, tag = 'scoped memory for tpu_custom_call.1']
    #allocation4 [shape = 's32[2]{0}', space=sflag, size = 0x8, scoped, tag = 'scoped memory for tpu_custom_call.1']
    #allocation5 [shape = 'u8[8192]{0}', space=vmem, size = 0x2000, scoped, tag = 'input window, operand 1']
    #allocation6 [shape = 's32[2]{0}', space=sflag, size = 0x8, scoped, tag = 'scoped memory for tpu_custom_call.1']
    #allocation7 [shape = 'u8[16384]{0}', space=vmem, size = 0x4000, scoped, tag = 'input window, operand 2, single buffered']
    #allocation8 [shape = 'u8[16384]{0}', space=vmem, size = 0x4000, scoped, tag = 'input window, operand 4, single buffered']
    #allocation9 [shape = 's32[1]{0}', space=sflag, size = 0x4, scoped, tag = 'scoped memory for tpu_custom_call.1']
    #allocation10 [shape = 'u8[8192]{0}', space=vmem, size = 0x2000, scoped, tag = 'output window, operand 0']
    %11 = vsyncpa [#allocation3], 0
    %s12 = scalar_lea.sflag [#allocation3], 1
    %13 = vsyncpa %s12, 0
    %14 = vsyncpa [#allocation6], 0
    %s15 = scalar_lea.sflag [#allocation6], 1
    %16 = vsyncpa %s15, 0
    %17 = vsyncpa [#allocation9], 0
    %18 = vsyncpa [#allocation4], 0
    %s19 = scalar_lea.sflag [#allocation4], 1
    %20 = vsyncpa %s19, 0
    loop: start=0, step=1, limit=4
    $region2: #{tpu_custom_call.1} parent=1 // loop_pre_header
      _
    $region3: #{tpu_custom_call.1} parent=1 // loop_header
      %s22 = sphi 0, %s26
      %p23 = scmp.ge.s32.totalorder %s22, 4
      %s32 = sphi 0, %s34
      %s35 = sphi 0, %s32
      %s36 = sphi 0, %s35
      %s52 = sphi 0, %s36
      %s58 = sphi 0, %s60
      %s61 = sphi 0, %s58
      %s62 = sphi 0, %s61
      %s78 = sphi 0, %s62
      %s82 = sphi 0, %s82
      %s84 = sphi 0, %s82
      %s85 = sphi 0, %s84
      %s99 = sphi 0, %s85
      %s103 = sphi 0, %s103
      %s105 = sphi 0, %s103
      %s106 = sphi 0, %s105
      %s120 = sphi 0, %s106
      %s124 = sphi 0, %s124
      %s126 = sphi 0, %s124
      %s127 = sphi 0, %s126
      %s141 = sphi 0, %s127
      %s145 = sphi 0, %s145
      %s147 = sphi 0, %s145
      %s148 = sphi 0, %s147
      %s162 = sphi 0, %s148
      %s168 = sphi 0, %s170
      %s171 = sphi 0, %s168
      %s172 = sphi 0, %s171
      %s188 = sphi 0, %s172
    $region4: #{tpu_custom_call.1} parent=1 // loop_header_branch
      %25 = sbr.rel (%p23) target = $region8
    $region5: #{tpu_custom_call.1} parent=1 // loop_body
      %s27 = ssub.s32 %s22, 1
      %s28 = ssub.s32 %s22, 2
      %s29 = sadd.s32 %s22, 1
      %s30 = ssub.s32 %s22, %s29
      %p31 = scmp.eq.s32.totalorder %s30, 0
      %s33 = sadd.s32 %s32, 1
      %s34 = scalar_select %p31, %s32, %s33
      %p37 = pneg %p31
      %p38 = scmp.eq.s32.totalorder %s22, 1
      %p39 = por %p37, %p38
      %p40 = scmp.ne.s32.totalorder %s32, %s35
      %p41 = scmp.eq.s32.totalorder %s22, 0
      %p42 = por %p40, %p41
      %p43 = scmp.ne.s32.totalorder %s32, %s35
      %p44 = scmp.eq.s32.totalorder %s27, 1
      %p45 = por %p43, %p44
      %p46 = scmp.ne.s32.totalorder %s35, %s36
      %p47 = scmp.eq.s32.totalorder %s27, 0
      %p48 = por %p46, %p47
      %p49 = scmp.ne.s32.totalorder %s35, %s36
      %p50 = scmp.eq.s32.totalorder %s28, 1
      %p51 = por %p49, %p50
      %p53 = scmp.ne.s32.totalorder %s36, %s52
      %p54 = scmp.eq.s32.totalorder %s28, 0
      %p55 = por %p53, %p54
      %s56 = ssub.s32 %s22, %s29
      %p57 = scmp.eq.s32.totalorder %s56, 0
      %s59 = sadd.s32 %s58, 1
      %s60 = scalar_select %p57, %s58, %s59
      %p63 = pneg %p57
      %p64 = scmp.eq.s32.totalorder %s22, 1
      %p65 = por %p63, %p64
      %p66 = scmp.ne.s32.totalorder %s58, %s61
      %p67 = scmp.eq.s32.totalorder %s22, 0
      %p68 = por %p66, %p67
      %p69 = scmp.ne.s32.totalorder %s58, %s61
      %p70 = scmp.eq.s32.totalorder %s27, 1
      %p71 = por %p69, %p70
      %p72 = scmp.ne.s32.totalorder %s61, %s62
      %p73 = scmp.eq.s32.totalorder %s27, 0
      %p74 = por %p72, %p73
      %p75 = scmp.ne.s32.totalorder %s61, %s62
      %p76 = scmp.eq.s32.totalorder %s28, 1
      %p77 = por %p75, %p76
      %p79 = scmp.ne.s32.totalorder %s62, %s78
      %p80 = scmp.eq.s32.totalorder %s28, 0
      %p81 = por %p79, %p80
      %s83 = sadd.s32 %s82, 1
      %p86 = scmp.eq.s32.totalorder %s22, 1
      %p87 = scmp.ne.s32.totalorder %s82, %s84
      %p88 = scmp.eq.s32.totalorder %s22, 0
      %p89 = por %p87, %p88
      %p90 = scmp.ne.s32.totalorder %s82, %s84
      %p91 = scmp.eq.s32.totalorder %s27, 1
      %p92 = por %p90, %p91
      %p93 = scmp.ne.s32.totalorder %s84, %s85
      %p94 = scmp.eq.s32.totalorder %s27, 0
      %p95 = por %p93, %p94
      %p96 = scmp.ne.s32.totalorder %s84, %s85
      %p97 = scmp.eq.s32.totalorder %s28, 1
      %p98 = por %p96, %p97
      %p100 = scmp.ne.s32.totalorder %s85, %s99
      %p101 = scmp.eq.s32.totalorder %s28, 0
      %p102 = por %p100, %p101
      %s104 = sadd.s32 %s103, 1
      %p107 = scmp.eq.s32.totalorder %s22, 1
      %p108 = scmp.ne.s32.totalorder %s103, %s105
      %p109 = scmp.eq.s32.totalorder %s22, 0
      %p110 = por %p108, %p109
      %p111 = scmp.ne.s32.totalorder %s103, %s105
      %p112 = scmp.eq.s32.totalorder %s27, 1
      %p113 = por %p111, %p112
      %p114 = scmp.ne.s32.totalorder %s105, %s106
      %p115 = scmp.eq.s32.totalorder %s27, 0
      %p116 = por %p114, %p115
      %p117 = scmp.ne.s32.totalorder %s105, %s106
      %p118 = scmp.eq.s32.totalorder %s28, 1
      %p119 = por %p117, %p118
      %p121 = scmp.ne.s32.totalorder %s106, %s120
      %p122 = scmp.eq.s32.totalorder %s28, 0
      %p123 = por %p121, %p122
      %s125 = sadd.s32 %s124, 1
      %p128 = scmp.eq.s32.totalorder %s22, 1
      %p129 = scmp.ne.s32.totalorder %s124, %s126
      %p130 = scmp.eq.s32.totalorder %s22, 0
      %p131 = por %p129, %p130
      %p132 = scmp.ne.s32.totalorder %s124, %s126
      %p133 = scmp.eq.s32.totalorder %s27, 1
      %p134 = por %p132, %p133
      %p135 = scmp.ne.s32.totalorder %s126, %s127
      %p136 = scmp.eq.s32.totalorder %s27, 0
      %p137 = por %p135, %p136
      %p138 = scmp.ne.s32.totalorder %s126, %s127
      %p139 = scmp.eq.s32.totalorder %s28, 1
      %p140 = por %p138, %p139
      %p142 = scmp.ne.s32.totalorder %s127, %s141
      %p143 = scmp.eq.s32.totalorder %s28, 0
      %p144 = por %p142, %p143
      %s146 = sadd.s32 %s145, 1
      %p149 = scmp.eq.s32.totalorder %s22, 1
      %p150 = scmp.ne.s32.totalorder %s145, %s147
      %p151 = scmp.eq.s32.totalorder %s22, 0
      %p152 = por %p150, %p151
      %p153 = scmp.ne.s32.totalorder %s145, %s147
      %p154 = scmp.eq.s32.totalorder %s27, 1
      %p155 = por %p153, %p154
      %p156 = scmp.ne.s32.totalorder %s147, %s148
      %p157 = scmp.eq.s32.totalorder %s27, 0
      %p158 = por %p156, %p157
      %p159 = scmp.ne.s32.totalorder %s147, %s148
      %p160 = scmp.eq.s32.totalorder %s28, 1
      %p161 = por %p159, %p160
      %p163 = scmp.ne.s32.totalorder %s148, %s162
      %p164 = scmp.eq.s32.totalorder %s28, 0
      %p165 = por %p163, %p164
      %s166 = ssub.s32 %s22, %s29
      %p167 = scmp.eq.s32.totalorder %s166, 0
      %s169 = sadd.s32 %s168, 1
      %s170 = scalar_select %p167, %s168, %s169
      %p173 = pneg %p167
      %p174 = scmp.eq.s32.totalorder %s22, 1
      %p175 = por %p173, %p174
      %p176 = scmp.ne.s32.totalorder %s168, %s171
      %p177 = scmp.eq.s32.totalorder %s22, 0
      %p178 = por %p176, %p177
      %p179 = scmp.ne.s32.totalorder %s168, %s171
      %p180 = scmp.eq.s32.totalorder %s27, 1
      %p181 = por %p179, %p180
      %p182 = scmp.ne.s32.totalorder %s171, %s172
      %p183 = scmp.eq.s32.totalorder %s27, 0
      %p184 = por %p182, %p183
      %p185 = scmp.ne.s32.totalorder %s171, %s172
      %p186 = scmp.eq.s32.totalorder %s28, 1
      %p187 = por %p185, %p186
      %p189 = scmp.ne.s32.totalorder %s172, %s188
      %p190 = scmp.eq.s32.totalorder %s28, 0
      %p191 = por %p189, %p190
      %p192 = scmp.le.s32.totalorder 1, %s22
      %p193 = scmp.lt.s32.totalorder %s22, 3
      %p194 = pnand %p192, %p193
      %p195 = pneg %p194
      // Predicated region
      $region9: #{tpu_custom_call.1} parent=5 // pred_check
        _
      $region10: #{tpu_custom_call.1} parent=5 // pred_check_branch
        %197 = sbr.rel (%p194) target = $region12
      $region11: #{tpu_custom_call.1} parent=5 // pred_region
        %s198 = ssub.s32 %s22, 1
        // Predicated region
        $region13: #{tpu_custom_call.1} parent=11 // pred_check
          %p199 = pneg %p95
        $region14: #{tpu_custom_call.1} parent=11 // pred_check_branch
          %201 = sbr.rel (%p199) target = $region16
        $region15: #{tpu_custom_call.1} parent=11 // pred_region
          %s203 = ssub.s32 512, 512
          %204 = vsyncadd [#allocation6], %s203
          %s205 = sshll.u32 [#allocation7], 4
          %s206 = int_to_ptr.vmem [resolvable:$true] %s205
          %211 = dma.hbm_to_vmem [thread:$0]  %s2, 512, %s206, [#allocation6], 128, 128, 8
        $region16: #{tpu_custom_call.1} parent=11 // pred_fallthru
          _
        // Predicated region
        $region17: #{tpu_custom_call.1} parent=11 // pred_check
          %p212 = pneg %p116
        $region18: #{tpu_custom_call.1} parent=11 // pred_check_branch
          %214 = sbr.rel (%p212) target = $region20
        $region19: #{tpu_custom_call.1} parent=11 // pred_region
          _
        $region20: #{tpu_custom_call.1} parent=11 // pred_fallthru
          _
        // Predicated region
        $region21: #{tpu_custom_call.1} parent=11 // pred_check
          %p215 = pneg %p137
        $region22: #{tpu_custom_call.1} parent=11 // pred_check_branch
          %217 = sbr.rel (%p215) target = $region24
        $region23: #{tpu_custom_call.1} parent=11 // pred_region
          %s219 = ssub.s32 512, 512
          %220 = vsyncadd [#allocation9], %s219
          %s221 = sshll.u32 [#allocation8], 4
          %s222 = int_to_ptr.vmem [resolvable:$true] %s221
          %227 = dma.hbm_to_vmem [thread:$0]  %s4, 512, %s222, [#allocation9], 128, 128, 8
        $region24: #{tpu_custom_call.1} parent=11 // pred_fallthru
          _
        // Predicated region
        $region25: #{tpu_custom_call.1} parent=11 // pred_check
          %p228 = pneg %p158
        $region26: #{tpu_custom_call.1} parent=11 // pred_check_branch
          %230 = sbr.rel (%p228) target = $region28
        $region27: #{tpu_custom_call.1} parent=11 // pred_region
          _
        $region28: #{tpu_custom_call.1} parent=11 // pred_fallthru
          _
      $region12: #{tpu_custom_call.1} parent=5 // pred_fallthru
        _
      %p231 = scmp.lt.s32.totalorder %s22, 2
      // Predicated region
      $region29: #{tpu_custom_call.1} parent=5 // pred_check
        %p232 = pneg %p231
      $region30: #{tpu_custom_call.1} parent=5 // pred_check_branch
        %234 = sbr.rel (%p232) target = $region32
      $region31: #{tpu_custom_call.1} parent=5 // pred_region
        // Predicated region
        $region33: #{tpu_custom_call.1} parent=31 // pred_check
          %p235 = pneg %p42
        $region34: #{tpu_custom_call.1} parent=31 // pred_check_branch
          %237 = sbr.rel (%p235) target = $region36
        $region35: #{tpu_custom_call.1} parent=31 // pred_region
          %s238 = sand.u32 %s32, 1
          %s239 = scalar_lea.sflag [#allocation3], %s238
          %s240 = sand.u32 %s32, 1
          %s241 = smul.addr %s240, 8
          %s242 = scalar_lea.vmem [#allocation2], %s241
          %s244 = ssub.s32 128, 128
          %245 = vsyncadd %s239, %s244
          %s246 = smul.addr %s22, 128
          %s247 = scalar_lea.hbm %s0, %s246
          %s249 = sshll.u32 %s242, 4
          %s250 = int_to_ptr.vmem [resolvable:$true] %s249
          %252 = dma.hbm_to_vmem [thread:$0]  %s247, 128, %s250, %s239
        $region36: #{tpu_custom_call.1} parent=31 // pred_fallthru
          _
        // Predicated region
        $region37: #{tpu_custom_call.1} parent=31 // pred_check
          %p253 = pneg %p68
        $region38: #{tpu_custom_call.1} parent=31 // pred_check_branch
          %255 = sbr.rel (%p253) target = $region40
        $region39: #{tpu_custom_call.1} parent=31 // pred_region
          %s256 = sand.u32 %s22, 1
          %s257 = scalar_lea.sflag [#allocation6], %s256
          %s258 = sand.u32 %s58, 1
          %s259 = smul.addr %s258, 8
          %s260 = scalar_lea.vmem [#allocation5], %s259
          %s262 = ssub.s32 128, 128
          %263 = vsyncadd %s257, %s262
          %s264 = smul.addr %s22, 128
          %s265 = scalar_lea.hbm %s1, %s264
          %s267 = sshll.u32 %s260, 4
          %s268 = int_to_ptr.vmem [resolvable:$true] %s267
          %270 = dma.hbm_to_vmem [thread:$0]  %s265, 128, %s268, %s257
        $region40: #{tpu_custom_call.1} parent=31 // pred_fallthru
          _
      $region32: #{tpu_custom_call.1} parent=5 // pred_fallthru
        _
      %p271 = scmp.le.s32.totalorder 1, %s22
      %p272 = scmp.lt.s32.totalorder %s22, 3
      %p273 = pnand %p271, %p272
      %p274 = pneg %p273
      // Predicated region
      $region41: #{tpu_custom_call.1} parent=5 // pred_check
        _
      $region42: #{tpu_custom_call.1} parent=5 // pred_check_branch
        %276 = sbr.rel (%p273) target = $region44
      $region43: #{tpu_custom_call.1} parent=5 // pred_region
        %s277 = ssub.s32 %s22, 1
        %s278 = sand.u32 %s35, 1
        %s279 = scalar_lea.sflag [#allocation3], %s278
        %s280 = sand.u32 %s35, 1
        %s281 = smul.addr %s280, 8
        %s282 = scalar_lea.vmem [#allocation2], %s281
        // Predicated region
        $region45: #{tpu_custom_call.1} parent=43 // pred_check
          %p283 = pneg %p48
        $region46: #{tpu_custom_call.1} parent=43 // pred_check_branch
          %285 = sbr.rel (%p283) target = $region48
        $region47: #{tpu_custom_call.1} parent=43 // pred_region
          %286 = dma.done %s279, 128
        $region48: #{tpu_custom_call.1} parent=43 // pred_fallthru
          _
        %s287 = sand.u32 %s27, 1
        %s288 = scalar_lea.sflag [#allocation6], %s287
        %s289 = sand.u32 %s61, 1
        %s290 = smul.addr %s289, 8
        %s291 = scalar_lea.vmem [#allocation5], %s290
        // Predicated region
        $region49: #{tpu_custom_call.1} parent=43 // pred_check
          %p292 = pneg %p74
        $region50: #{tpu_custom_call.1} parent=43 // pred_check_branch
          %294 = sbr.rel (%p292) target = $region52
        $region51: #{tpu_custom_call.1} parent=43 // pred_region
          %295 = dma.done %s288, 128
        $region52: #{tpu_custom_call.1} parent=43 // pred_fallthru
          _
        // Predicated region
        $region53: #{tpu_custom_call.1} parent=43 // pred_check
          %p296 = pneg %p95
        $region54: #{tpu_custom_call.1} parent=43 // pred_check_branch
          %298 = sbr.rel (%p296) target = $region56
        $region55: #{tpu_custom_call.1} parent=43 // pred_region
          %299 = dma.done [#allocation6], 512
        $region56: #{tpu_custom_call.1} parent=43 // pred_fallthru
          _
        // Predicated region
        $region57: #{tpu_custom_call.1} parent=43 // pred_check
          %p300 = pneg %p137
        $region58: #{tpu_custom_call.1} parent=43 // pred_check_branch
          %302 = sbr.rel (%p300) target = $region60
        $region59: #{tpu_custom_call.1} parent=43 // pred_region
          %303 = dma.done [#allocation9], 512
        $region60: #{tpu_custom_call.1} parent=43 // pred_fallthru
          _
        %s304 = sand.u32 %s35, 1
        %s305 = scalar_lea.sflag [#allocation3], %s304
        %s306 = sand.u32 %s35, 1
        %s307 = smul.addr %s306, 8
        %s308 = scalar_lea.vmem [#allocation2], %s307
        %p309 = pneg %p48
        %p310 = pneg %p45
        %s311 = sand.u32 %s27, 1
        %s312 = scalar_lea.sflag [#allocation6], %s311
        %s313 = sand.u32 %s61, 1
        %s314 = smul.addr %s313, 8
        %s315 = scalar_lea.vmem [#allocation5], %s314
        %p316 = pneg %p74
        %p317 = pneg %p71
        %p318 = pneg %p95
        %p319 = pneg %p92
        %p320 = pneg %p116
        %p321 = pneg %p113
        %p322 = pneg %p137
        %p323 = pneg %p134
        %p324 = pneg %p158
        %p325 = pneg %p155
        %p326 = pneg %p184
        %p327 = pneg %p181
        %s328 = sand.u32 %s171, 1
        %s329 = scalar_lea.sflag [#allocation4], %s328
        %s330 = sand.u32 %s171, 1
        %s331 = smul.addr %s330, 8
        %s332 = scalar_lea.vmem [#allocation10], %s331
        %v333 = vld [vmem:[%s282] sm:$0xff]
        %v334 = vld [vmem:[#allocation7] sm:$0xff]
        %v335 = vld [vmem:[#allocation7 + $0x8] sm:$0xff]
        %v336 = vld [vmem:[#allocation7 + $0x10] sm:$0xff]
        %v337 = vld [vmem:[#allocation7 + $0x18] sm:$0xff]
        %v338 = vld [vmem:[%s3] sm:$0x1]
        %v340 = vlaneseq
        %v341 = vshrl.u32 %v340, 7
        %v342 = vsub.s32 0, %v341
        %v343 = vrot.slane %v338, %v342
        %vm345 = vcmask 261120
        %v347 = vsel %vm345, %v333, 0
        %349 = vmatprep.subr.mxu0 0.0
        %350 = vmatpush1.msra.mxu0 0.0
        %351 = vmatprep.subr.mxu0 0.0
        %352 = vmatpush1.msra.mxu0 0.0
        %353 = vmatprep.subr.mxu0 0.0
        %354 = vmatpush1.msra.mxu0 0.0
        %355 = vmatprep.subr.mxu0 0.0
        %356 = vmatpush1.msra.mxu0 0.0
        %357 = vmatprep.subr.mxu0 0.0
        %358 = vmatpush1.msra.mxu0 0.0
        %359 = vmatprep.subr.mxu0 0.0
        %360 = vmatpush1.msra.mxu0 0.0
        %361 = vmatprep.subr.mxu0 0.0
        %362 = vmatpush1.msra.mxu0 0.0
        %363 = vmatprep.subr.mxu0 0.0
        %364 = vmatpush1.msra.mxu0 0.0
        %365 = vmatprep.subr.mxu0 0.0
        %366 = vmatpush1.msra.mxu0 0.0
        %367 = vmatprep.subr.mxu0 0.0
        %368 = vmatpush1.msra.mxu0 0.0
        %369 = vmatprep.subr.mxu0 0.0
        %370 = vmatpush1.msra.mxu0 0.0
        %371 = vmatprep.subr.mxu0 0.0
        %372 = vmatpush1.msra.mxu0 0.0
        %373 = vmatprep.subr.mxu0 0.0
        %374 = vmatpush1.msra.mxu0 %v337
        %375 = vmatprep.subr.mxu0 0.0
        %376 = vmatpush1.msra.mxu0 %v336
        %377 = vmatprep.subr.mxu0 0.0
        %378 = vmatpush1.msra.mxu0 %v335
        %379 = vmatprep.subr.mxu0 0.0
        %380 = vmatpush1.msra.mxu0 %v334
        %381 = vmatprep.subr.mxu0 0.0
        %382 = vmatpush2.msra.mxu0 0.0
        %383 = vmatprep.subr.mxu0 0.0
        %384 = vmatpush2.msra.mxu0 0.0
        %385 = vmatprep.subr.mxu0 0.0
        %386 = vmatpush2.msra.mxu0 0.0
        %387 = vmatprep.subr.mxu0 0.0
        %388 = vmatpush2.msra.mxu0 0.0
        %389 = vmatprep.subr.mxu0 0.0
        %390 = vmatpush2.msra.mxu0 0.0
        %391 = vmatprep.subr.mxu0 0.0
        %392 = vmatpush2.msra.mxu0 0.0
        %393 = vmatprep.subr.mxu0 0.0
        %394 = vmatpush2.msra.mxu0 0.0
        %395 = vmatprep.subr.mxu0 0.0
        %396 = vmatpush2.msra.mxu0 0.0
        %397 = vmatprep.subr.mxu0 0.0
        %398 = vmatpush2.msra.mxu0 0.0
        %399 = vmatprep.subr.mxu0 0.0
        %400 = vmatpush2.msra.mxu0 0.0
        %401 = vmatprep.subr.mxu0 0.0
        %402 = vmatpush2.msra.mxu0 0.0
        %403 = vmatprep.subr.mxu0 0.0
        %404 = vmatpush2.msra.mxu0 0.0
        %405 = vmatprep.subr.mxu0 0.0
        %406 = vmatpush2.msra.mxu0 0.0
        %407 = vmatprep.subr.mxu0 0.0
        %408 = vmatpush2.msra.mxu0 0.0
        %409 = vmatprep.subr.mxu0 0.0
        %410 = vmatpush2.msra.mxu0 0.0
        %411 = vmatprep.subr.mxu0 0.0
        %412 = vmatpush2.msra.mxu0 0.0
        %413 = vmatprep.mubr.f32.mxu0 0.0
        %414 = vmatmul.mubr.f32.gmra.mxu0 %v347
        %v415 = vpop.f32.mrf.mxu0
        %v416 = vadd.f32 %v343, %v415
        %v417 = vpop.f32.mrf.mxu0
        %418 = vdwg.mxu0
        %v419 = vmul.f32 %v416, 0.35355338
        %v420 = vld [vmem:[%s291] sm:$0xff]
        %v421 = vld [vmem:[#allocation8] sm:$0xff]
        %v422 = vld [vmem:[#allocation8 + $0x8] sm:$0xff]
        %v423 = vld [vmem:[#allocation8 + $0x10] sm:$0xff]
        %v424 = vld [vmem:[#allocation8 + $0x18] sm:$0xff]
        %426 = vrot.lane.b32.xlu0 %v416, 96
        %v427 = vpop.permute.xlu0 %426
        %vm428 = vcmask 64512
        %v430 = vsel %vm428, %v419, 0
        %v432 = vsel %vm428, %v427, 0
        %434 = vmatprep.subr.mxu0 0.0
        %435 = vmatpush1.xpose.msra.mxu0 0.0
        %436 = vmatprep.subr.mxu0 0.0
        %437 = vmatpush1.xpose.msra.mxu0 0.0
        %438 = vmatprep.subr.mxu0 0.0
        %439 = vmatpush1.xpose.msra.mxu0 0.0
        %440 = vmatprep.subr.mxu0 0.0
        %441 = vmatpush1.xpose.msra.mxu0 0.0
        %442 = vmatprep.subr.mxu0 0.0
        %443 = vmatpush1.xpose.msra.mxu0 0.0
        %444 = vmatprep.subr.mxu0 0.0
        %445 = vmatpush1.xpose.msra.mxu0 0.0
        %446 = vmatprep.subr.mxu0 0.0
        %447 = vmatpush1.xpose.msra.mxu0 0.0
        %448 = vmatprep.subr.mxu0 0.0
        %449 = vmatpush1.xpose.msra.mxu0 0.0
        %450 = vmatprep.subr.mxu0 0.0
        %451 = vmatpush1.xpose.msra.mxu0 0.0
        %452 = vmatprep.subr.mxu0 0.0
        %453 = vmatpush1.xpose.msra.mxu0 0.0
        %454 = vmatprep.subr.mxu0 0.0
        %455 = vmatpush1.xpose.msra.mxu0 0.0
        %456 = vmatprep.subr.mxu0 0.0
        %457 = vmatpush1.xpose.msra.mxu0 0.0
        %458 = vmatprep.subr.mxu0 0.0
        %459 = vmatpush1.xpose.msra.mxu0 0.0
        %460 = vmatprep.subr.mxu0 0.0
        %461 = vmatpush1.xpose.msra.mxu0 0.0
        %462 = vmatprep.subr.mxu0 0.0
        %463 = vmatpush1.xpose.msra.mxu0 0.0
        %464 = vmatprep.subr.mxu0 0.0
        %465 = vmatpush1.xpose.msra.mxu0 %v432
        %466 = vmatprep.subr.mxu0 0.0
        %467 = vmatpush2.xpose.msra.mxu0 0.0
        %468 = vmatprep.subr.mxu0 0.0
        %469 = vmatpush2.xpose.msra.mxu0 0.0
        %470 = vmatprep.subr.mxu0 0.0
        %471 = vmatpush2.xpose.msra.mxu0 0.0
        %472 = vmatprep.subr.mxu0 0.0
        %473 = vmatpush2.xpose.msra.mxu0 0.0
        %474 = vmatprep.subr.mxu0 0.0
        %475 = vmatpush2.xpose.msra.mxu0 0.0
        %476 = vmatprep.subr.mxu0 0.0
        %477 = vmatpush2.xpose.msra.mxu0 0.0
        %478 = vmatprep.subr.mxu0 0.0
        %479 = vmatpush2.xpose.msra.mxu0 0.0
        %480 = vmatprep.subr.mxu0 0.0
        %481 = vmatpush2.xpose.msra.mxu0 0.0
        %482 = vmatprep.subr.mxu0 0.0
        %483 = vmatpush2.xpose.msra.mxu0 0.0
        %484 = vmatprep.subr.mxu0 0.0
        %485 = vmatpush2.xpose.msra.mxu0 0.0
        %486 = vmatprep.subr.mxu0 0.0
        %487 = vmatpush2.xpose.msra.mxu0 0.0
        %488 = vmatprep.subr.mxu0 0.0
        %489 = vmatpush2.xpose.msra.mxu0 0.0
        %490 = vmatprep.subr.mxu0 0.0
        %491 = vmatpush2.xpose.msra.mxu0 0.0
        %492 = vmatprep.subr.mxu0 0.0
        %493 = vmatpush2.xpose.msra.mxu0 0.0
        %494 = vmatprep.subr.mxu0 0.0
        %495 = vmatpush2.xpose.msra.mxu0 0.0
        %496 = vmatprep.subr.mxu0 0.0
        %497 = vmatpush2.xpose.msra.mxu0 0.0
        %498 = vmatprep.mubr.f32.mxu0 0.0
        %499 = vmatmul.mubr.f32.gmra.mxu0 %v430
        %v500 = vpop.f32.mrf.mxu0
        %v501 = vadd.f32 %v420, %v500
        %v502 = vpop.f32.mrf.mxu0
        %503 = vdwg.mxu0
        %v504 = vsel %vm428, %v501, -inf
        %505 = vmax.xlane.f32.xlu0 %v504
        %v506 = vpop.xlane.xlu0 %505
        %v507 = vsub.f32 %v501, %v506
        %v508 = vmul.f32 %v507, 1.442695
        %v509 = vpow.pop %v508
        %v510 = vsel %vm428, %v509, 0.0
        %511 = vadd.xlane.f32.xlu0 %v510
        %v512 = vpop.xlane.xlu0 %511
        %v513 = vrcp.pop %v512
        %v514 = vmul.f32 %v509, %v513
        %515 = vrot.lane.b32.xlu0 %v416, 64
        %v516 = vpop.permute.xlu0 %515
        %v519 = vsel %vm428, %v514, 0
        %521 = vmatprep.subr.mxu0 0.0
        %522 = vmatpush1.msra.mxu0 0.0
        %523 = vmatprep.subr.mxu0 0.0
        %524 = vmatpush1.msra.mxu0 0.0
        %525 = vmatprep.subr.mxu0 0.0
        %526 = vmatpush1.msra.mxu0 0.0
        %527 = vmatprep.subr.mxu0 0.0
        %528 = vmatpush1.msra.mxu0 0.0
        %529 = vmatprep.subr.mxu0 0.0
        %530 = vmatpush1.msra.mxu0 0.0
        %531 = vmatprep.subr.mxu0 0.0
        %532 = vmatpush1.msra.mxu0 0.0
        %533 = vmatprep.subr.mxu0 0.0
        %534 = vmatpush1.msra.mxu0 0.0
        %535 = vmatprep.subr.mxu0 0.0
        %536 = vmatpush1.msra.mxu0 0.0
        %537 = vmatprep.subr.mxu0 0.0
        %538 = vmatpush1.msra.mxu0 0.0
        %539 = vmatprep.subr.mxu0 0.0
        %540 = vmatpush1.msra.mxu0 0.0
        %541 = vmatprep.subr.mxu0 0.0
        %542 = vmatpush1.msra.mxu0 0.0
        %543 = vmatprep.subr.mxu0 0.0
        %544 = vmatpush1.msra.mxu0 0.0
        %545 = vmatprep.subr.mxu0 0.0
        %546 = vmatpush1.msra.mxu0 0.0
        %547 = vmatprep.subr.mxu0 0.0
        %548 = vmatpush1.msra.mxu0 0.0
        %549 = vmatprep.subr.mxu0 0.0
        %550 = vmatpush1.msra.mxu0 0.0
        %551 = vmatprep.subr.mxu0 0.0
        %552 = vmatpush1.msra.mxu0 %v516
        %553 = vmatprep.subr.mxu0 0.0
        %554 = vmatpush2.msra.mxu0 0.0
        %555 = vmatprep.subr.mxu0 0.0
        %556 = vmatpush2.msra.mxu0 0.0
        %557 = vmatprep.subr.mxu0 0.0
        %558 = vmatpush2.msra.mxu0 0.0
        %559 = vmatprep.subr.mxu0 0.0
        %560 = vmatpush2.msra.mxu0 0.0
        %561 = vmatprep.subr.mxu0 0.0
        %562 = vmatpush2.msra.mxu0 0.0
        %563 = vmatprep.subr.mxu0 0.0
        %564 = vmatpush2.msra.mxu0 0.0
        %565 = vmatprep.subr.mxu0 0.0
        %566 = vmatpush2.msra.mxu0 0.0
        %567 = vmatprep.subr.mxu0 0.0
        %568 = vmatpush2.msra.mxu0 0.0
        %569 = vmatprep.subr.mxu0 0.0
        %570 = vmatpush2.msra.mxu0 0.0
        %571 = vmatprep.subr.mxu0 0.0
        %572 = vmatpush2.msra.mxu0 0.0
        %573 = vmatprep.subr.mxu0 0.0
        %574 = vmatpush2.msra.mxu0 0.0
        %575 = vmatprep.subr.mxu0 0.0
        %576 = vmatpush2.msra.mxu0 0.0
        %577 = vmatprep.subr.mxu0 0.0
        %578 = vmatpush2.msra.mxu0 0.0
        %579 = vmatprep.subr.mxu0 0.0
        %580 = vmatpush2.msra.mxu0 0.0
        %581 = vmatprep.subr.mxu0 0.0
        %582 = vmatpush2.msra.mxu0 0.0
        %583 = vmatprep.subr.mxu0 0.0
        %584 = vmatpush2.msra.mxu0 0.0
        %585 = vmatprep.mubr.f32.mxu0 0.0
        %586 = vmatmul.mubr.f32.gmra.mxu0 %v519
        %v587 = vpop.f32.mrf.mxu0
        %v588 = vadd.f32 0.0, %v587
        %v589 = vpop.f32.mrf.mxu0
        %590 = vdwg.mxu0
        %591 = vrot.lane.b32.xlu0 %v419, 120
        %v592 = vpop.permute.xlu0 %591
        %593 = vrot.lane.b32.xlu0 %v416, 88
        %v594 = vpop.permute.xlu0 %593
        %v595 = vsel %vm428, %v592, 0
        %v597 = vsel %vm428, %v594, 0
        %599 = vmatprep.subr.mxu0 0.0
        %600 = vmatpush1.xpose.msra.mxu0 0.0
        %601 = vmatprep.subr.mxu0 0.0
        %602 = vmatpush1.xpose.msra.mxu0 0.0
        %603 = vmatprep.subr.mxu0 0.0
        %604 = vmatpush1.xpose.msra.mxu0 0.0
        %605 = vmatprep.subr.mxu0 0.0
        %606 = vmatpush1.xpose.msra.mxu0 0.0
        %607 = vmatprep.subr.mxu0 0.0
        %608 = vmatpush1.xpose.msra.mxu0 0.0
        %609 = vmatprep.subr.mxu0 0.0
        %610 = vmatpush1.xpose.msra.mxu0 0.0
        %611 = vmatprep.subr.mxu0 0.0
        %612 = vmatpush1.xpose.msra.mxu0 0.0
        %613 = vmatprep.subr.mxu0 0.0
        %614 = vmatpush1.xpose.msra.mxu0 0.0
        %615 = vmatprep.subr.mxu0 0.0
        %616 = vmatpush1.xpose.msra.mxu0 0.0
        %617 = vmatprep.subr.mxu0 0.0
        %618 = vmatpush1.xpose.msra.mxu0 0.0
        %619 = vmatprep.subr.mxu0 0.0
        %620 = vmatpush1.xpose.msra.mxu0 0.0
        %621 = vmatprep.subr.mxu0 0.0
        %622 = vmatpush1.xpose.msra.mxu0 0.0
        %623 = vmatprep.subr.mxu0 0.0
        %624 = vmatpush1.xpose.msra.mxu0 0.0
        %625 = vmatprep.subr.mxu0 0.0
        %626 = vmatpush1.xpose.msra.mxu0 0.0
        %627 = vmatprep.subr.mxu0 0.0
        %628 = vmatpush1.xpose.msra.mxu0 0.0
        %629 = vmatprep.subr.mxu0 0.0
        %630 = vmatpush1.xpose.msra.mxu0 %v597
        %631 = vmatprep.subr.mxu0 0.0
        %632 = vmatpush2.xpose.msra.mxu0 0.0
        %633 = vmatprep.subr.mxu0 0.0
        %634 = vmatpush2.xpose.msra.mxu0 0.0
        %635 = vmatprep.subr.mxu0 0.0
        %636 = vmatpush2.xpose.msra.mxu0 0.0
        %637 = vmatprep.subr.mxu0 0.0
        %638 = vmatpush2.xpose.msra.mxu0 0.0
        %639 = vmatprep.subr.mxu0 0.0
        %640 = vmatpush2.xpose.msra.mxu0 0.0
        %641 = vmatprep.subr.mxu0 0.0
        %642 = vmatpush2.xpose.msra.mxu0 0.0
        %643 = vmatprep.subr.mxu0 0.0
        %644 = vmatpush2.xpose.msra.mxu0 0.0
        %645 = vmatprep.subr.mxu0 0.0
        %646 = vmatpush2.xpose.msra.mxu0 0.0
        %647 = vmatprep.subr.mxu0 0.0
        %648 = vmatpush2.xpose.msra.mxu0 0.0
        %649 = vmatprep.subr.mxu0 0.0
        %650 = vmatpush2.xpose.msra.mxu0 0.0
        %651 = vmatprep.subr.mxu0 0.0
        %652 = vmatpush2.xpose.msra.mxu0 0.0
        %653 = vmatprep.subr.mxu0 0.0
        %654 = vmatpush2.xpose.msra.mxu0 0.0
        %655 = vmatprep.subr.mxu0 0.0
        %656 = vmatpush2.xpose.msra.mxu0 0.0
        %657 = vmatprep.subr.mxu0 0.0
        %658 = vmatpush2.xpose.msra.mxu0 0.0
        %659 = vmatprep.subr.mxu0 0.0
        %660 = vmatpush2.xpose.msra.mxu0 0.0
        %661 = vmatprep.subr.mxu0 0.0
        %662 = vmatpush2.xpose.msra.mxu0 0.0
        %663 = vmatprep.mubr.f32.mxu0 0.0
        %664 = vmatmul.mubr.f32.gmra.mxu0 %v595
        %v665 = vpop.f32.mrf.mxu0
        %v666 = vadd.f32 %v420, %v665
        %v667 = vpop.f32.mrf.mxu0
        %668 = vdwg.mxu0
        %v669 = vsel %vm428, %v666, -inf
        %670 = vmax.xlane.f32.xlu0 %v669
        %v671 = vpop.xlane.xlu0 %670
        %v672 = vsub.f32 %v666, %v671
        %v673 = vmul.f32 %v672, 1.442695
        %v674 = vpow.pop %v673
        %v675 = vsel %vm428, %v674, 0.0
        %676 = vadd.xlane.f32.xlu0 %v675
        %v677 = vpop.xlane.xlu0 %676
        %v678 = vrcp.pop %v677
        %v679 = vmul.f32 %v674, %v678
        %680 = vrot.lane.b32.xlu0 %v416, 56
        %v681 = vpop.permute.xlu0 %680
        %v684 = vsel %vm428, %v679, 0
        %686 = vmatprep.subr.mxu0 0.0
        %687 = vmatpush1.msra.mxu0 0.0
        %688 = vmatprep.subr.mxu0 0.0
        %689 = vmatpush1.msra.mxu0 0.0
        %690 = vmatprep.subr.mxu0 0.0
        %691 = vmatpush1.msra.mxu0 0.0
        %692 = vmatprep.subr.mxu0 0.0
        %693 = vmatpush1.msra.mxu0 0.0
        %694 = vmatprep.subr.mxu0 0.0
        %695 = vmatpush1.msra.mxu0 0.0
        %696 = vmatprep.subr.mxu0 0.0
        %697 = vmatpush1.msra.mxu0 0.0
        %698 = vmatprep.subr.mxu0 0.0
        %699 = vmatpush1.msra.mxu0 0.0
        %700 = vmatprep.subr.mxu0 0.0
        %701 = vmatpush1.msra.mxu0 0.0
        %702 = vmatprep.subr.mxu0 0.0
        %703 = vmatpush1.msra.mxu0 0.0
        %704 = vmatprep.subr.mxu0 0.0
        %705 = vmatpush1.msra.mxu0 0.0
        %706 = vmatprep.subr.mxu0 0.0
        %707 = vmatpush1.msra.mxu0 0.0
        %708 = vmatprep.subr.mxu0 0.0
        %709 = vmatpush1.msra.mxu0 0.0
        %710 = vmatprep.subr.mxu0 0.0
        %711 = vmatpush1.msra.mxu0 0.0
        %712 = vmatprep.subr.mxu0 0.0
        %713 = vmatpush1.msra.mxu0 0.0
        %714 = vmatprep.subr.mxu0 0.0
        %715 = vmatpush1.msra.mxu0 0.0
        %716 = vmatprep.subr.mxu0 0.0
        %717 = vmatpush1.msra.mxu0 %v681
        %718 = vmatprep.subr.mxu0 0.0
        %719 = vmatpush2.msra.mxu0 0.0
        %720 = vmatprep.subr.mxu0 0.0
        %721 = vmatpush2.msra.mxu0 0.0
        %722 = vmatprep.subr.mxu0 0.0
        %723 = vmatpush2.msra.mxu0 0.0
        %724 = vmatprep.subr.mxu0 0.0
        %725 = vmatpush2.msra.mxu0 0.0
        %726 = vmatprep.subr.mxu0 0.0
        %727 = vmatpush2.msra.mxu0 0.0
        %728 = vmatprep.subr.mxu0 0.0
        %729 = vmatpush2.msra.mxu0 0.0
        %730 = vmatprep.subr.mxu0 0.0
        %731 = vmatpush2.msra.mxu0 0.0
        %732 = vmatprep.subr.mxu0 0.0
        %733 = vmatpush2.msra.mxu0 0.0
        %734 = vmatprep.subr.mxu0 0.0
        %735 = vmatpush2.msra.mxu0 0.0
        %736 = vmatprep.subr.mxu0 0.0
        %737 = vmatpush2.msra.mxu0 0.0
        %738 = vmatprep.subr.mxu0 0.0
        %739 = vmatpush2.msra.mxu0 0.0
        %740 = vmatprep.subr.mxu0 0.0
        %741 = vmatpush2.msra.mxu0 0.0
        %742 = vmatprep.subr.mxu0 0.0
        %743 = vmatpush2.msra.mxu0 0.0
        %744 = vmatprep.subr.mxu0 0.0
        %745 = vmatpush2.msra.mxu0 0.0
        %746 = vmatprep.subr.mxu0 0.0
        %747 = vmatpush2.msra.mxu0 0.0
        %748 = vmatprep.subr.mxu0 0.0
        %749 = vmatpush2.msra.mxu0 0.0
        %750 = vmatprep.mubr.f32.mxu0 0.0
        %751 = vmatmul.mubr.f32.gmra.mxu0 %v684
        %v752 = vpop.f32.mrf.mxu0
        %v753 = vadd.f32 0.0, %v752
        %v754 = vpop.f32.mrf.mxu0
        %755 = vdwg.mxu0
        %v757 = vsel %vm428, %v753, 0
        %759 = vmatprep.subr.mxu0 0.0
        %760 = vmatpush1.msra.mxu0 0.0
        %761 = vmatprep.subr.mxu0 0.0
        %762 = vmatpush1.msra.mxu0 0.0
        %763 = vmatprep.subr.mxu0 0.0
        %764 = vmatpush1.msra.mxu0 0.0
        %765 = vmatprep.subr.mxu0 0.0
        %766 = vmatpush1.msra.mxu0 0.0
        %767 = vmatprep.subr.mxu0 0.0
        %768 = vmatpush1.msra.mxu0 0.0
        %769 = vmatprep.subr.mxu0 0.0
        %770 = vmatpush1.msra.mxu0 0.0
        %771 = vmatprep.subr.mxu0 0.0
        %772 = vmatpush1.msra.mxu0 0.0
        %773 = vmatprep.subr.mxu0 0.0
        %774 = vmatpush1.msra.mxu0 0.0
        %775 = vmatprep.subr.mxu0 0.0
        %776 = vmatpush1.msra.mxu0 0.0
        %777 = vmatprep.subr.mxu0 0.0
        %778 = vmatpush1.msra.mxu0 0.0
        %779 = vmatprep.subr.mxu0 0.0
        %780 = vmatpush1.msra.mxu0 0.0
        %781 = vmatprep.subr.mxu0 0.0
        %782 = vmatpush1.msra.mxu0 0.0
        %783 = vmatprep.subr.mxu0 0.0
        %784 = vmatpush1.msra.mxu0 0.0
        %785 = vmatprep.subr.mxu0 0.0
        %786 = vmatpush1.msra.mxu0 0.0
        %787 = vmatprep.subr.mxu0 0.0
        %788 = vmatpush1.msra.mxu0 0.0
        %789 = vmatprep.subr.mxu0 0.0
        %790 = vmatpush1.msra.mxu0 %v422
        %791 = vmatprep.subr.mxu0 0.0
        %792 = vmatpush2.msra.mxu0 0.0
        %793 = vmatprep.subr.mxu0 0.0
        %794 = vmatpush2.msra.mxu0 0.0
        %795 = vmatprep.subr.mxu0 0.0
        %796 = vmatpush2.msra.mxu0 0.0
        %797 = vmatprep.subr.mxu0 0.0
        %798 = vmatpush2.msra.mxu0 0.0
        %799 = vmatprep.subr.mxu0 0.0
        %800 = vmatpush2.msra.mxu0 0.0
        %801 = vmatprep.subr.mxu0 0.0
        %802 = vmatpush2.msra.mxu0 0.0
        %803 = vmatprep.subr.mxu0 0.0
        %804 = vmatpush2.msra.mxu0 0.0
        %805 = vmatprep.subr.mxu0 0.0
        %806 = vmatpush2.msra.mxu0 0.0
        %807 = vmatprep.subr.mxu0 0.0
        %808 = vmatpush2.msra.mxu0 0.0
        %809 = vmatprep.subr.mxu0 0.0
        %810 = vmatpush2.msra.mxu0 0.0
        %811 = vmatprep.subr.mxu0 0.0
        %812 = vmatpush2.msra.mxu0 0.0
        %813 = vmatprep.subr.mxu0 0.0
        %814 = vmatpush2.msra.mxu0 0.0
        %815 = vmatprep.subr.mxu0 0.0
        %816 = vmatpush2.msra.mxu0 0.0
        %817 = vmatprep.subr.mxu0 0.0
        %818 = vmatpush2.msra.mxu0 0.0
        %819 = vmatprep.subr.mxu0 0.0
        %820 = vmatpush2.msra.mxu0 0.0
        %821 = vmatprep.subr.mxu0 0.0
        %822 = vmatpush2.msra.mxu0 0.0
        %823 = vmatprep.mubr.f32.mxu0 0.0
        %824 = vmatmul.mubr.f32.gmra.mxu0 %v757
        %v825 = vpop.f32.mrf.mxu0
        %v826 = vadd.f32 0.0, %v825
        %v827 = vpop.f32.mrf.mxu0
        %828 = vdwg.mxu0
        %v830 = vsel %vm428, %v588, 0
        %832 = vmatprep.subr.mxu0 0.0
        %833 = vmatpush1.msra.mxu0 0.0
        %834 = vmatprep.subr.mxu0 0.0
        %835 = vmatpush1.msra.mxu0 0.0
        %836 = vmatprep.subr.mxu0 0.0
        %837 = vmatpush1.msra.mxu0 0.0
        %838 = vmatprep.subr.mxu0 0.0
        %839 = vmatpush1.msra.mxu0 0.0
        %840 = vmatprep.subr.mxu0 0.0
        %841 = vmatpush1.msra.mxu0 0.0
        %842 = vmatprep.subr.mxu0 0.0
        %843 = vmatpush1.msra.mxu0 0.0
        %844 = vmatprep.subr.mxu0 0.0
        %845 = vmatpush1.msra.mxu0 0.0
        %846 = vmatprep.subr.mxu0 0.0
        %847 = vmatpush1.msra.mxu0 0.0
        %848 = vmatprep.subr.mxu0 0.0
        %849 = vmatpush1.msra.mxu0 0.0
        %850 = vmatprep.subr.mxu0 0.0
        %851 = vmatpush1.msra.mxu0 0.0
        %852 = vmatprep.subr.mxu0 0.0
        %853 = vmatpush1.msra.mxu0 0.0
        %854 = vmatprep.subr.mxu0 0.0
        %855 = vmatpush1.msra.mxu0 0.0
        %856 = vmatprep.subr.mxu0 0.0
        %857 = vmatpush1.msra.mxu0 0.0
        %858 = vmatprep.subr.mxu0 0.0
        %859 = vmatpush1.msra.mxu0 0.0
        %860 = vmatprep.subr.mxu0 0.0
        %861 = vmatpush1.msra.mxu0 0.0
        %862 = vmatprep.subr.mxu0 0.0
        %863 = vmatpush1.msra.mxu0 %v421
        %864 = vmatprep.subr.mxu0 0.0
        %865 = vmatpush2.msra.mxu0 0.0
        %866 = vmatprep.subr.mxu0 0.0
        %867 = vmatpush2.msra.mxu0 0.0
        %868 = vmatprep.subr.mxu0 0.0
        %869 = vmatpush2.msra.mxu0 0.0
        %870 = vmatprep.subr.mxu0 0.0
        %871 = vmatpush2.msra.mxu0 0.0
        %872 = vmatprep.subr.mxu0 0.0
        %873 = vmatpush2.msra.mxu0 0.0
        %874 = vmatprep.subr.mxu0 0.0
        %875 = vmatpush2.msra.mxu0 0.0
        %876 = vmatprep.subr.mxu0 0.0
        %877 = vmatpush2.msra.mxu0 0.0
        %878 = vmatprep.subr.mxu0 0.0
        %879 = vmatpush2.msra.mxu0 0.0
        %880 = vmatprep.subr.mxu0 0.0
        %881 = vmatpush2.msra.mxu0 0.0
        %882 = vmatprep.subr.mxu0 0.0
        %883 = vmatpush2.msra.mxu0 0.0
        %884 = vmatprep.subr.mxu0 0.0
        %885 = vmatpush2.msra.mxu0 0.0
        %886 = vmatprep.subr.mxu0 0.0
        %887 = vmatpush2.msra.mxu0 0.0
        %888 = vmatprep.subr.mxu0 0.0
        %889 = vmatpush2.msra.mxu0 0.0
        %890 = vmatprep.subr.mxu0 0.0
        %891 = vmatpush2.msra.mxu0 0.0
        %892 = vmatprep.subr.mxu0 0.0
        %893 = vmatpush2.msra.mxu0 0.0
        %894 = vmatprep.subr.mxu0 0.0
        %895 = vmatpush2.msra.mxu0 0.0
        %896 = vmatprep.mubr.f32.mxu0 0.0
        %897 = vmatmul.mubr.f32.gmra.mxu0 %v830
        %v898 = vpop.f32.mrf.mxu0
        %v899 = vadd.f32 %v826, %v898
        %v900 = vpop.f32.mrf.mxu0
        %901 = vdwg.mxu0
        %902 = vrot.lane.b32.xlu0 %v419, 112
        %v903 = vpop.permute.xlu0 %902
        %904 = vrot.lane.b32.xlu0 %v416, 80
        %v905 = vpop.permute.xlu0 %904
        %v906 = vsel %vm428, %v903, 0
        %v908 = vsel %vm428, %v905, 0
        %910 = vmatprep.subr.mxu0 0.0
        %911 = vmatpush1.xpose.msra.mxu0 0.0
        %912 = vmatprep.subr.mxu0 0.0
        %913 = vmatpush1.xpose.msra.mxu0 0.0
        %914 = vmatprep.subr.mxu0 0.0
        %915 = vmatpush1.xpose.msra.mxu0 0.0
        %916 = vmatprep.subr.mxu0 0.0
        %917 = vmatpush1.xpose.msra.mxu0 0.0
        %918 = vmatprep.subr.mxu0 0.0
        %919 = vmatpush1.xpose.msra.mxu0 0.0
        %920 = vmatprep.subr.mxu0 0.0
        %921 = vmatpush1.xpose.msra.mxu0 0.0
        %922 = vmatprep.subr.mxu0 0.0
        %923 = vmatpush1.xpose.msra.mxu0 0.0
        %924 = vmatprep.subr.mxu0 0.0
        %925 = vmatpush1.xpose.msra.mxu0 0.0
        %926 = vmatprep.subr.mxu0 0.0
        %927 = vmatpush1.xpose.msra.mxu0 0.0
        %928 = vmatprep.subr.mxu0 0.0
        %929 = vmatpush1.xpose.msra.mxu0 0.0
        %930 = vmatprep.subr.mxu0 0.0
        %931 = vmatpush1.xpose.msra.mxu0 0.0
        %932 = vmatprep.subr.mxu0 0.0
        %933 = vmatpush1.xpose.msra.mxu0 0.0
        %934 = vmatprep.subr.mxu0 0.0
        %935 = vmatpush1.xpose.msra.mxu0 0.0
        %936 = vmatprep.subr.mxu0 0.0
        %937 = vmatpush1.xpose.msra.mxu0 0.0
        %938 = vmatprep.subr.mxu0 0.0
        %939 = vmatpush1.xpose.msra.mxu0 0.0
        %940 = vmatprep.subr.mxu0 0.0
        %941 = vmatpush1.xpose.msra.mxu0 %v908
        %942 = vmatprep.subr.mxu0 0.0
        %943 = vmatpush2.xpose.msra.mxu0 0.0
        %944 = vmatprep.subr.mxu0 0.0
        %945 = vmatpush2.xpose.msra.mxu0 0.0
        %946 = vmatprep.subr.mxu0 0.0
        %947 = vmatpush2.xpose.msra.mxu0 0.0
        %948 = vmatprep.subr.mxu0 0.0
        %949 = vmatpush2.xpose.msra.mxu0 0.0
        %950 = vmatprep.subr.mxu0 0.0
        %951 = vmatpush2.xpose.msra.mxu0 0.0
        %952 = vmatprep.subr.mxu0 0.0
        %953 = vmatpush2.xpose.msra.mxu0 0.0
        %954 = vmatprep.subr.mxu0 0.0
        %955 = vmatpush2.xpose.msra.mxu0 0.0
        %956 = vmatprep.subr.mxu0 0.0
        %957 = vmatpush2.xpose.msra.mxu0 0.0
        %958 = vmatprep.subr.mxu0 0.0
        %959 = vmatpush2.xpose.msra.mxu0 0.0
        %960 = vmatprep.subr.mxu0 0.0
        %961 = vmatpush2.xpose.msra.mxu0 0.0
        %962 = vmatprep.subr.mxu0 0.0
        %963 = vmatpush2.xpose.msra.mxu0 0.0
        %964 = vmatprep.subr.mxu0 0.0
        %965 = vmatpush2.xpose.msra.mxu0 0.0
        %966 = vmatprep.subr.mxu0 0.0
        %967 = vmatpush2.xpose.msra.mxu0 0.0
        %968 = vmatprep.subr.mxu0 0.0
        %969 = vmatpush2.xpose.msra.mxu0 0.0
        %970 = vmatprep.subr.mxu0 0.0
        %971 = vmatpush2.xpose.msra.mxu0 0.0
        %972 = vmatprep.subr.mxu0 0.0
        %973 = vmatpush2.xpose.msra.mxu0 0.0
        %974 = vmatprep.mubr.f32.mxu0 0.0
        %975 = vmatmul.mubr.f32.gmra.mxu0 %v906
        %v976 = vpop.f32.mrf.mxu0
        %v977 = vadd.f32 %v420, %v976
        %v978 = vpop.f32.mrf.mxu0
        %979 = vdwg.mxu0
        %v980 = vsel %vm428, %v977, -inf
        %981 = vmax.xlane.f32.xlu0 %v980
        %v982 = vpop.xlane.xlu0 %981
        %v983 = vsub.f32 %v977, %v982
        %v984 = vmul.f32 %v983, 1.442695
        %v985 = vpow.pop %v984
        %v986 = vsel %vm428, %v985, 0.0
        %987 = vadd.xlane.f32.xlu0 %v986
        %v988 = vpop.xlane.xlu0 %987
        %v989 = vrcp.pop %v988
        %v990 = vmul.f32 %v985, %v989
        %991 = vrot.lane.b32.xlu0 %v416, 48
        %v992 = vpop.permute.xlu0 %991
        %v995 = vsel %vm428, %v990, 0
        %997 = vmatprep.subr.mxu0 0.0
        %998 = vmatpush1.msra.mxu0 0.0
        %999 = vmatprep.subr.mxu0 0.0
        %1000 = vmatpush1.msra.mxu0 0.0
        %1001 = vmatprep.subr.mxu0 0.0
        %1002 = vmatpush1.msra.mxu0 0.0
        %1003 = vmatprep.subr.mxu0 0.0
        %1004 = vmatpush1.msra.mxu0 0.0
        %1005 = vmatprep.subr.mxu0 0.0
        %1006 = vmatpush1.msra.mxu0 0.0
        %1007 = vmatprep.subr.mxu0 0.0
        %1008 = vmatpush1.msra.mxu0 0.0
        %1009 = vmatprep.subr.mxu0 0.0
        %1010 = vmatpush1.msra.mxu0 0.0
        %1011 = vmatprep.subr.mxu0 0.0
        %1012 = vmatpush1.msra.mxu0 0.0
        %1013 = vmatprep.subr.mxu0 0.0
        %1014 = vmatpush1.msra.mxu0 0.0
        %1015 = vmatprep.subr.mxu0 0.0
        %1016 = vmatpush1.msra.mxu0 0.0
        %1017 = vmatprep.subr.mxu0 0.0
        %1018 = vmatpush1.msra.mxu0 0.0
        %1019 = vmatprep.subr.mxu0 0.0
        %1020 = vmatpush1.msra.mxu0 0.0
        %1021 = vmatprep.subr.mxu0 0.0
        %1022 = vmatpush1.msra.mxu0 0.0
        %1023 = vmatprep.subr.mxu0 0.0
        %1024 = vmatpush1.msra.mxu0 0.0
        %1025 = vmatprep.subr.mxu0 0.0
        %1026 = vmatpush1.msra.mxu0 0.0
        %1027 = vmatprep.subr.mxu0 0.0
        %1028 = vmatpush1.msra.mxu0 %v992
        %1029 = vmatprep.subr.mxu0 0.0
        %1030 = vmatpush2.msra.mxu0 0.0
        %1031 = vmatprep.subr.mxu0 0.0
        %1032 = vmatpush2.msra.mxu0 0.0
        %1033 = vmatprep.subr.mxu0 0.0
        %1034 = vmatpush2.msra.mxu0 0.0
        %1035 = vmatprep.subr.mxu0 0.0
        %1036 = vmatpush2.msra.mxu0 0.0
        %1037 = vmatprep.subr.mxu0 0.0
        %1038 = vmatpush2.msra.mxu0 0.0
        %1039 = vmatprep.subr.mxu0 0.0
        %1040 = vmatpush2.msra.mxu0 0.0
        %1041 = vmatprep.subr.mxu0 0.0
        %1042 = vmatpush2.msra.mxu0 0.0
        %1043 = vmatprep.subr.mxu0 0.0
        %1044 = vmatpush2.msra.mxu0 0.0
        %1045 = vmatprep.subr.mxu0 0.0
        %1046 = vmatpush2.msra.mxu0 0.0
        %1047 = vmatprep.subr.mxu0 0.0
        %1048 = vmatpush2.msra.mxu0 0.0
        %1049 = vmatprep.subr.mxu0 0.0
        %1050 = vmatpush2.msra.mxu0 0.0
        %1051 = vmatprep.subr.mxu0 0.0
        %1052 = vmatpush2.msra.mxu0 0.0
        %1053 = vmatprep.subr.mxu0 0.0
        %1054 = vmatpush2.msra.mxu0 0.0
        %1055 = vmatprep.subr.mxu0 0.0
        %1056 = vmatpush2.msra.mxu0 0.0
        %1057 = vmatprep.subr.mxu0 0.0
        %1058 = vmatpush2.msra.mxu0 0.0
        %1059 = vmatprep.subr.mxu0 0.0
        %1060 = vmatpush2.msra.mxu0 0.0
        %1061 = vmatprep.mubr.f32.mxu0 0.0
        %1062 = vmatmul.mubr.f32.gmra.mxu0 %v995
        %v1063 = vpop.f32.mrf.mxu0
        %v1064 = vadd.f32 0.0, %v1063
        %v1065 = vpop.f32.mrf.mxu0
        %1066 = vdwg.mxu0
        %v1068 = vsel %vm428, %v1064, 0
        %1070 = vmatprep.subr.mxu0 0.0
        %1071 = vmatpush1.msra.mxu0 0.0
        %1072 = vmatprep.subr.mxu0 0.0
        %1073 = vmatpush1.msra.mxu0 0.0
        %1074 = vmatprep.subr.mxu0 0.0
        %1075 = vmatpush1.msra.mxu0 0.0
        %1076 = vmatprep.subr.mxu0 0.0
        %1077 = vmatpush1.msra.mxu0 0.0
        %1078 = vmatprep.subr.mxu0 0.0
        %1079 = vmatpush1.msra.mxu0 0.0
        %1080 = vmatprep.subr.mxu0 0.0
        %1081 = vmatpush1.msra.mxu0 0.0
        %1082 = vmatprep.subr.mxu0 0.0
        %1083 = vmatpush1.msra.mxu0 0.0
        %1084 = vmatprep.subr.mxu0 0.0
        %1085 = vmatpush1.msra.mxu0 0.0
        %1086 = vmatprep.subr.mxu0 0.0
        %1087 = vmatpush1.msra.mxu0 0.0
        %1088 = vmatprep.subr.mxu0 0.0
        %1089 = vmatpush1.msra.mxu0 0.0
        %1090 = vmatprep.subr.mxu0 0.0
        %1091 = vmatpush1.msra.mxu0 0.0
        %1092 = vmatprep.subr.mxu0 0.0
        %1093 = vmatpush1.msra.mxu0 0.0
        %1094 = vmatprep.subr.mxu0 0.0
        %1095 = vmatpush1.msra.mxu0 0.0
        %1096 = vmatprep.subr.mxu0 0.0
        %1097 = vmatpush1.msra.mxu0 0.0
        %1098 = vmatprep.subr.mxu0 0.0
        %1099 = vmatpush1.msra.mxu0 0.0
        %1100 = vmatprep.subr.mxu0 0.0
        %1101 = vmatpush1.msra.mxu0 %v423
        %1102 = vmatprep.subr.mxu0 0.0
        %1103 = vmatpush2.msra.mxu0 0.0
        %1104 = vmatprep.subr.mxu0 0.0
        %1105 = vmatpush2.msra.mxu0 0.0
        %1106 = vmatprep.subr.mxu0 0.0
        %1107 = vmatpush2.msra.mxu0 0.0
        %1108 = vmatprep.subr.mxu0 0.0
        %1109 = vmatpush2.msra.mxu0 0.0
        %1110 = vmatprep.subr.mxu0 0.0
        %1111 = vmatpush2.msra.mxu0 0.0
        %1112 = vmatprep.subr.mxu0 0.0
        %1113 = vmatpush2.msra.mxu0 0.0
        %1114 = vmatprep.subr.mxu0 0.0
        %1115 = vmatpush2.msra.mxu0 0.0
        %1116 = vmatprep.subr.mxu0 0.0
        %1117 = vmatpush2.msra.mxu0 0.0
        %1118 = vmatprep.subr.mxu0 0.0
        %1119 = vmatpush2.msra.mxu0 0.0
        %1120 = vmatprep.subr.mxu0 0.0
        %1121 = vmatpush2.msra.mxu0 0.0
        %1122 = vmatprep.subr.mxu0 0.0
        %1123 = vmatpush2.msra.mxu0 0.0
        %1124 = vmatprep.subr.mxu0 0.0
        %1125 = vmatpush2.msra.mxu0 0.0
        %1126 = vmatprep.subr.mxu0 0.0
        %1127 = vmatpush2.msra.mxu0 0.0
        %1128 = vmatprep.subr.mxu0 0.0
        %1129 = vmatpush2.msra.mxu0 0.0
        %1130 = vmatprep.subr.mxu0 0.0
        %1131 = vmatpush2.msra.mxu0 0.0
        %1132 = vmatprep.subr.mxu0 0.0
        %1133 = vmatpush2.msra.mxu0 0.0
        %1134 = vmatprep.mubr.f32.mxu0 0.0
        %1135 = vmatmul.mubr.f32.gmra.mxu0 %v1068
        %v1136 = vpop.f32.mrf.mxu0
        %v1137 = vadd.f32 0.0, %v1136
        %v1138 = vpop.f32.mrf.mxu0
        %1139 = vdwg.mxu0
        %v1140 = vadd.f32 %v899, %v1137
        %1141 = vrot.lane.b32.xlu0 %v419, 104
        %v1142 = vpop.permute.xlu0 %1141
        %1143 = vrot.lane.b32.xlu0 %v416, 72
        %v1144 = vpop.permute.xlu0 %1143
        %v1145 = vsel %vm428, %v1142, 0
        %v1147 = vsel %vm428, %v1144, 0
        %1149 = vmatprep.subr.mxu0 0.0
        %1150 = vmatpush1.xpose.msra.mxu0 0.0
        %1151 = vmatprep.subr.mxu0 0.0
        %1152 = vmatpush1.xpose.msra.mxu0 0.0
        %1153 = vmatprep.subr.mxu0 0.0
        %1154 = vmatpush1.xpose.msra.mxu0 0.0
        %1155 = vmatprep.subr.mxu0 0.0
        %1156 = vmatpush1.xpose.msra.mxu0 0.0
        %1157 = vmatprep.subr.mxu0 0.0
        %1158 = vmatpush1.xpose.msra.mxu0 0.0
        %1159 = vmatprep.subr.mxu0 0.0
        %1160 = vmatpush1.xpose.msra.mxu0 0.0
        %1161 = vmatprep.subr.mxu0 0.0
        %1162 = vmatpush1.xpose.msra.mxu0 0.0
        %1163 = vmatprep.subr.mxu0 0.0
        %1164 = vmatpush1.xpose.msra.mxu0 0.0
        %1165 = vmatprep.subr.mxu0 0.0
        %1166 = vmatpush1.xpose.msra.mxu0 0.0
        %1167 = vmatprep.subr.mxu0 0.0
        %1168 = vmatpush1.xpose.msra.mxu0 0.0
        %1169 = vmatprep.subr.mxu0 0.0
        %1170 = vmatpush1.xpose.msra.mxu0 0.0
        %1171 = vmatprep.subr.mxu0 0.0
        %1172 = vmatpush1.xpose.msra.mxu0 0.0
        %1173 = vmatprep.subr.mxu0 0.0
        %1174 = vmatpush1.xpose.msra.mxu0 0.0
        %1175 = vmatprep.subr.mxu0 0.0
        %1176 = vmatpush1.xpose.msra.mxu0 0.0
        %1177 = vmatprep.subr.mxu0 0.0
        %1178 = vmatpush1.xpose.msra.mxu0 0.0
        %1179 = vmatprep.subr.mxu0 0.0
        %1180 = vmatpush1.xpose.msra.mxu0 %v1147
        %1181 = vmatprep.subr.mxu0 0.0
        %1182 = vmatpush2.xpose.msra.mxu0 0.0
        %1183 = vmatprep.subr.mxu0 0.0
        %1184 = vmatpush2.xpose.msra.mxu0 0.0
        %1185 = vmatprep.subr.mxu0 0.0
        %1186 = vmatpush2.xpose.msra.mxu0 0.0
        %1187 = vmatprep.subr.mxu0 0.0
        %1188 = vmatpush2.xpose.msra.mxu0 0.0
        %1189 = vmatprep.subr.mxu0 0.0
        %1190 = vmatpush2.xpose.msra.mxu0 0.0
        %1191 = vmatprep.subr.mxu0 0.0
        %1192 = vmatpush2.xpose.msra.mxu0 0.0
        %1193 = vmatprep.subr.mxu0 0.0
        %1194 = vmatpush2.xpose.msra.mxu0 0.0
        %1195 = vmatprep.subr.mxu0 0.0
        %1196 = vmatpush2.xpose.msra.mxu0 0.0
        %1197 = vmatprep.subr.mxu0 0.0
        %1198 = vmatpush2.xpose.msra.mxu0 0.0
        %1199 = vmatprep.subr.mxu0 0.0
        %1200 = vmatpush2.xpose.msra.mxu0 0.0
        %1201 = vmatprep.subr.mxu0 0.0
        %1202 = vmatpush2.xpose.msra.mxu0 0.0
        %1203 = vmatprep.subr.mxu0 0.0
        %1204 = vmatpush2.xpose.msra.mxu0 0.0
        %1205 = vmatprep.subr.mxu0 0.0
        %1206 = vmatpush2.xpose.msra.mxu0 0.0
        %1207 = vmatprep.subr.mxu0 0.0
        %1208 = vmatpush2.xpose.msra.mxu0 0.0
        %1209 = vmatprep.subr.mxu0 0.0
        %1210 = vmatpush2.xpose.msra.mxu0 0.0
        %1211 = vmatprep.subr.mxu0 0.0
        %1212 = vmatpush2.xpose.msra.mxu0 0.0
        %1213 = vmatprep.mubr.f32.mxu0 0.0
        %1214 = vmatmul.mubr.f32.gmra.mxu0 %v1145
        %v1215 = vpop.f32.mrf.mxu0
        %v1216 = vadd.f32 %v420, %v1215
        %v1217 = vpop.f32.mrf.mxu0
        %1218 = vdwg.mxu0
        %v1219 = vsel %vm428, %v1216, -inf
        %1220 = vmax.xlane.f32.xlu0 %v1219
        %v1221 = vpop.xlane.xlu0 %1220
        %v1222 = vsub.f32 %v1216, %v1221
        %v1223 = vmul.f32 %v1222, 1.442695
        %v1224 = vpow.pop %v1223
        %v1225 = vsel %vm428, %v1224, 0.0
        %1226 = vadd.xlane.f32.xlu0 %v1225
        %v1227 = vpop.xlane.xlu0 %1226
        %v1228 = vrcp.pop %v1227
        %v1229 = vmul.f32 %v1224, %v1228
        %1230 = vrot.lane.b32.xlu0 %v416, 40
        %v1231 = vpop.permute.xlu0 %1230
        %v1234 = vsel %vm428, %v1229, 0
        %1236 = vmatprep.subr.mxu0 0.0
        %1237 = vmatpush1.msra.mxu0 0.0
        %1238 = vmatprep.subr.mxu0 0.0
        %1239 = vmatpush1.msra.mxu0 0.0
        %1240 = vmatprep.subr.mxu0 0.0
        %1241 = vmatpush1.msra.mxu0 0.0
        %1242 = vmatprep.subr.mxu0 0.0
        %1243 = vmatpush1.msra.mxu0 0.0
        %1244 = vmatprep.subr.mxu0 0.0
        %1245 = vmatpush1.msra.mxu0 0.0
        %1246 = vmatprep.subr.mxu0 0.0
        %1247 = vmatpush1.msra.mxu0 0.0
        %1248 = vmatprep.subr.mxu0 0.0
        %1249 = vmatpush1.msra.mxu0 0.0
        %1250 = vmatprep.subr.mxu0 0.0
        %1251 = vmatpush1.msra.mxu0 0.0
        %1252 = vmatprep.subr.mxu0 0.0
        %1253 = vmatpush1.msra.mxu0 0.0
        %1254 = vmatprep.subr.mxu0 0.0
        %1255 = vmatpush1.msra.mxu0 0.0
        %1256 = vmatprep.subr.mxu0 0.0
        %1257 = vmatpush1.msra.mxu0 0.0
        %1258 = vmatprep.subr.mxu0 0.0
        %1259 = vmatpush1.msra.mxu0 0.0
        %1260 = vmatprep.subr.mxu0 0.0
        %1261 = vmatpush1.msra.mxu0 0.0
        %1262 = vmatprep.subr.mxu0 0.0
        %1263 = vmatpush1.msra.mxu0 0.0
        %1264 = vmatprep.subr.mxu0 0.0
        %1265 = vmatpush1.msra.mxu0 0.0
        %1266 = vmatprep.subr.mxu0 0.0
        %1267 = vmatpush1.msra.mxu0 %v1231
        %1268 = vmatprep.subr.mxu0 0.0
        %1269 = vmatpush2.msra.mxu0 0.0
        %1270 = vmatprep.subr.mxu0 0.0
        %1271 = vmatpush2.msra.mxu0 0.0
        %1272 = vmatprep.subr.mxu0 0.0
        %1273 = vmatpush2.msra.mxu0 0.0
        %1274 = vmatprep.subr.mxu0 0.0
        %1275 = vmatpush2.msra.mxu0 0.0
        %1276 = vmatprep.subr.mxu0 0.0
        %1277 = vmatpush2.msra.mxu0 0.0
        %1278 = vmatprep.subr.mxu0 0.0
        %1279 = vmatpush2.msra.mxu0 0.0
        %1280 = vmatprep.subr.mxu0 0.0
        %1281 = vmatpush2.msra.mxu0 0.0
        %1282 = vmatprep.subr.mxu0 0.0
        %1283 = vmatpush2.msra.mxu0 0.0
        %1284 = vmatprep.subr.mxu0 0.0
        %1285 = vmatpush2.msra.mxu0 0.0
        %1286 = vmatprep.subr.mxu0 0.0
        %1287 = vmatpush2.msra.mxu0 0.0
        %1288 = vmatprep.subr.mxu0 0.0
        %1289 = vmatpush2.msra.mxu0 0.0
        %1290 = vmatprep.subr.mxu0 0.0
        %1291 = vmatpush2.msra.mxu0 0.0
        %1292 = vmatprep.subr.mxu0 0.0
        %1293 = vmatpush2.msra.mxu0 0.0
        %1294 = vmatprep.subr.mxu0 0.0
        %1295 = vmatpush2.msra.mxu0 0.0
        %1296 = vmatprep.subr.mxu0 0.0
        %1297 = vmatpush2.msra.mxu0 0.0
        %1298 = vmatprep.subr.mxu0 0.0
        %1299 = vmatpush2.msra.mxu0 0.0
        %1300 = vmatprep.mubr.f32.mxu0 0.0
        %1301 = vmatmul.mubr.f32.gmra.mxu0 %v1234
        %v1302 = vpop.f32.mrf.mxu0
        %v1303 = vadd.f32 0.0, %v1302
        %v1304 = vpop.f32.mrf.mxu0
        %1305 = vdwg.mxu0
        %v1307 = vsel %vm428, %v1303, 0
        %1309 = vmatprep.subr.mxu0 0.0
        %1310 = vmatpush1.msra.mxu0 0.0
        %1311 = vmatprep.subr.mxu0 0.0
        %1312 = vmatpush1.msra.mxu0 0.0
        %1313 = vmatprep.subr.mxu0 0.0
        %1314 = vmatpush1.msra.mxu0 0.0
        %1315 = vmatprep.subr.mxu0 0.0
        %1316 = vmatpush1.msra.mxu0 0.0
        %1317 = vmatprep.subr.mxu0 0.0
        %1318 = vmatpush1.msra.mxu0 0.0
        %1319 = vmatprep.subr.mxu0 0.0
        %1320 = vmatpush1.msra.mxu0 0.0
        %1321 = vmatprep.subr.mxu0 0.0
        %1322 = vmatpush1.msra.mxu0 0.0
        %1323 = vmatprep.subr.mxu0 0.0
        %1324 = vmatpush1.msra.mxu0 0.0
        %1325 = vmatprep.subr.mxu0 0.0
        %1326 = vmatpush1.msra.mxu0 0.0
        %1327 = vmatprep.subr.mxu0 0.0
        %1328 = vmatpush1.msra.mxu0 0.0
        %1329 = vmatprep.subr.mxu0 0.0
        %1330 = vmatpush1.msra.mxu0 0.0
        %1331 = vmatprep.subr.mxu0 0.0
        %1332 = vmatpush1.msra.mxu0 0.0
        %1333 = vmatprep.subr.mxu0 0.0
        %1334 = vmatpush1.msra.mxu0 0.0
        %1335 = vmatprep.subr.mxu0 0.0
        %1336 = vmatpush1.msra.mxu0 0.0
        %1337 = vmatprep.subr.mxu0 0.0
        %1338 = vmatpush1.msra.mxu0 0.0
        %1339 = vmatprep.subr.mxu0 0.0
        %1340 = vmatpush1.msra.mxu0 %v424
        %1341 = vmatprep.subr.mxu0 0.0
        %1342 = vmatpush2.msra.mxu0 0.0
        %1343 = vmatprep.subr.mxu0 0.0
        %1344 = vmatpush2.msra.mxu0 0.0
        %1345 = vmatprep.subr.mxu0 0.0
        %1346 = vmatpush2.msra.mxu0 0.0
        %1347 = vmatprep.subr.mxu0 0.0
        %1348 = vmatpush2.msra.mxu0 0.0
        %1349 = vmatprep.subr.mxu0 0.0
        %1350 = vmatpush2.msra.mxu0 0.0
        %1351 = vmatprep.subr.mxu0 0.0
        %1352 = vmatpush2.msra.mxu0 0.0
        %1353 = vmatprep.subr.mxu0 0.0
        %1354 = vmatpush2.msra.mxu0 0.0
        %1355 = vmatprep.subr.mxu0 0.0
        %1356 = vmatpush2.msra.mxu0 0.0
        %1357 = vmatprep.subr.mxu0 0.0
        %1358 = vmatpush2.msra.mxu0 0.0
        %1359 = vmatprep.subr.mxu0 0.0
        %1360 = vmatpush2.msra.mxu0 0.0
        %1361 = vmatprep.subr.mxu0 0.0
        %1362 = vmatpush2.msra.mxu0 0.0
        %1363 = vmatprep.subr.mxu0 0.0
        %1364 = vmatpush2.msra.mxu0 0.0
        %1365 = vmatprep.subr.mxu0 0.0
        %1366 = vmatpush2.msra.mxu0 0.0
        %1367 = vmatprep.subr.mxu0 0.0
        %1368 = vmatpush2.msra.mxu0 0.0
        %1369 = vmatprep.subr.mxu0 0.0
        %1370 = vmatpush2.msra.mxu0 0.0
        %1371 = vmatprep.subr.mxu0 0.0
        %1372 = vmatpush2.msra.mxu0 0.0
        %1373 = vmatprep.mubr.f32.mxu0 0.0
        %1374 = vmatmul.mubr.f32.gmra.mxu0 %v1307
        %v1375 = vpop.f32.mrf.mxu0
        %v1376 = vadd.f32 0.0, %v1375
        %v1377 = vpop.f32.mrf.mxu0
        %1378 = vdwg.mxu0
        %v1379 = vadd.f32 %v1140, %v1376
        %v1380 = vld [vmem:[%s5] sm:$0x1]
        %v1382 = vlaneseq
        %v1383 = vshrl.u32 %v1382, 7
        %v1384 = vsub.s32 0, %v1383
        %v1385 = vrot.slane %v1380, %v1384
        %v1387 = vadd.f32 %v1379, %v1385
        %1388 = vst.msk [vmem:[%s332] sm:$0xff] %vm345, %v1387
        %s1389 = sand.u32 %s171, 1
        %s1390 = scalar_lea.sflag [#allocation4], %s1389
        %s1391 = sand.u32 %s171, 1
        %s1392 = smul.addr %s1391, 8
        %s1393 = scalar_lea.vmem [#allocation10], %s1392
        // Predicated region
        $region61: #{tpu_custom_call.1} parent=43 // pred_check
          %p1394 = pneg %p181
        $region62: #{tpu_custom_call.1} parent=43 // pred_check_branch
          %1396 = sbr.rel (%p1394) target = $region64
        $region63: #{tpu_custom_call.1} parent=43 // pred_region
          %s1398 = ssub.s32 128, 128
          %1399 = vsyncadd %s1390, %s1398
          %s1400 = smul.addr %s27, 128
          %s1401 = scalar_lea.hbm %s6, %s1400
          %s1403 = sshll.u32 %s1393, 4
          %s1404 = int_to_ptr.vmem [resolvable:$true] %s1403
          %1406 = dma.vmem_to_hbm [thread:$0]  %s1404, 128, %s1401, %s1390
        $region64: #{tpu_custom_call.1} parent=43 // pred_fallthru
          _
      $region44: #{tpu_custom_call.1} parent=5 // pred_fallthru
        _
      %p1407 = scmp.le.s32.totalorder 2, %s22
      // Predicated region
      $region65: #{tpu_custom_call.1} parent=5 // pred_check
        %p1408 = pneg %p1407
      $region66: #{tpu_custom_call.1} parent=5 // pred_check_branch
        %1410 = sbr.rel (%p1408) target = $region68
      $region67: #{tpu_custom_call.1} parent=5 // pred_region
        %s1411 = ssub.s32 %s22, 2
        // Predicated region
        $region69: #{tpu_custom_call.1} parent=67 // pred_check
          %p1412 = pneg %p187
        $region70: #{tpu_custom_call.1} parent=67 // pred_check_branch
          %1414 = sbr.rel (%p1412) target = $region72
        $region71: #{tpu_custom_call.1} parent=67 // pred_region
          %s1415 = sand.u32 %s172, 1
          %s1416 = scalar_lea.sflag [#allocation4], %s1415
          %s1417 = sand.u32 %s172, 1
          %s1418 = smul.addr %s1417, 8
          %s1419 = scalar_lea.vmem [#allocation10], %s1418
          %1420 = dma.done %s1416, 128
        $region72: #{tpu_custom_call.1} parent=67 // pred_fallthru
          _
      $region68: #{tpu_custom_call.1} parent=5 // pred_fallthru
        _
    $region6: #{tpu_custom_call.1} parent=1 // loop_footer
      %s26 = sadd.s32 1, %s22
    $region7: #{tpu_custom_call.1} parent=1 // loop_footer_branch
      %21 = sbr.rel target = $region3
    $region8: #{tpu_custom_call.1} parent=1 // loop_exit
      _
    %1421 = vsyncpa [#allocation3], 1
    %s1422 = scalar_lea.sflag [#allocation3], 1
    %1423 = vsyncpa %s1422, 1
    %1424 = vsyncpa [#allocation6], 1
    %s1425 = scalar_lea.sflag [#allocation6], 1
    %1426 = vsyncpa %s1425, 1
    %1427 = vsyncpa [#allocation9], 1
    %1428 = vsyncpa [#allocation4], 1
    %s1429 = scalar_lea.sflag [#allocation4], 1
    %1430 = vsyncpa %s1429, 1

</llo_original>
